<compile_context>
chip_gen: v7x
topology: tpu7x:2x2x1
jax: 0.10.0
libtpu: 0.0.40
codegen_flags: <defaults>
</compile_context>

<pallas_src>
import functools

import jax
import jax.numpy as jnp
from jax import lax
from jax.experimental import pallas as pl
from jax.experimental.pallas import tpu as pltpu

EPS = 0.1  # logit_laplace_eps from dall_e utils


# ----------------------------------------------------------------------------
# Fused Pallas kernel: encoder + argmax/one-hot + decoder on one row tile
# ----------------------------------------------------------------------------
def _fused_dalle_kernel(x_ref, w1_ref, b1_ref, w2_ref, b2_ref, w3_ref, b3_ref,
                        dw1_ref, db1_ref, dw2_ref, db2_ref, o_ref, *, vocab):
    # --- encoder stage 1: per-pixel 1x1 conv (map_pixels folded into w1/b1).
    # w1 is block-diagonal over the 64 patch pixels, so the result is already in
    # the space-to-depth / im2col layout (tm, ds*ds*hidden) -> lane-dense.
    x = x_ref[...].astype(jnp.bfloat16)                                   # (tm, ds*ds*3)
    h = jnp.dot(x, w1_ref[...], preferred_element_type=jnp.float32) + b1_ref[...]
    h = jnp.maximum(h, 0.0)                                               # (tm, ds*ds*hidden)

    # --- encoder stage 2: ds x ds stride-ds conv as a dense matmul
    h = jnp.dot(h.astype(jnp.bfloat16), w2_ref[...],
                preferred_element_type=jnp.float32) + b2_ref[...]
    h = jnp.maximum(h, 0.0)                                               # (tm, hidden)

    # --- encoder stage 3: 1x1 conv to vocab logits
    logits = jnp.dot(h.astype(jnp.bfloat16), w3_ref[...],
                     preferred_element_type=jnp.float32) + b3_ref[...]    # (tm, vocab)

    # --- argmax over vocab + one-hot, kept entirely on-chip (never hits HBM).
    # Tie-break = smallest index attaining the max (matches torch.argmax).
    m = jnp.max(logits, axis=-1, keepdims=True)
    cols = lax.broadcasted_iota(jnp.int32, logits.shape, 1)
    first_idx = jnp.min(jnp.where(logits == m, cols, vocab), axis=-1, keepdims=True)
    onehot = (cols == first_idx).astype(jnp.bfloat16)                     # (tm, vocab)

    # --- decoder stage 1: one_hot @ dec_w1 (exact, == dec_w1[argmax]) + ReLU
    d = jnp.dot(onehot, dw1_ref[...], preferred_element_type=jnp.float32) + db1_ref[...]
    d = jnp.maximum(d, 0.0)                                               # (tm, hidden)

    # --- decoder stage 2: only the kept 3*ds*ds columns; sigmoid + unmap in f32
    stats = jnp.dot(d.astype(jnp.bfloat16), dw2_ref[...],
                    preferred_element_type=jnp.float32) + db2_ref[...]    # (tm, 3*ds*ds)
    s = jax.nn.sigmoid(stats)
    o_ref[...] = jnp.clip((s - EPS) / (1.0 - 2.0 * EPS), 0.0, 1.0).astype(o_ref.dtype)


def _round_up(x, m):
    return (x + m - 1) // m * m


def fused_dalle_call(x_rows, weights, *, vocab, tile_m=256):
    """x_rows: (M, ds*ds*3) f32 im2col patches -> (M, 3*ds*ds) f32 reconstructed patches."""
    M, K = x_rows.shape
    n_out = weights[-2].shape[1]                       # 3*ds*ds

    tm = min(tile_m, _round_up(M, 8))                  # keep tm a multiple of 8
    Mp = _round_up(M, tm)
    if Mp != M:                                        # masked-free ragged handling: zero-pad rows
        x_rows = jnp.pad(x_rows, ((0, Mp - M), (0, 0)))

    def full_spec(arr):
        return pl.BlockSpec(arr.shape, lambda i: (0,) * arr.ndim)

    kernel = functools.partial(_fused_dalle_kernel, vocab=vocab)
    out = pl.pallas_call(
        kernel,
        out_shape=jax.ShapeDtypeStruct((Mp, n_out), jnp.float32),
        grid=(Mp // tm,),
        in_specs=[pl.BlockSpec((tm, K), lambda i: (i, 0))] + [full_spec(a) for a in weights],
        out_specs=pl.BlockSpec((tm, n_out), lambda i: (i, 0)),
        compiler_params=pltpu.CompilerParams(dimension_semantics=("parallel",)),
    )(x_rows, *weights)
    return out[:M]


# ----------------------------------------------------------------------------
# Synthetic parameters (deterministic) and weight preparation
# ----------------------------------------------------------------------------
def init_params(key, *, hidden=32, vocab=128, ds=8, out_ch=6):
    ks = jax.random.split(key, 5)

    def w(k, shape):
        fan_in = shape[0]
        return (jax.random.normal(k, shape, jnp.float32) / jnp.sqrt(fan_in)).astype(jnp.float32)

    return {
        # encoder
        "enc_w1": w(ks[0], (3, hidden)),                "enc_b1": jnp.zeros((hidden,), jnp.float32),
        "enc_w2": w(ks[1], (hidden * ds * ds, hidden)), "enc_b2": jnp.zeros((hidden,), jnp.float32),
        "enc_w3": w(ks[2], (hidden, vocab)),            "enc_b3": jnp.zeros((vocab,), jnp.float32),
        # decoder
        "dec_w1": w(ks[3], (vocab, hidden)),            "dec_b1": jnp.zeros((hidden,), jnp.float32),
        "dec_w2": w(ks[4], (hidden, out_ch * ds * ds)), "dec_b2": jnp.zeros((out_ch * ds * ds,), jnp.float32),
    }


def prepare_weights(params, *, ds=8):
    """Fold map_pixels into W1, expand W1 to the block-diagonal im2col form,
    slice dec_w2 to the used columns, and cast matmul weights to bf16."""
    w1 = params["enc_w1"]
    w1_folded = (1.0 - 2.0 * EPS) * w1                          # map_pixels scale
    b1_folded = params["enc_b1"] + EPS * jnp.sum(w1, axis=0)    # map_pixels shift

    npix = ds * ds
    # block-diagonal per-pixel weight: (3*ds*ds, hidden*ds*ds); output layout is
    # patch-pixel-major / channel-fastest, matching enc_w2's expected input layout.
    w1_big = jnp.kron(jnp.eye(npix, dtype=jnp.float32), w1_folded)
    b1_big = jnp.tile(b1_folded, (npix,))

    keep = 3 * ds * ds                                          # x_stats[:, :3] after depth-to-space
    dw2 = params["dec_w2"][:, :keep]
    db2 = params["dec_b2"][:keep]

    bf = lambda a: a.astype(jnp.bfloat16)
    row = lambda b: b.reshape(1, -1).astype(jnp.float32)
    return (
        bf(w1_big), row(b1_big),
        bf(params["enc_w2"]), row(params["enc_b2"]),
        bf(params["enc_w3"]), row(params["enc_b3"]),
        bf(params["dec_w1"]), row(params["dec_b1"]),
        bf(dw2), row(db2),
    )


# ----------------------------------------------------------------------------
# Full forward pass (layout plumbing outside, all compute in one Pallas kernel)
# ----------------------------------------------------------------------------
def dalle_forward(params, x_nchw, *, vocab=128, ds=8):
    B, C, H, W = x_nchw.shape
    assert C == 3 and H % ds == 0 and W % ds == 0
    Hs, Ws = H // ds, W // ds

    weights = prepare_weights(params, ds=ds)

    # NCHW -> (B*Hs*Ws, ds*ds*3) im2col patches, channel-fastest within a pixel
    x = x_nchw.astype(jnp.float32).reshape(B, C, Hs, ds, Ws, ds)
    x = jnp.transpose(x, (0, 2, 4, 3, 5, 1)).reshape(B * Hs * Ws, ds * ds * C)

    # one fused kernel: map_pixels + encoder + argmax/one-hot + decoder + unmap
    rec = fused_dalle_call(x, weights, vocab=vocab)             # (B*Hs*Ws, 3*ds*ds)

    # depth-to-space back to NCHW (columns packed channel-major as (3, ds, ds))
    rec = rec.reshape(B, Hs, Ws, 3, ds, ds)
    rec = jnp.transpose(rec, (0, 3, 1, 4, 2, 5)).reshape(B, 3, H, W)
    return rec


# ----------------------------------------------------------------------------
if __name__ == "__main__":
    key = jax.random.PRNGKey(0)
    k_x, k_p = jax.random.split(key)

    B, H, W = 2, 32, 32
    x = jax.random.uniform(k_x, (B, 3, H, W), jnp.float32)      # image-like input in [0, 1], NCHW

    params = init_params(k_p, hidden=32, vocab=128, ds=8)

    fwd = jax.jit(functools.partial(dalle_forward, vocab=128, ds=8))
    x_rec = fwd(params, x)
    jax.block_until_ready(x_rec)

    assert x_rec.shape == (B, 3, H, W), x_rec.shape
    assert x_rec.dtype == jnp.float32
    assert bool(jnp.all(jnp.isfinite(x_rec)))
    assert bool(jnp.all((x_rec >= 0.0) & (x_rec <= 1.0)))       # unmap_pixels clamps to [0, 1]

    print("KERNEL_OK")
</pallas_src>

<mosaic_0001>
module attributes {stable_mosaic.version = 11 : i64} {
  func.func @_fused_dalle_kernel(%arg0: i32, %arg1: memref<32x192xf32, #tpu.memory_space<vmem>>, %arg2: memref<192x2048xbf16, #tpu.memory_space<vmem>>, %arg3: memref<1x2048xf32, #tpu.memory_space<vmem>>, %arg4: memref<2048x32xbf16, #tpu.memory_space<vmem>>, %arg5: memref<1x32xf32, #tpu.memory_space<vmem>>, %arg6: memref<32x128xbf16, #tpu.memory_space<vmem>>, %arg7: memref<1x128xf32, #tpu.memory_space<vmem>>, %arg8: memref<128x32xbf16, #tpu.memory_space<vmem>>, %arg9: memref<1x32xf32, #tpu.memory_space<vmem>>, %arg10: memref<32x192xbf16, #tpu.memory_space<vmem>>, %arg11: memref<1x192xf32, #tpu.memory_space<vmem>>, %arg12: memref<32x192xf32, #tpu.memory_space<vmem>>) attributes {dimension_semantics = [#tpu.dimension_semantics<parallel>], iteration_bounds = array<i64: 1>, scalar_prefetch = 0 : i64, scratch_operands = 0 : i64, tpu.core_type = #tpu.core_type<tc>, window_params = [{transform_indices = @transform_0, window_bounds = array<i64: 32, 192>}, {pipeline_mode = #tpu.pipeline_mode<synchronous>, transform_indices = @transform_1, window_bounds = array<i64: 192, 2048>}, {pipeline_mode = #tpu.pipeline_mode<synchronous>, transform_indices = @transform_2, window_bounds = array<i64: 1, 2048>}, {pipeline_mode = #tpu.pipeline_mode<synchronous>, transform_indices = @transform_3, window_bounds = array<i64: 2048, 32>}, {pipeline_mode = #tpu.pipeline_mode<synchronous>, transform_indices = @transform_4, window_bounds = array<i64: 1, 32>}, {pipeline_mode = #tpu.pipeline_mode<synchronous>, transform_indices = @transform_5, window_bounds = array<i64: 32, 128>}, {pipeline_mode = #tpu.pipeline_mode<synchronous>, transform_indices = @transform_6, window_bounds = array<i64: 1, 128>}, {pipeline_mode = #tpu.pipeline_mode<synchronous>, transform_indices = @transform_7, window_bounds = array<i64: 128, 32>}, {pipeline_mode = #tpu.pipeline_mode<synchronous>, transform_indices = @transform_8, window_bounds = array<i64: 1, 32>}, {pipeline_mode = #tpu.pipeline_mode<synchronous>, transform_indices = @transform_9, window_bounds = array<i64: 32, 192>}, {pipeline_mode = #tpu.pipeline_mode<synchronous>, transform_indices = @transform_10, window_bounds = array<i64: 1, 192>}, {transform_indices = @transform_11, window_bounds = array<i64: 32, 192>}]} {
    %c0 = arith.constant 0 : index
    %c0_0 = arith.constant 0 : index
    %0 = vector.load %arg1[%c0, %c0_0] : memref<32x192xf32, #tpu.memory_space<vmem>>, vector<32x192xf32>
    %1 = arith.truncf %0 : vector<32x192xf32> to vector<32x192xbf16>
    %c0_1 = arith.constant 0 : index
    %c0_2 = arith.constant 0 : index
    %2 = vector.load %arg2[%c0_1, %c0_2] : memref<192x2048xbf16, #tpu.memory_space<vmem>>, vector<192x2048xbf16>
    %cst = arith.constant dense<0.000000e+00> : vector<32x2048xf32>
    %3 = tpu.matmul %1, %2, %cst {dimension_numbers = #tpu.dot_dimension_numbers<[1], [0], [0], [1], [0, 0, 1, 1], [], []>} : vector<32x192xbf16>, vector<192x2048xbf16>, vector<32x2048xf32> -> vector<32x2048xf32>
    %c0_3 = arith.constant 0 : index
    %c0_4 = arith.constant 0 : index
    %4 = vector.load %arg3[%c0_3, %c0_4] : memref<1x2048xf32, #tpu.memory_space<vmem>>, vector<1x2048xf32>
    %5 = vector.broadcast %4 : vector<1x2048xf32> to vector<32x2048xf32>
    %6 = arith.addf %3, %5 : vector<32x2048xf32>
    %cst_5 = arith.constant 0.000000e+00 : f32
    %7 = vector.broadcast %cst_5 : f32 to vector<32x2048xf32>
    %8 = arith.maximumf %6, %7 : vector<32x2048xf32>
    %9 = arith.truncf %8 : vector<32x2048xf32> to vector<32x2048xbf16>
    %c0_6 = arith.constant 0 : index
    %c0_7 = arith.constant 0 : index
    %10 = vector.load %arg4[%c0_6, %c0_7] : memref<2048x32xbf16, #tpu.memory_space<vmem>>, vector<2048x32xbf16>
    %cst_8 = arith.constant dense<0.000000e+00> : vector<32x32xf32>
    %11 = tpu.matmul %9, %10, %cst_8 {dimension_numbers = #tpu.dot_dimension_numbers<[1], [0], [0], [1], [0, 0, 1, 1], [], []>} : vector<32x2048xbf16>, vector<2048x32xbf16>, vector<32x32xf32> -> vector<32x32xf32>
    %c0_9 = arith.constant 0 : index
    %c0_10 = arith.constant 0 : index
    %12 = vector.load %arg5[%c0_9, %c0_10] : memref<1x32xf32, #tpu.memory_space<vmem>>, vector<1x32xf32>
    %13 = vector.broadcast %12 : vector<1x32xf32> to vector<32x32xf32>
    %14 = arith.addf %11, %13 : vector<32x32xf32>
    %cst_11 = arith.constant 0.000000e+00 : f32
    %15 = vector.broadcast %cst_11 : f32 to vector<32x32xf32>
    %16 = arith.maximumf %14, %15 : vector<32x32xf32>
    %17 = arith.truncf %16 : vector<32x32xf32> to vector<32x32xbf16>
    %c0_12 = arith.constant 0 : index
    %c0_13 = arith.constant 0 : index
    %18 = vector.load %arg6[%c0_12, %c0_13] : memref<32x128xbf16, #tpu.memory_space<vmem>>, vector<32x128xbf16>
    %cst_14 = arith.constant dense<0.000000e+00> : vector<32x128xf32>
    %19 = tpu.matmul %17, %18, %cst_14 {dimension_numbers = #tpu.dot_dimension_numbers<[1], [0], [0], [1], [0, 0, 1, 1], [], []>} : vector<32x32xbf16>, vector<32x128xbf16>, vector<32x128xf32> -> vector<32x128xf32>
    %c0_15 = arith.constant 0 : index
    %c0_16 = arith.constant 0 : index
    %20 = vector.load %arg7[%c0_15, %c0_16] : memref<1x128xf32, #tpu.memory_space<vmem>>, vector<1x128xf32>
    %21 = vector.broadcast %20 : vector<1x128xf32> to vector<32x128xf32>
    %22 = arith.addf %19, %21 : vector<32x128xf32>
    %cst_17 = arith.constant dense<0xFF800000> : vector<32xf32>
    %23 = vector.multi_reduction <maximumf>, %22, %cst_17 [1] : vector<32x128xf32> to vector<32xf32>
    %24 = vector.shape_cast %23 : vector<32xf32> to vector<32x1xf32>
    %25 = tpu.iota {dimensions = array<i32: 1>} : vector<32x128xi32>
    %26 = vector.broadcast %24 : vector<32x1xf32> to vector<32x128xf32>
    %27 = arith.cmpf oeq, %22, %26 : vector<32x128xf32>
    %c128_i32 = arith.constant 128 : i32
    %28 = vector.broadcast %c128_i32 : i32 to vector<32x128xi32>
    %29 = arith.select %27, %25, %28 : vector<32x128xi1>, vector<32x128xi32>
    %cst_18 = arith.constant dense<2147483647> : vector<32xi32>
    %30 = vector.multi_reduction <minsi>, %29, %cst_18 [1] : vector<32x128xi32> to vector<32xi32>
    %31 = vector.shape_cast %30 : vector<32xi32> to vector<32x1xi32>
    %32 = vector.broadcast %31 : vector<32x1xi32> to vector<32x128xi32>
    %33 = arith.cmpi eq, %25, %32 : vector<32x128xi32>
    %34 = arith.extui %33 : vector<32x128xi1> to vector<32x128xi32>
    %35 = arith.sitofp %34 : vector<32x128xi32> to vector<32x128xf32>
    %36 = arith.truncf %35 : vector<32x128xf32> to vector<32x128xbf16>
    %c0_19 = arith.constant 0 : index
    %c0_20 = arith.constant 0 : index
    %37 = vector.load %arg8[%c0_19, %c0_20] : memref<128x32xbf16, #tpu.memory_space<vmem>>, vector<128x32xbf16>
    %cst_21 = arith.constant dense<0.000000e+00> : vector<32x32xf32>
    %38 = tpu.matmul %36, %37, %cst_21 {dimension_numbers = #tpu.dot_dimension_numbers<[1], [0], [0], [1], [0, 0, 1, 1], [], []>} : vector<32x128xbf16>, vector<128x32xbf16>, vector<32x32xf32> -> vector<32x32xf32>
    %c0_22 = arith.constant 0 : index
    %c0_23 = arith.constant 0 : index
    %39 = vector.load %arg9[%c0_22, %c0_23] : memref<1x32xf32, #tpu.memory_space<vmem>>, vector<1x32xf32>
    %40 = vector.broadcast %39 : vector<1x32xf32> to vector<32x32xf32>
    %41 = arith.addf %38, %40 : vector<32x32xf32>
    %cst_24 = arith.constant 0.000000e+00 : f32
    %42 = vector.broadcast %cst_24 : f32 to vector<32x32xf32>
    %43 = arith.maximumf %41, %42 : vector<32x32xf32>
    %44 = arith.truncf %43 : vector<32x32xf32> to vector<32x32xbf16>
    %c0_25 = arith.constant 0 : index
    %c0_26 = arith.constant 0 : index
    %45 = vector.load %arg10[%c0_25, %c0_26] : memref<32x192xbf16, #tpu.memory_space<vmem>>, vector<32x192xbf16>
    %cst_27 = arith.constant dense<0.000000e+00> : vector<32x192xf32>
    %46 = tpu.matmul %44, %45, %cst_27 {dimension_numbers = #tpu.dot_dimension_numbers<[1], [0], [0], [1], [0, 0, 1, 1], [], []>} : vector<32x32xbf16>, vector<32x192xbf16>, vector<32x192xf32> -> vector<32x192xf32>
    %c0_28 = arith.constant 0 : index
    %c0_29 = arith.constant 0 : index
    %47 = vector.load %arg11[%c0_28, %c0_29] : memref<1x192xf32, #tpu.memory_space<vmem>>, vector<1x192xf32>
    %48 = vector.broadcast %47 : vector<1x192xf32> to vector<32x192xf32>
    %49 = arith.addf %46, %48 : vector<32x192xf32>
    %50 = arith.negf %49 : vector<32x192xf32>
    %51 = math.exp %50 : vector<32x192xf32>
    %cst_30 = arith.constant 1.000000e+00 : f32
    %52 = vector.broadcast %cst_30 : f32 to vector<32x192xf32>
    %53 = arith.addf %52, %51 : vector<32x192xf32>
    %54 = arith.divf %52, %53 : vector<32x192xf32>
    %cst_31 = arith.constant 1.000000e-01 : f32
    %55 = vector.broadcast %cst_31 : f32 to vector<32x192xf32>
    %56 = arith.subf %54, %55 : vector<32x192xf32>
    %cst_32 = arith.constant 8.000000e-01 : f32
    %57 = vector.broadcast %cst_32 : f32 to vector<32x192xf32>
    %58 = arith.divf %56, %57 : vector<32x192xf32>
    %cst_33 = arith.constant 0.000000e+00 : f32
    %cst_34 = arith.constant 1.000000e+00 : f32
    %59 = vector.broadcast %cst_33 : f32 to vector<32x192xf32>
    %60 = arith.maximumf %59, %58 : vector<32x192xf32>
    %61 = vector.broadcast %cst_34 : f32 to vector<32x192xf32>
    %62 = arith.minimumf %61, %60 : vector<32x192xf32>
    %c0_35 = arith.constant 0 : index
    %c0_36 = arith.constant 0 : index
    %63 = vector.load %arg12[%c0_35, %c0_36] : memref<32x192xf32, #tpu.memory_space<vmem>>, vector<32x192xf32>
    tpu.vector_store %arg12[%c0_35, %c0_36], %62 {strides = array<i32>} : memref<32x192xf32, #tpu.memory_space<vmem>>, vector<32x192xf32>,
    return
  }
  func.func @transform_0(%arg0: i32) -> (i32, i32) {
    %c0_i32 = arith.constant 0 : i32
    %c0_i32_0 = arith.constant 0 : i32
    return %arg0, %c0_i32 : i32, i32
  }
  func.func @transform_1(%arg0: i32) -> (i32, i32) {
    %c0_i32 = arith.constant 0 : i32
    %c0_i32_0 = arith.constant 0 : i32
    %c0_i32_1 = arith.constant 0 : i32
    return %c0_i32, %c0_i32_0 : i32, i32
  }
  func.func @transform_2(%arg0: i32) -> (i32, i32) {
    %c0_i32 = arith.constant 0 : i32
    %c0_i32_0 = arith.constant 0 : i32
    %c0_i32_1 = arith.constant 0 : i32
    return %c0_i32, %c0_i32_0 : i32, i32
  }
  func.func @transform_3(%arg0: i32) -> (i32, i32) {
    %c0_i32 = arith.constant 0 : i32
    %c0_i32_0 = arith.constant 0 : i32
    %c0_i32_1 = arith.constant 0 : i32
    return %c0_i32, %c0_i32_0 : i32, i32
  }
  func.func @transform_4(%arg0: i32) -> (i32, i32) {
    %c0_i32 = arith.constant 0 : i32
    %c0_i32_0 = arith.constant 0 : i32
    %c0_i32_1 = arith.constant 0 : i32
    return %c0_i32, %c0_i32_0 : i32, i32
  }
  func.func @transform_5(%arg0: i32) -> (i32, i32) {
    %c0_i32 = arith.constant 0 : i32
    %c0_i32_0 = arith.constant 0 : i32
    %c0_i32_1 = arith.constant 0 : i32
    return %c0_i32, %c0_i32_0 : i32, i32
  }
  func.func @transform_6(%arg0: i32) -> (i32, i32) {
    %c0_i32 = arith.constant 0 : i32
    %c0_i32_0 = arith.constant 0 : i32
    %c0_i32_1 = arith.constant 0 : i32
    return %c0_i32, %c0_i32_0 : i32, i32
  }
  func.func @transform_7(%arg0: i32) -> (i32, i32) {
    %c0_i32 = arith.constant 0 : i32
    %c0_i32_0 = arith.constant 0 : i32
    %c0_i32_1 = arith.constant 0 : i32
    return %c0_i32, %c0_i32_0 : i32, i32
  }
  func.func @transform_8(%arg0: i32) -> (i32, i32) {
    %c0_i32 = arith.constant 0 : i32
    %c0_i32_0 = arith.constant 0 : i32
    %c0_i32_1 = arith.constant 0 : i32
    return %c0_i32, %c0_i32_0 : i32, i32
  }
  func.func @transform_9(%arg0: i32) -> (i32, i32) {
    %c0_i32 = arith.constant 0 : i32
    %c0_i32_0 = arith.constant 0 : i32
    %c0_i32_1 = arith.constant 0 : i32
    return %c0_i32, %c0_i32_0 : i32, i32
  }
  func.func @transform_10(%arg0: i32) -> (i32, i32) {
    %c0_i32 = arith.constant 0 : i32
    %c0_i32_0 = arith.constant 0 : i32
    %c0_i32_1 = arith.constant 0 : i32
    return %c0_i32, %c0_i32_0 : i32, i32
  }
  func.func @transform_11(%arg0: i32) -> (i32, i32) {
    %c0_i32 = arith.constant 0 : i32
    %c0_i32_0 = arith.constant 0 : i32
    return %arg0, %c0_i32 : i32, i32
  }
}

</mosaic_0001>

<llo_original>
// kernel: tile.8
$region0: #{tile.8}
  #allocation0 [shape = 's32[1]{0}', space=sflag, size = 0x4, scoped, tag = 'scoped memory for tile.8']
  %s0 = inlined_call_operand.vmem [shape: f32[32], index: 0, kind: input, shape index: {}]
  %s1 = inlined_call_operand.vmem [shape: f32[64,32], index: 1, kind: output, shape index: {}]
  // Predicated region
  $region2: #{tile.8} parent=0 // pred_check
    _
  $region3: #{tile.8} parent=0 // pred_check_branch
    %3 = sbr.rel (0) target = $region5
  $region4: #{tile.8} parent=0 // pred_region
    _
  $region5: #{tile.8} parent=0 // pred_fallthru
    _
  %v4 = vld [vmem:[%s0] ss:$0 sm:$0xff]
  %5 = vst [vmem:[%s1] sm:$0xff] %v4
  %s6 = scalar_lea.vmem %s1, 8
  %7 = vst [vmem:[%s6] sm:$0xff] %v4
  %s8 = scalar_lea.vmem %s1, 16
  %9 = vst [vmem:[%s8] sm:$0xff] %v4
  %s10 = scalar_lea.vmem %s1, 24
  %11 = vst [vmem:[%s10] sm:$0xff] %v4
  %s12 = scalar_lea.vmem %s1, 32
  %13 = vst [vmem:[%s12] sm:$0xff] %v4
  %s14 = scalar_lea.vmem %s1, 40
  %15 = vst [vmem:[%s14] sm:$0xff] %v4
  %s16 = scalar_lea.vmem %s1, 48
  %17 = vst [vmem:[%s16] sm:$0xff] %v4
  %s18 = scalar_lea.vmem %s1, 56
  %19 = vst [vmem:[%s18] sm:$0xff] %v4

// kernel: tile.9
$region0: #{tile.9}
  %s0 = inlined_call_operand.vmem [shape: f32[64,32], index: 0, kind: input, shape index: {}]
  %s1 = inlined_call_operand.vmem [shape: f32[1,2048], index: 1, kind: output, shape index: {}]
  $region1: #{tile.9} parent=0
    #allocation0 [shape = 'u8[65536]{0}', space=vmem, size = 0x10000, scoped, tag = 'scoped mem for output reshape']
    %v2 = vld [vmem:[%s0] ss:$4 sm:$0xff]
    %vm3 = vcmask 261120
    %4 = vst.msk [vmem:[#allocation0] ss:$8 sm:$0xf] %vm3, %v2
    %5 = vst.msk [vmem:[#allocation0] ss:$8 sm:$0xf0] %vm3, %v2
    %s6 = scalar_lea.vmem %s0, 32
    %v7 = vld [vmem:[%s6] ss:$4 sm:$0xff]
    %vm8 = vcmask 261120
    %s9 = scalar_lea.vmem [#allocation0], 64
    %10 = vst.msk [vmem:[%s9] ss:$8 sm:$0xf] %vm8, %v7
    %s11 = scalar_lea.vmem [#allocation0], 64
    %12 = vst.msk [vmem:[%s11] ss:$8 sm:$0xf0] %vm8, %v7
    %s13 = scalar_lea.vmem %s0, 3
    %v14 = vld [vmem:[%s13] ss:$4 sm:$0xff]
    %15 = vrot.lane.b32.xlu0 %v14, 96
    %v16 = vpop.permute.xlu0 %15
    %vm17 = vcmask 1048320
    %18 = vst.msk [vmem:[#allocation0] ss:$8 sm:$0xf] %vm17, %v16
    %19 = vst.msk [vmem:[#allocation0] ss:$8 sm:$0xf0] %vm17, %v16
    %s20 = scalar_lea.vmem %s0, 35
    %v21 = vld [vmem:[%s20] ss:$4 sm:$0xff]
    %22 = vrot.lane.b32.xlu0 %v21, 96
    %v23 = vpop.permute.xlu0 %22
    %vm24 = vcmask 1048320
    %s25 = scalar_lea.vmem [#allocation0], 64
    %26 = vst.msk [vmem:[%s25] ss:$8 sm:$0xf] %vm24, %v23
    %s27 = scalar_lea.vmem [#allocation0], 64
    %28 = vst.msk [vmem:[%s27] ss:$8 sm:$0xf0] %vm24, %v23
    %s29 = scalar_lea.vmem %s0, 2
    %v30 = vld [vmem:[%s29] ss:$4 sm:$0xff]
    %31 = vrot.lane.b32.xlu0 %v30, 64
    %v32 = vpop.permute.xlu0 %31
    %vm33 = vcmask 785920
    %34 = vst.msk [vmem:[#allocation0] ss:$8 sm:$0xf] %vm33, %v32
    %35 = vst.msk [vmem:[#allocation0] ss:$8 sm:$0xf0] %vm33, %v32
    %s36 = scalar_lea.vmem %s0, 34
    %v37 = vld [vmem:[%s36] ss:$4 sm:$0xff]
    %38 = vrot.lane.b32.xlu0 %v37, 64
    %v39 = vpop.permute.xlu0 %38
    %vm40 = vcmask 785920
    %s41 = scalar_lea.vmem [#allocation0], 64
    %42 = vst.msk [vmem:[%s41] ss:$8 sm:$0xf] %vm40, %v39
    %s43 = scalar_lea.vmem [#allocation0], 64
    %44 = vst.msk [vmem:[%s43] ss:$8 sm:$0xf0] %vm40, %v39
    %s45 = scalar_lea.vmem %s0, 1
    %v46 = vld [vmem:[%s45] ss:$4 sm:$0xff]
    %47 = vrot.lane.b32.xlu0 %v46, 32
    %v48 = vpop.permute.xlu0 %47
    %vm49 = vcmask 523520
    %50 = vst.msk [vmem:[#allocation0] ss:$8 sm:$0xf] %vm49, %v48
    %51 = vst.msk [vmem:[#allocation0] ss:$8 sm:$0xf0] %vm49, %v48
    %s52 = scalar_lea.vmem %s0, 33
    %v53 = vld [vmem:[%s52] ss:$4 sm:$0xff]
    %54 = vrot.lane.b32.xlu0 %v53, 32
    %v55 = vpop.permute.xlu0 %54
    %vm56 = vcmask 523520
    %s57 = scalar_lea.vmem [#allocation0], 64
    %58 = vst.msk [vmem:[%s57] ss:$8 sm:$0xf] %vm56, %v55
    %s59 = scalar_lea.vmem [#allocation0], 64
    %60 = vst.msk [vmem:[%s59] ss:$8 sm:$0xf0] %vm56, %v55
    %s62 = sshllo.u32 0, 1
    %v64 = vld [vmem:[#allocation0] sm:%s62]
    %s65 = sshllo.u32 0, 1
    %66 = vst [vmem:[%s1] sm:%s65] %v64
    %s67 = scalar_lea.vmem [#allocation0], 8
    %v68 = vld [vmem:[%s67] sm:%s62]
    %s69 = sshllo.u32 0, 1
    %s70 = scalar_lea.vmem %s1, 1
    %71 = vst [vmem:[%s70] sm:%s69] %v68
    %s72 = scalar_lea.vmem [#allocation0], 16
    %v73 = vld [vmem:[%s72] sm:%s62]
    %s74 = sshllo.u32 0, 1
    %s75 = smul.addr 1, 2
    %s76 = scalar_lea.vmem %s1, %s75
    %77 = vst [vmem:[%s76] sm:%s74] %v73
    %s78 = scalar_lea.vmem [#allocation0], 24
    %v79 = vld [vmem:[%s78] sm:%s62]
    %s80 = sshllo.u32 0, 1
    %s81 = smul.addr 1, 3
    %s82 = scalar_lea.vmem %s1, %s81
    %83 = vst [vmem:[%s82] sm:%s80] %v79
    %s84 = scalar_lea.vmem [#allocation0], 32
    %v85 = vld [vmem:[%s84] sm:%s62]
    %s86 = sshllo.u32 0, 1
    %s87 = smul.addr 1, 4
    %s88 = scalar_lea.vmem %s1, %s87
    %89 = vst [vmem:[%s88] sm:%s86] %v85
    %s90 = scalar_lea.vmem [#allocation0], 40
    %v91 = vld [vmem:[%s90] sm:%s62]
    %s92 = sshllo.u32 0, 1
    %s93 = smul.addr 1, 5
    %s94 = scalar_lea.vmem %s1, %s93
    %95 = vst [vmem:[%s94] sm:%s92] %v91
    %s96 = scalar_lea.vmem [#allocation0], 48
    %v97 = vld [vmem:[%s96] sm:%s62]
    %s98 = sshllo.u32 0, 1
    %s99 = smul.addr 1, 6
    %s100 = scalar_lea.vmem %s1, %s99
    %101 = vst [vmem:[%s100] sm:%s98] %v97
    %s102 = scalar_lea.vmem [#allocation0], 56
    %v103 = vld [vmem:[%s102] sm:%s62]
    %s104 = sshllo.u32 0, 1
    %s105 = smul.addr 1, 7
    %s106 = scalar_lea.vmem %s1, %s105
    %107 = vst [vmem:[%s106] sm:%s104] %v103
    %s108 = scalar_lea.vmem [#allocation0], 64
    %v109 = vld [vmem:[%s108] sm:%s62]
    %s110 = sshllo.u32 0, 1
    %s111 = smul.addr 1, 8
    %s112 = scalar_lea.vmem %s1, %s111
    %113 = vst [vmem:[%s112] sm:%s110] %v109
    %s114 = scalar_lea.vmem [#allocation0], 72
    %v115 = vld [vmem:[%s114] sm:%s62]
    %s116 = sshllo.u32 0, 1
    %s117 = smul.addr 1, 9
    %s118 = scalar_lea.vmem %s1, %s117
    %119 = vst [vmem:[%s118] sm:%s116] %v115
    %s120 = scalar_lea.vmem [#allocation0], 80
    %v121 = vld [vmem:[%s120] sm:%s62]
    %s122 = sshllo.u32 0, 1
    %s123 = smul.addr 1, 10
    %s124 = scalar_lea.vmem %s1, %s123
    %125 = vst [vmem:[%s124] sm:%s122] %v121
    %s126 = scalar_lea.vmem [#allocation0], 88
    %v127 = vld [vmem:[%s126] sm:%s62]
    %s128 = sshllo.u32 0, 1
    %s129 = smul.addr 1, 11
    %s130 = scalar_lea.vmem %s1, %s129
    %131 = vst [vmem:[%s130] sm:%s128] %v127
    %s132 = scalar_lea.vmem [#allocation0], 96
    %v133 = vld [vmem:[%s132] sm:%s62]
    %s134 = sshllo.u32 0, 1
    %s135 = smul.addr 1, 12
    %s136 = scalar_lea.vmem %s1, %s135
    %137 = vst [vmem:[%s136] sm:%s134] %v133
    %s138 = scalar_lea.vmem [#allocation0], 104
    %v139 = vld [vmem:[%s138] sm:%s62]
    %s140 = sshllo.u32 0, 1
    %s141 = smul.addr 1, 13
    %s142 = scalar_lea.vmem %s1, %s141
    %143 = vst [vmem:[%s142] sm:%s140] %v139
    %s144 = scalar_lea.vmem [#allocation0], 112
    %v145 = vld [vmem:[%s144] sm:%s62]
    %s146 = sshllo.u32 0, 1
    %s147 = smul.addr 1, 14
    %s148 = scalar_lea.vmem %s1, %s147
    %149 = vst [vmem:[%s148] sm:%s146] %v145
    %s150 = scalar_lea.vmem [#allocation0], 120
    %v151 = vld [vmem:[%s150] sm:%s62]
    %s152 = sshllo.u32 0, 1
    %s153 = smul.addr 1, 15
    %s154 = scalar_lea.vmem %s1, %s153
    %155 = vst [vmem:[%s154] sm:%s152] %v151

// kernel: dalle_forward.1
$region0: #{dalle_forward.1}
  #allocation0 [shape = 'u32[]', space=smem, size = 0x4, offset = 0x4, fixed_abs, tag = 'smem constant byte address 0x4 - core index']
  #allocation1 [shape = 'u32[144,128]{1,0:T(1,128)}', space=vmem, size = 0x12000, scoped, tag = 'internal scratch']
  %s0 = inlined_call_operand.vmem [shape: f32[32,192], index: 0, kind: input, shape index: {}]
  %s1 = inlined_call_operand.vmem [shape: bf16[192,2048], index: 1, kind: input, shape index: {}]
  %s2 = inlined_call_operand.vmem [shape: f32[1,2048], index: 2, kind: input, shape index: {}]
  %s3 = inlined_call_operand.vmem [shape: bf16[2048,32], index: 3, kind: input, shape index: {}]
  %s4 = inlined_call_operand.vmem [shape: f32[1,32], index: 4, kind: input, shape index: {}]
  %s5 = inlined_call_operand.vmem [shape: bf16[32,128], index: 5, kind: input, shape index: {}]
  %s6 = inlined_call_operand.vmem [shape: f32[1,128], index: 6, kind: input, shape index: {}]
  %s7 = inlined_call_operand.vmem [shape: bf16[128,32], index: 7, kind: input, shape index: {}]
  %s8 = inlined_call_operand.vmem [shape: f32[1,32], index: 8, kind: input, shape index: {}]
  %s9 = inlined_call_operand.vmem [shape: bf16[32,192], index: 9, kind: input, shape index: {}]
  %s10 = inlined_call_operand.vmem [shape: f32[1,192], index: 10, kind: input, shape index: {}]
  %s11 = inlined_call_operand.vmem [shape: f32[32,192], index: 11, kind: output, shape index: {}]
  %s12 = sld [smem:[#allocation0]]
  $region54: #{dalle_forward.1} parent=0
    _
  %s14 = ssub.s32 1, %s12
  %s15 = scalar_select 0, %s14, %s12
  // Predicated region
  $region2: #{dalle_forward.1} parent=0 // pred_check
    _
  $region3: #{dalle_forward.1} parent=0 // pred_check_branch
    %17 = sbr.rel (0) target = $region5
  $region4: #{dalle_forward.1} parent=0 // pred_region
    _
  $region5: #{dalle_forward.1} parent=0 // pred_fallthru
    _
  // Predicated region
  $region6: #{dalle_forward.1} parent=0 // pred_check
    _
  $region7: #{dalle_forward.1} parent=0 // pred_check_branch
    %19 = sbr.rel (0) target = $region9
  $region8: #{dalle_forward.1} parent=0 // pred_region
    _
  $region9: #{dalle_forward.1} parent=0 // pred_fallthru
    _
  // Predicated region
  $region10: #{dalle_forward.1} parent=0 // pred_check
    _
  $region11: #{dalle_forward.1} parent=0 // pred_check_branch
    %21 = sbr.rel (0) target = $region13
  $region12: #{dalle_forward.1} parent=0 // pred_region
    _
  $region13: #{dalle_forward.1} parent=0 // pred_fallthru
    _
  // Predicated region
  $region14: #{dalle_forward.1} parent=0 // pred_check
    _
  $region15: #{dalle_forward.1} parent=0 // pred_check_branch
    %23 = sbr.rel (0) target = $region17
  $region16: #{dalle_forward.1} parent=0 // pred_region
    _
  $region17: #{dalle_forward.1} parent=0 // pred_fallthru
    _
  // Predicated region
  $region18: #{dalle_forward.1} parent=0 // pred_check
    _
  $region19: #{dalle_forward.1} parent=0 // pred_check_branch
    %25 = sbr.rel (0) target = $region21
  $region20: #{dalle_forward.1} parent=0 // pred_region
    _
  $region21: #{dalle_forward.1} parent=0 // pred_fallthru
    _
  // Predicated region
  $region22: #{dalle_forward.1} parent=0 // pred_check
    _
  $region23: #{dalle_forward.1} parent=0 // pred_check_branch
    %27 = sbr.rel (0) target = $region25
  $region24: #{dalle_forward.1} parent=0 // pred_region
    _
  $region25: #{dalle_forward.1} parent=0 // pred_fallthru
    _
  // Predicated region
  $region26: #{dalle_forward.1} parent=0 // pred_check
    _
  $region27: #{dalle_forward.1} parent=0 // pred_check_branch
    %29 = sbr.rel (0) target = $region29
  $region28: #{dalle_forward.1} parent=0 // pred_region
    _
  $region29: #{dalle_forward.1} parent=0 // pred_fallthru
    _
  // Predicated region
  $region30: #{dalle_forward.1} parent=0 // pred_check
    _
  $region31: #{dalle_forward.1} parent=0 // pred_check_branch
    %31 = sbr.rel (0) target = $region33
  $region32: #{dalle_forward.1} parent=0 // pred_region
    _
  $region33: #{dalle_forward.1} parent=0 // pred_fallthru
    _
  // Predicated region
  $region34: #{dalle_forward.1} parent=0 // pred_check
    _
  $region35: #{dalle_forward.1} parent=0 // pred_check_branch
    %33 = sbr.rel (0) target = $region37
  $region36: #{dalle_forward.1} parent=0 // pred_region
    _
  $region37: #{dalle_forward.1} parent=0 // pred_fallthru
    _
  // Predicated region
  $region38: #{dalle_forward.1} parent=0 // pred_check
    _
  $region39: #{dalle_forward.1} parent=0 // pred_check_branch
    %35 = sbr.rel (0) target = $region41
  $region40: #{dalle_forward.1} parent=0 // pred_region
    _
  $region41: #{dalle_forward.1} parent=0 // pred_fallthru
    _
  // Predicated region
  $region42: #{dalle_forward.1} parent=0 // pred_check
    _
  $region43: #{dalle_forward.1} parent=0 // pred_check_branch
    %37 = sbr.rel (0) target = $region45
  $region44: #{dalle_forward.1} parent=0 // pred_region
    _
  $region45: #{dalle_forward.1} parent=0 // pred_fallthru
    _
  %v39 = vld [vmem:[%s0] sm:$0xff]
  %v40 = vld [vmem:[%s0 + $0x8] sm:$0xff]
  %v41 = vld [vmem:[%s0 + $0x10] sm:$0xff]
  %v42 = vld [vmem:[%s0 + $0x18] sm:$0xff]
  %v43 = vld [vmem:[%s0 + $0x20] sm:$0xff]
  %v44 = vld [vmem:[%s0 + $0x28] sm:$0xff]
  %v45 = vld [vmem:[%s0 + $0x30] sm:$0xff]
  %v46 = vld [vmem:[%s0 + $0x38] sm:$0xff]
  %v47 = vpack.c.bf16 %v41, %v39
  %v48 = vpack.c.bf16 %v42, %v40
  %v49 = vpack.c.bf16 %v45, %v43
  %v50 = vpack.c.bf16 %v46, %v44
  %v51 = vld [vmem:[%s1] sm:$0xff]
  %v52 = vld [vmem:[%s1 + $0x8] sm:$0xff]
  %v53 = vld [vmem:[%s1 + $0x10] sm:$0xff]
  %v54 = vld [vmem:[%s1 + $0x18] sm:$0xff]
  %v55 = vld [vmem:[%s1 + $0x20] sm:$0xff]
  %v56 = vld [vmem:[%s1 + $0x28] sm:$0xff]
  %v57 = vld [vmem:[%s1 + $0x30] sm:$0xff]
  %v58 = vld [vmem:[%s1 + $0x38] sm:$0xff]
  %v59 = vld [vmem:[%s1 + $0x40] sm:$0xff]
  %v60 = vld [vmem:[%s1 + $0x48] sm:$0xff]
  %v61 = vld [vmem:[%s1 + $0x50] sm:$0xff]
  %v62 = vld [vmem:[%s1 + $0x58] sm:$0xff]
  %v63 = vld [vmem:[%s1 + $0x60] sm:$0xff]
  %v64 = vld [vmem:[%s1 + $0x68] sm:$0xff]
  %v65 = vld [vmem:[%s1 + $0x70] sm:$0xff]
  %v66 = vld [vmem:[%s1 + $0x78] sm:$0xff]
  %v67 = vld [vmem:[%s1 + $0x80] sm:$0xff]
  %v68 = vld [vmem:[%s1 + $0x88] sm:$0xff]
  %v69 = vld [vmem:[%s1 + $0x90] sm:$0xff]
  %v70 = vld [vmem:[%s1 + $0x98] sm:$0xff]
  %v71 = vld [vmem:[%s1 + $0xa0] sm:$0xff]
  %v72 = vld [vmem:[%s1 + $0xa8] sm:$0xff]
  %v73 = vld [vmem:[%s1 + $0xb0] sm:$0xff]
  %v74 = vld [vmem:[%s1 + $0xb8] sm:$0xff]
  %v75 = vld [vmem:[%s1 + $0xc0] sm:$0xff]
  %v76 = vld [vmem:[%s1 + $0xc8] sm:$0xff]
  %v77 = vld [vmem:[%s1 + $0xd0] sm:$0xff]
  %v78 = vld [vmem:[%s1 + $0xd8] sm:$0xff]
  %v79 = vld [vmem:[%s1 + $0xe0] sm:$0xff]
  %v80 = vld [vmem:[%s1 + $0xe8] sm:$0xff]
  %v81 = vld [vmem:[%s1 + $0xf0] sm:$0xff]
  %v82 = vld [vmem:[%s1 + $0xf8] sm:$0xff]
  %v83 = vld [vmem:[%s1 + $0x100] sm:$0xff]
  %v84 = vld [vmem:[%s1 + $0x108] sm:$0xff]
  %v85 = vld [vmem:[%s1 + $0x110] sm:$0xff]
  %v86 = vld [vmem:[%s1 + $0x118] sm:$0xff]
  %v87 = vld [vmem:[%s1 + $0x120] sm:$0xff]
  %v88 = vld [vmem:[%s1 + $0x128] sm:$0xff]
  %v89 = vld [vmem:[%s1 + $0x130] sm:$0xff]
  %v90 = vld [vmem:[%s1 + $0x138] sm:$0xff]
  %v91 = vld [vmem:[%s1 + $0x140] sm:$0xff]
  %v92 = vld [vmem:[%s1 + $0x148] sm:$0xff]
  %v93 = vld [vmem:[%s1 + $0x150] sm:$0xff]
  %v94 = vld [vmem:[%s1 + $0x158] sm:$0xff]
  %v95 = vld [vmem:[%s1 + $0x160] sm:$0xff]
  %v96 = vld [vmem:[%s1 + $0x168] sm:$0xff]
  %v97 = vld [vmem:[%s1 + $0x170] sm:$0xff]
  %v98 = vld [vmem:[%s1 + $0x178] sm:$0xff]
  %v99 = vld [vmem:[%s1 + $0x180] sm:$0xff]
  %v100 = vld [vmem:[%s1 + $0x188] sm:$0xff]
  %v101 = vld [vmem:[%s1 + $0x190] sm:$0xff]
  %v102 = vld [vmem:[%s1 + $0x198] sm:$0xff]
  %v103 = vld [vmem:[%s1 + $0x1a0] sm:$0xff]
  %v104 = vld [vmem:[%s1 + $0x1a8] sm:$0xff]
  %v105 = vld [vmem:[%s1 + $0x1b0] sm:$0xff]
  %v106 = vld [vmem:[%s1 + $0x1b8] sm:$0xff]
  %v107 = vld [vmem:[%s1 + $0x1c0] sm:$0xff]
  %v108 = vld [vmem:[%s1 + $0x1c8] sm:$0xff]
  %v109 = vld [vmem:[%s1 + $0x1d0] sm:$0xff]
  %v110 = vld [vmem:[%s1 + $0x1d8] sm:$0xff]
  %v111 = vld [vmem:[%s1 + $0x1e0] sm:$0xff]
  %v112 = vld [vmem:[%s1 + $0x1e8] sm:$0xff]
  %v113 = vld [vmem:[%s1 + $0x1f0] sm:$0xff]
  %v114 = vld [vmem:[%s1 + $0x1f8] sm:$0xff]
  %v115 = vld [vmem:[%s1 + $0x200] sm:$0xff]
  %v116 = vld [vmem:[%s1 + $0x208] sm:$0xff]
  %v117 = vld [vmem:[%s1 + $0x210] sm:$0xff]
  %v118 = vld [vmem:[%s1 + $0x218] sm:$0xff]
  %v119 = vld [vmem:[%s1 + $0x220] sm:$0xff]
  %v120 = vld [vmem:[%s1 + $0x228] sm:$0xff]
  %v121 = vld [vmem:[%s1 + $0x230] sm:$0xff]
  %v122 = vld [vmem:[%s1 + $0x238] sm:$0xff]
  %v123 = vld [vmem:[%s1 + $0x240] sm:$0xff]
  %v124 = vld [vmem:[%s1 + $0x248] sm:$0xff]
  %v125 = vld [vmem:[%s1 + $0x250] sm:$0xff]
  %v126 = vld [vmem:[%s1 + $0x258] sm:$0xff]
  %v127 = vld [vmem:[%s1 + $0x260] sm:$0xff]
  %v128 = vld [vmem:[%s1 + $0x268] sm:$0xff]
  %v129 = vld [vmem:[%s1 + $0x270] sm:$0xff]
  %v130 = vld [vmem:[%s1 + $0x278] sm:$0xff]
  %v131 = vld [vmem:[%s1 + $0x280] sm:$0xff]
  %v132 = vld [vmem:[%s1 + $0x288] sm:$0xff]
  %v133 = vld [vmem:[%s1 + $0x290] sm:$0xff]
  %v134 = vld [vmem:[%s1 + $0x298] sm:$0xff]
  %v135 = vld [vmem:[%s1 + $0x2a0] sm:$0xff]
  %v136 = vld [vmem:[%s1 + $0x2a8] sm:$0xff]
  %v137 = vld [vmem:[%s1 + $0x2b0] sm:$0xff]
  %v138 = vld [vmem:[%s1 + $0x2b8] sm:$0xff]
  %v139 = vld [vmem:[%s1 + $0x2c0] sm:$0xff]
  %v140 = vld [vmem:[%s1 + $0x2c8] sm:$0xff]
  %v141 = vld [vmem:[%s1 + $0x2d0] sm:$0xff]
  %v142 = vld [vmem:[%s1 + $0x2d8] sm:$0xff]
  %v143 = vld [vmem:[%s1 + $0x2e0] sm:$0xff]
  %v144 = vld [vmem:[%s1 + $0x2e8] sm:$0xff]
  %v145 = vld [vmem:[%s1 + $0x2f0] sm:$0xff]
  %v146 = vld [vmem:[%s1 + $0x2f8] sm:$0xff]
  %v147 = vld [vmem:[%s1 + $0x300] sm:$0xff]
  %v148 = vld [vmem:[%s1 + $0x308] sm:$0xff]
  %v149 = vld [vmem:[%s1 + $0x310] sm:$0xff]
  %v150 = vld [vmem:[%s1 + $0x318] sm:$0xff]
  %v151 = vld [vmem:[%s1 + $0x320] sm:$0xff]
  %v152 = vld [vmem:[%s1 + $0x328] sm:$0xff]
  %v153 = vld [vmem:[%s1 + $0x330] sm:$0xff]
  %v154 = vld [vmem:[%s1 + $0x338] sm:$0xff]
  %v155 = vld [vmem:[%s1 + $0x340] sm:$0xff]
  %v156 = vld [vmem:[%s1 + $0x348] sm:$0xff]
  %v157 = vld [vmem:[%s1 + $0x350] sm:$0xff]
  %v158 = vld [vmem:[%s1 + $0x358] sm:$0xff]
  %v159 = vld [vmem:[%s1 + $0x360] sm:$0xff]
  %v160 = vld [vmem:[%s1 + $0x368] sm:$0xff]
  %v161 = vld [vmem:[%s1 + $0x370] sm:$0xff]
  %v162 = vld [vmem:[%s1 + $0x378] sm:$0xff]
  %v163 = vld [vmem:[%s1 + $0x380] sm:$0xff]
  %v164 = vld [vmem:[%s1 + $0x388] sm:$0xff]
  %v165 = vld [vmem:[%s1 + $0x390] sm:$0xff]
  %v166 = vld [vmem:[%s1 + $0x398] sm:$0xff]
  %v167 = vld [vmem:[%s1 + $0x3a0] sm:$0xff]
  %v168 = vld [vmem:[%s1 + $0x3a8] sm:$0xff]
  %v169 = vld [vmem:[%s1 + $0x3b0] sm:$0xff]
  %v170 = vld [vmem:[%s1 + $0x3b8] sm:$0xff]
  %v171 = vld [vmem:[%s1 + $0x3c0] sm:$0xff]
  %v172 = vld [vmem:[%s1 + $0x3c8] sm:$0xff]
  %v173 = vld [vmem:[%s1 + $0x3d0] sm:$0xff]
  %v174 = vld [vmem:[%s1 + $0x3d8] sm:$0xff]
  %v175 = vld [vmem:[%s1 + $0x3e0] sm:$0xff]
  %v176 = vld [vmem:[%s1 + $0x3e8] sm:$0xff]
  %v177 = vld [vmem:[%s1 + $0x3f0] sm:$0xff]
  %v178 = vld [vmem:[%s1 + $0x3f8] sm:$0xff]
  %v179 = vld [vmem:[%s1 + $0x400] sm:$0xff]
  %v180 = vld [vmem:[%s1 + $0x408] sm:$0xff]
  %v181 = vld [vmem:[%s1 + $0x410] sm:$0xff]
  %v182 = vld [vmem:[%s1 + $0x418] sm:$0xff]
  %v183 = vld [vmem:[%s1 + $0x420] sm:$0xff]
  %v184 = vld [vmem:[%s1 + $0x428] sm:$0xff]
  %v185 = vld [vmem:[%s1 + $0x430] sm:$0xff]
  %v186 = vld [vmem:[%s1 + $0x438] sm:$0xff]
  %v187 = vld [vmem:[%s1 + $0x440] sm:$0xff]
  %v188 = vld [vmem:[%s1 + $0x448] sm:$0xff]
  %v189 = vld [vmem:[%s1 + $0x450] sm:$0xff]
  %v190 = vld [vmem:[%s1 + $0x458] sm:$0xff]
  %v191 = vld [vmem:[%s1 + $0x460] sm:$0xff]
  %v192 = vld [vmem:[%s1 + $0x468] sm:$0xff]
  %v193 = vld [vmem:[%s1 + $0x470] sm:$0xff]
  %v194 = vld [vmem:[%s1 + $0x478] sm:$0xff]
  %v195 = vld [vmem:[%s1 + $0x480] sm:$0xff]
  %v196 = vld [vmem:[%s1 + $0x488] sm:$0xff]
  %v197 = vld [vmem:[%s1 + $0x490] sm:$0xff]
  %v198 = vld [vmem:[%s1 + $0x498] sm:$0xff]
  %v199 = vld [vmem:[%s1 + $0x4a0] sm:$0xff]
  %v200 = vld [vmem:[%s1 + $0x4a8] sm:$0xff]
  %v201 = vld [vmem:[%s1 + $0x4b0] sm:$0xff]
  %v202 = vld [vmem:[%s1 + $0x4b8] sm:$0xff]
  %v203 = vld [vmem:[%s1 + $0x4c0] sm:$0xff]
  %v204 = vld [vmem:[%s1 + $0x4c8] sm:$0xff]
  %v205 = vld [vmem:[%s1 + $0x4d0] sm:$0xff]
  %v206 = vld [vmem:[%s1 + $0x4d8] sm:$0xff]
  %v207 = vld [vmem:[%s1 + $0x4e0] sm:$0xff]
  %v208 = vld [vmem:[%s1 + $0x4e8] sm:$0xff]
  %v209 = vld [vmem:[%s1 + $0x4f0] sm:$0xff]
  %v210 = vld [vmem:[%s1 + $0x4f8] sm:$0xff]
  %v211 = vld [vmem:[%s1 + $0x500] sm:$0xff]
  %v212 = vld [vmem:[%s1 + $0x508] sm:$0xff]
  %v213 = vld [vmem:[%s1 + $0x510] sm:$0xff]
  %v214 = vld [vmem:[%s1 + $0x518] sm:$0xff]
  %v215 = vld [vmem:[%s1 + $0x520] sm:$0xff]
  %v216 = vld [vmem:[%s1 + $0x528] sm:$0xff]
  %v217 = vld [vmem:[%s1 + $0x530] sm:$0xff]
  %v218 = vld [vmem:[%s1 + $0x538] sm:$0xff]
  %v219 = vld [vmem:[%s1 + $0x540] sm:$0xff]
  %v220 = vld [vmem:[%s1 + $0x548] sm:$0xff]
  %v221 = vld [vmem:[%s1 + $0x550] sm:$0xff]
  %v222 = vld [vmem:[%s1 + $0x558] sm:$0xff]
  %v223 = vld [vmem:[%s1 + $0x560] sm:$0xff]
  %v224 = vld [vmem:[%s1 + $0x568] sm:$0xff]
  %v225 = vld [vmem:[%s1 + $0x570] sm:$0xff]
  %v226 = vld [vmem:[%s1 + $0x578] sm:$0xff]
  %v227 = vld [vmem:[%s1 + $0x580] sm:$0xff]
  %v228 = vld [vmem:[%s1 + $0x588] sm:$0xff]
  %v229 = vld [vmem:[%s1 + $0x590] sm:$0xff]
  %v230 = vld [vmem:[%s1 + $0x598] sm:$0xff]
  %v231 = vld [vmem:[%s1 + $0x5a0] sm:$0xff]
  %v232 = vld [vmem:[%s1 + $0x5a8] sm:$0xff]
  %v233 = vld [vmem:[%s1 + $0x5b0] sm:$0xff]
  %v234 = vld [vmem:[%s1 + $0x5b8] sm:$0xff]
  %v235 = vld [vmem:[%s1 + $0x5c0] sm:$0xff]
  %v236 = vld [vmem:[%s1 + $0x5c8] sm:$0xff]
  %v237 = vld [vmem:[%s1 + $0x5d0] sm:$0xff]
  %v238 = vld [vmem:[%s1 + $0x5d8] sm:$0xff]
  %v239 = vld [vmem:[%s1 + $0x5e0] sm:$0xff]
  %v240 = vld [vmem:[%s1 + $0x5e8] sm:$0xff]
  %v241 = vld [vmem:[%s1 + $0x5f0] sm:$0xff]
  %v242 = vld [vmem:[%s1 + $0x5f8] sm:$0xff]
  %v243 = vld [vmem:[%s2] sm:$0xff]
  %v244 = vld [vmem:[%s2 + $0x8] sm:$0xff]
  %v247 = vlaneseq
  %v248 = vshrl.u32 %v247, 7
  %v249 = vsub.s32 0, %v248
  %v250 = vrot.slane %v243, %v249
  %v251 = vlaneseq
  %v252 = vshrl.u32 %v251, 7
  %v253 = vsub.s32 1, %v252
  %v254 = vrot.slane %v243, %v253
  %v255 = vlaneseq
  %v256 = vshrl.u32 %v255, 7
  %v257 = vsub.s32 2, %v256
  %v258 = vrot.slane %v243, %v257
  %v259 = vlaneseq
  %v260 = vshrl.u32 %v259, 7
  %v261 = vsub.s32 3, %v260
  %v262 = vrot.slane %v243, %v261
  %v263 = vlaneseq
  %v264 = vshrl.u32 %v263, 7
  %v265 = vsub.s32 4, %v264
  %v266 = vrot.slane %v243, %v265
  %v267 = vlaneseq
  %v268 = vshrl.u32 %v267, 7
  %v269 = vsub.s32 5, %v268
  %v270 = vrot.slane %v243, %v269
  %v271 = vlaneseq
  %v272 = vshrl.u32 %v271, 7
  %v273 = vsub.s32 6, %v272
  %v274 = vrot.slane %v243, %v273
  %v275 = vlaneseq
  %v276 = vshrl.u32 %v275, 7
  %v277 = vsub.s32 7, %v276
  %v278 = vrot.slane %v243, %v277
  %v279 = vlaneseq
  %v280 = vshrl.u32 %v279, 7
  %v281 = vsub.s32 0, %v280
  %v282 = vrot.slane %v244, %v281
  %v283 = vlaneseq
  %v284 = vshrl.u32 %v283, 7
  %v285 = vsub.s32 1, %v284
  %v286 = vrot.slane %v244, %v285
  %v287 = vlaneseq
  %v288 = vshrl.u32 %v287, 7
  %v289 = vsub.s32 2, %v288
  %v290 = vrot.slane %v244, %v289
  %v291 = vlaneseq
  %v292 = vshrl.u32 %v291, 7
  %v293 = vsub.s32 3, %v292
  %v294 = vrot.slane %v244, %v293
  %v295 = vlaneseq
  %v296 = vshrl.u32 %v295, 7
  %v297 = vsub.s32 4, %v296
  %v298 = vrot.slane %v244, %v297
  %v299 = vlaneseq
  %v300 = vshrl.u32 %v299, 7
  %v301 = vsub.s32 5, %v300
  %v302 = vrot.slane %v244, %v301
  %v303 = vlaneseq
  %v304 = vshrl.u32 %v303, 7
  %v305 = vsub.s32 6, %v304
  %v306 = vrot.slane %v244, %v305
  %v307 = vlaneseq
  %v308 = vshrl.u32 %v307, 7
  %v309 = vsub.s32 7, %v308
  %v310 = vrot.slane %v244, %v309
  %v519 = vunpack.c.l.b16 %v51
  %v520 = vunpack.c.h.b16 %v51
  %v521 = vunpack.c.l.b16 %v52
  %v522 = vunpack.c.h.b16 %v52
  %v523 = vunpack.c.l.b16 %v53
  %v524 = vunpack.c.h.b16 %v53
  %v525 = vunpack.c.l.b16 %v54
  %v526 = vunpack.c.h.b16 %v54
  %v527 = vunpack.c.l.b16 %v55
  %v528 = vunpack.c.h.b16 %v55
  %v529 = vunpack.c.l.b16 %v56
  %v530 = vunpack.c.h.b16 %v56
  %v531 = vunpack.c.l.b16 %v57
  %v532 = vunpack.c.h.b16 %v57
  %v533 = vunpack.c.l.b16 %v58
  %v534 = vunpack.c.h.b16 %v58
  %v535 = vunpack.c.l.b16 %v59
  %v536 = vunpack.c.h.b16 %v59
  %v537 = vunpack.c.l.b16 %v60
  %v538 = vunpack.c.h.b16 %v60
  %v539 = vunpack.c.l.b16 %v61
  %v540 = vunpack.c.h.b16 %v61
  %v541 = vunpack.c.l.b16 %v62
  %v542 = vunpack.c.h.b16 %v62
  %v543 = vunpack.c.l.b16 %v63
  %v544 = vunpack.c.h.b16 %v63
  %v545 = vunpack.c.l.b16 %v64
  %v546 = vunpack.c.h.b16 %v64
  %v547 = vunpack.c.l.b16 %v65
  %v548 = vunpack.c.h.b16 %v65
  %v549 = vunpack.c.l.b16 %v66
  %v550 = vunpack.c.h.b16 %v66
  %v551 = vunpack.c.l.b16 %v67
  %v552 = vunpack.c.h.b16 %v67
  %v553 = vunpack.c.l.b16 %v68
  %v554 = vunpack.c.h.b16 %v68
  %v555 = vunpack.c.l.b16 %v69
  %v556 = vunpack.c.h.b16 %v69
  %v557 = vunpack.c.l.b16 %v70
  %v558 = vunpack.c.h.b16 %v70
  %v559 = vunpack.c.l.b16 %v71
  %v560 = vunpack.c.h.b16 %v71
  %v561 = vunpack.c.l.b16 %v72
  %v562 = vunpack.c.h.b16 %v72
  %v563 = vunpack.c.l.b16 %v73
  %v564 = vunpack.c.h.b16 %v73
  %v565 = vunpack.c.l.b16 %v74
  %v566 = vunpack.c.h.b16 %v74
  %v567 = vunpack.c.l.b16 %v75
  %v568 = vunpack.c.h.b16 %v75
  %v569 = vunpack.c.l.b16 %v76
  %v570 = vunpack.c.h.b16 %v76
  %v571 = vunpack.c.l.b16 %v77
  %v572 = vunpack.c.h.b16 %v77
  %v573 = vunpack.c.l.b16 %v78
  %v574 = vunpack.c.h.b16 %v78
  %v575 = vunpack.c.l.b16 %v79
  %v576 = vunpack.c.h.b16 %v79
  %v577 = vunpack.c.l.b16 %v80
  %v578 = vunpack.c.h.b16 %v80
  %v579 = vunpack.c.l.b16 %v81
  %v580 = vunpack.c.h.b16 %v81
  %v581 = vunpack.c.l.b16 %v82
  %v582 = vunpack.c.h.b16 %v82
  %v583 = vunpack.c.l.b16 %v83
  %v584 = vunpack.c.h.b16 %v83
  %v585 = vunpack.c.l.b16 %v84
  %v586 = vunpack.c.h.b16 %v84
  %v587 = vunpack.c.l.b16 %v85
  %v588 = vunpack.c.h.b16 %v85
  %v589 = vunpack.c.l.b16 %v86
  %v590 = vunpack.c.h.b16 %v86
  %v591 = vunpack.c.l.b16 %v87
  %v592 = vunpack.c.h.b16 %v87
  %v593 = vunpack.c.l.b16 %v88
  %v594 = vunpack.c.h.b16 %v88
  %v595 = vunpack.c.l.b16 %v89
  %v596 = vunpack.c.h.b16 %v89
  %v597 = vunpack.c.l.b16 %v90
  %v598 = vunpack.c.h.b16 %v90
  %v599 = vunpack.c.l.b16 %v91
  %v600 = vunpack.c.h.b16 %v91
  %v601 = vunpack.c.l.b16 %v92
  %v602 = vunpack.c.h.b16 %v92
  %v603 = vunpack.c.l.b16 %v93
  %v604 = vunpack.c.h.b16 %v93
  %v605 = vunpack.c.l.b16 %v94
  %v606 = vunpack.c.h.b16 %v94
  %v607 = vunpack.c.l.b16 %v95
  %v608 = vunpack.c.h.b16 %v95
  %v609 = vunpack.c.l.b16 %v96
  %v610 = vunpack.c.h.b16 %v96
  %v611 = vunpack.c.l.b16 %v97
  %v612 = vunpack.c.h.b16 %v97
  %v613 = vunpack.c.l.b16 %v98
  %v614 = vunpack.c.h.b16 %v98
  %v615 = vunpack.c.l.b16 %v99
  %v616 = vunpack.c.h.b16 %v99
  %v617 = vunpack.c.l.b16 %v100
  %v618 = vunpack.c.h.b16 %v100
  %v619 = vunpack.c.l.b16 %v101
  %v620 = vunpack.c.h.b16 %v101
  %v621 = vunpack.c.l.b16 %v102
  %v622 = vunpack.c.h.b16 %v102
  %v623 = vunpack.c.l.b16 %v103
  %v624 = vunpack.c.h.b16 %v103
  %v625 = vunpack.c.l.b16 %v104
  %v626 = vunpack.c.h.b16 %v104
  %v627 = vunpack.c.l.b16 %v105
  %v628 = vunpack.c.h.b16 %v105
  %v629 = vunpack.c.l.b16 %v106
  %v630 = vunpack.c.h.b16 %v106
  %v631 = vunpack.c.l.b16 %v107
  %v632 = vunpack.c.h.b16 %v107
  %v633 = vunpack.c.l.b16 %v108
  %v634 = vunpack.c.h.b16 %v108
  %v635 = vunpack.c.l.b16 %v109
  %v636 = vunpack.c.h.b16 %v109
  %v637 = vunpack.c.l.b16 %v110
  %v638 = vunpack.c.h.b16 %v110
  %v639 = vunpack.c.l.b16 %v111
  %v640 = vunpack.c.h.b16 %v111
  %v641 = vunpack.c.l.b16 %v112
  %v642 = vunpack.c.h.b16 %v112
  %v643 = vunpack.c.l.b16 %v113
  %v644 = vunpack.c.h.b16 %v113
  %v645 = vunpack.c.l.b16 %v114
  %v646 = vunpack.c.h.b16 %v114
  %v647 = vunpack.c.l.b16 %v115
  %v648 = vunpack.c.h.b16 %v115
  %v649 = vunpack.c.l.b16 %v116
  %v650 = vunpack.c.h.b16 %v116
  %v651 = vunpack.c.l.b16 %v117
  %v652 = vunpack.c.h.b16 %v117
  %v653 = vunpack.c.l.b16 %v118
  %v654 = vunpack.c.h.b16 %v118
  %v655 = vunpack.c.l.b16 %v119
  %v656 = vunpack.c.h.b16 %v119
  %v657 = vunpack.c.l.b16 %v120
  %v658 = vunpack.c.h.b16 %v120
  %v659 = vunpack.c.l.b16 %v121
  %v660 = vunpack.c.h.b16 %v121
  %v661 = vunpack.c.l.b16 %v122
  %v662 = vunpack.c.h.b16 %v122
  %v663 = vunpack.c.l.b16 %v123
  %v664 = vunpack.c.h.b16 %v123
  %v665 = vunpack.c.l.b16 %v124
  %v666 = vunpack.c.h.b16 %v124
  %v667 = vunpack.c.l.b16 %v125
  %v668 = vunpack.c.h.b16 %v125
  %v669 = vunpack.c.l.b16 %v126
  %v670 = vunpack.c.h.b16 %v126
  %v671 = vunpack.c.l.b16 %v127
  %v672 = vunpack.c.h.b16 %v127
  %v673 = vunpack.c.l.b16 %v128
  %v674 = vunpack.c.h.b16 %v128
  %v675 = vunpack.c.l.b16 %v129
  %v676 = vunpack.c.h.b16 %v129
  %v677 = vunpack.c.l.b16 %v130
  %v678 = vunpack.c.h.b16 %v130
  %v679 = vunpack.c.l.b16 %v131
  %v680 = vunpack.c.h.b16 %v131
  %v681 = vunpack.c.l.b16 %v132
  %v682 = vunpack.c.h.b16 %v132
  %v683 = vunpack.c.l.b16 %v133
  %v684 = vunpack.c.h.b16 %v133
  %v685 = vunpack.c.l.b16 %v134
  %v686 = vunpack.c.h.b16 %v134
  %v687 = vunpack.c.l.b16 %v135
  %v688 = vunpack.c.h.b16 %v135
  %v689 = vunpack.c.l.b16 %v136
  %v690 = vunpack.c.h.b16 %v136
  %v691 = vunpack.c.l.b16 %v137
  %v692 = vunpack.c.h.b16 %v137
  %v693 = vunpack.c.l.b16 %v138
  %v694 = vunpack.c.h.b16 %v138
  %v695 = vunpack.c.l.b16 %v139
  %v696 = vunpack.c.h.b16 %v139
  %v697 = vunpack.c.l.b16 %v140
  %v698 = vunpack.c.h.b16 %v140
  %v699 = vunpack.c.l.b16 %v141
  %v700 = vunpack.c.h.b16 %v141
  %v701 = vunpack.c.l.b16 %v142
  %v702 = vunpack.c.h.b16 %v142
  %v703 = vunpack.c.l.b16 %v143
  %v704 = vunpack.c.h.b16 %v143
  %v705 = vunpack.c.l.b16 %v144
  %v706 = vunpack.c.h.b16 %v144
  %v707 = vunpack.c.l.b16 %v145
  %v708 = vunpack.c.h.b16 %v145
  %v709 = vunpack.c.l.b16 %v146
  %v710 = vunpack.c.h.b16 %v146
  %v711 = vunpack.c.l.b16 %v147
  %v712 = vunpack.c.h.b16 %v147
  %v713 = vunpack.c.l.b16 %v148
  %v714 = vunpack.c.h.b16 %v148
  %v715 = vunpack.c.l.b16 %v149
  %v716 = vunpack.c.h.b16 %v149
  %v717 = vunpack.c.l.b16 %v150
  %v718 = vunpack.c.h.b16 %v150
  %v719 = vunpack.c.l.b16 %v151
  %v720 = vunpack.c.h.b16 %v151
  %v721 = vunpack.c.l.b16 %v152
  %v722 = vunpack.c.h.b16 %v152
  %v723 = vunpack.c.l.b16 %v153
  %v724 = vunpack.c.h.b16 %v153
  %v725 = vunpack.c.l.b16 %v154
  %v726 = vunpack.c.h.b16 %v154
  %v727 = vunpack.c.l.b16 %v155
  %v728 = vunpack.c.h.b16 %v155
  %v729 = vunpack.c.l.b16 %v156
  %v730 = vunpack.c.h.b16 %v156
  %v731 = vunpack.c.l.b16 %v157
  %v732 = vunpack.c.h.b16 %v157
  %v733 = vunpack.c.l.b16 %v158
  %v734 = vunpack.c.h.b16 %v158
  %v735 = vunpack.c.l.b16 %v159
  %v736 = vunpack.c.h.b16 %v159
  %v737 = vunpack.c.l.b16 %v160
  %v738 = vunpack.c.h.b16 %v160
  %v739 = vunpack.c.l.b16 %v161
  %v740 = vunpack.c.h.b16 %v161
  %v741 = vunpack.c.l.b16 %v162
  %v742 = vunpack.c.h.b16 %v162
  %v743 = vunpack.c.l.b16 %v163
  %v744 = vunpack.c.h.b16 %v163
  %v745 = vunpack.c.l.b16 %v164
  %v746 = vunpack.c.h.b16 %v164
  %v747 = vunpack.c.l.b16 %v165
  %v748 = vunpack.c.h.b16 %v165
  %v749 = vunpack.c.l.b16 %v166
  %v750 = vunpack.c.h.b16 %v166
  %v751 = vunpack.c.l.b16 %v167
  %v752 = vunpack.c.h.b16 %v167
  %v753 = vunpack.c.l.b16 %v168
  %v754 = vunpack.c.h.b16 %v168
  %v755 = vunpack.c.l.b16 %v169
  %v756 = vunpack.c.h.b16 %v169
  %v757 = vunpack.c.l.b16 %v170
  %v758 = vunpack.c.h.b16 %v170
  %v759 = vunpack.c.l.b16 %v171
  %v760 = vunpack.c.h.b16 %v171
  %v761 = vunpack.c.l.b16 %v172
  %v762 = vunpack.c.h.b16 %v172
  %v763 = vunpack.c.l.b16 %v173
  %v764 = vunpack.c.h.b16 %v173
  %v765 = vunpack.c.l.b16 %v174
  %v766 = vunpack.c.h.b16 %v174
  %v767 = vunpack.c.l.b16 %v175
  %v768 = vunpack.c.h.b16 %v175
  %v769 = vunpack.c.l.b16 %v176
  %v770 = vunpack.c.h.b16 %v176
  %v771 = vunpack.c.l.b16 %v177
  %v772 = vunpack.c.h.b16 %v177
  %v773 = vunpack.c.l.b16 %v178
  %v774 = vunpack.c.h.b16 %v178
  %v775 = vunpack.c.l.b16 %v179
  %v776 = vunpack.c.h.b16 %v179
  %v777 = vunpack.c.l.b16 %v180
  %v778 = vunpack.c.h.b16 %v180
  %v779 = vunpack.c.l.b16 %v181
  %v780 = vunpack.c.h.b16 %v181
  %v781 = vunpack.c.l.b16 %v182
  %v782 = vunpack.c.h.b16 %v182
  %v783 = vunpack.c.l.b16 %v183
  %v784 = vunpack.c.h.b16 %v183
  %v785 = vunpack.c.l.b16 %v184
  %v786 = vunpack.c.h.b16 %v184
  %v787 = vunpack.c.l.b16 %v185
  %v788 = vunpack.c.h.b16 %v185
  %v789 = vunpack.c.l.b16 %v186
  %v790 = vunpack.c.h.b16 %v186
  %v791 = vunpack.c.l.b16 %v187
  %v792 = vunpack.c.h.b16 %v187
  %v793 = vunpack.c.l.b16 %v188
  %v794 = vunpack.c.h.b16 %v188
  %v795 = vunpack.c.l.b16 %v189
  %v796 = vunpack.c.h.b16 %v189
  %v797 = vunpack.c.l.b16 %v190
  %v798 = vunpack.c.h.b16 %v190
  %v799 = vunpack.c.l.b16 %v191
  %v800 = vunpack.c.h.b16 %v191
  %v801 = vunpack.c.l.b16 %v192
  %v802 = vunpack.c.h.b16 %v192
  %v803 = vunpack.c.l.b16 %v193
  %v804 = vunpack.c.h.b16 %v193
  %v805 = vunpack.c.l.b16 %v194
  %v806 = vunpack.c.h.b16 %v194
  %v807 = vunpack.c.l.b16 %v195
  %v808 = vunpack.c.h.b16 %v195
  %v809 = vunpack.c.l.b16 %v196
  %v810 = vunpack.c.h.b16 %v196
  %v811 = vunpack.c.l.b16 %v197
  %v812 = vunpack.c.h.b16 %v197
  %v813 = vunpack.c.l.b16 %v198
  %v814 = vunpack.c.h.b16 %v198
  %v815 = vunpack.c.l.b16 %v199
  %v816 = vunpack.c.h.b16 %v199
  %v817 = vunpack.c.l.b16 %v200
  %v818 = vunpack.c.h.b16 %v200
  %v819 = vunpack.c.l.b16 %v201
  %v820 = vunpack.c.h.b16 %v201
  %v821 = vunpack.c.l.b16 %v202
  %v822 = vunpack.c.h.b16 %v202
  %v823 = vunpack.c.l.b16 %v203
  %v824 = vunpack.c.h.b16 %v203
  %v825 = vunpack.c.l.b16 %v204
  %v826 = vunpack.c.h.b16 %v204
  %v827 = vunpack.c.l.b16 %v205
  %v828 = vunpack.c.h.b16 %v205
  %v829 = vunpack.c.l.b16 %v206
  %v830 = vunpack.c.h.b16 %v206
  %v831 = vunpack.c.l.b16 %v207
  %v832 = vunpack.c.h.b16 %v207
  %v833 = vunpack.c.l.b16 %v208
  %v834 = vunpack.c.h.b16 %v208
  %v835 = vunpack.c.l.b16 %v209
  %v836 = vunpack.c.h.b16 %v209
  %v837 = vunpack.c.l.b16 %v210
  %v838 = vunpack.c.h.b16 %v210
  %v839 = vunpack.c.l.b16 %v211
  %v840 = vunpack.c.h.b16 %v211
  %v841 = vunpack.c.l.b16 %v212
  %v842 = vunpack.c.h.b16 %v212
  %v843 = vunpack.c.l.b16 %v213
  %v844 = vunpack.c.h.b16 %v213
  %v845 = vunpack.c.l.b16 %v214
  %v846 = vunpack.c.h.b16 %v214
  %v847 = vunpack.c.l.b16 %v215
  %v848 = vunpack.c.h.b16 %v215
  %v849 = vunpack.c.l.b16 %v216
  %v850 = vunpack.c.h.b16 %v216
  %v851 = vunpack.c.l.b16 %v217
  %v852 = vunpack.c.h.b16 %v217
  %v853 = vunpack.c.l.b16 %v218
  %v854 = vunpack.c.h.b16 %v218
  %v855 = vunpack.c.l.b16 %v219
  %v856 = vunpack.c.h.b16 %v219
  %v857 = vunpack.c.l.b16 %v220
  %v858 = vunpack.c.h.b16 %v220
  %v859 = vunpack.c.l.b16 %v221
  %v860 = vunpack.c.h.b16 %v221
  %v861 = vunpack.c.l.b16 %v222
  %v862 = vunpack.c.h.b16 %v222
  %v863 = vunpack.c.l.b16 %v223
  %v864 = vunpack.c.h.b16 %v223
  %v865 = vunpack.c.l.b16 %v224
  %v866 = vunpack.c.h.b16 %v224
  %v867 = vunpack.c.l.b16 %v225
  %v868 = vunpack.c.h.b16 %v225
  %v869 = vunpack.c.l.b16 %v226
  %v870 = vunpack.c.h.b16 %v226
  %v871 = vunpack.c.l.b16 %v227
  %v872 = vunpack.c.h.b16 %v227
  %v873 = vunpack.c.l.b16 %v228
  %v874 = vunpack.c.h.b16 %v228
  %v875 = vunpack.c.l.b16 %v229
  %v876 = vunpack.c.h.b16 %v229
  %v877 = vunpack.c.l.b16 %v230
  %v878 = vunpack.c.h.b16 %v230
  %v879 = vunpack.c.l.b16 %v231
  %v880 = vunpack.c.h.b16 %v231
  %v881 = vunpack.c.l.b16 %v232
  %v882 = vunpack.c.h.b16 %v232
  %v883 = vunpack.c.l.b16 %v233
  %v884 = vunpack.c.h.b16 %v233
  %v885 = vunpack.c.l.b16 %v234
  %v886 = vunpack.c.h.b16 %v234
  %v887 = vunpack.c.l.b16 %v235
  %v888 = vunpack.c.h.b16 %v235
  %v889 = vunpack.c.l.b16 %v236
  %v890 = vunpack.c.h.b16 %v236
  %v891 = vunpack.c.l.b16 %v237
  %v892 = vunpack.c.h.b16 %v237
  %v893 = vunpack.c.l.b16 %v238
  %v894 = vunpack.c.h.b16 %v238
  %v895 = vunpack.c.l.b16 %v239
  %v896 = vunpack.c.h.b16 %v239
  %v897 = vunpack.c.l.b16 %v240
  %v898 = vunpack.c.h.b16 %v240
  %v899 = vunpack.c.l.b16 %v241
  %v900 = vunpack.c.h.b16 %v241
  %v901 = vunpack.c.l.b16 %v242
  %v902 = vunpack.c.h.b16 %v242
  %v903 = vpack.c.b16 %v535, %v519
  %v904 = vpack.c.b16 %v536, %v520
  %v905 = vpack.c.b16 %v537, %v521
  %v906 = vpack.c.b16 %v538, %v522
  %v907 = vpack.c.b16 %v539, %v523
  %v908 = vpack.c.b16 %v540, %v524
  %v909 = vpack.c.b16 %v541, %v525
  %v910 = vpack.c.b16 %v542, %v526
  %v911 = vpack.c.b16 %v543, %v527
  %v912 = vpack.c.b16 %v544, %v528
  %v913 = vpack.c.b16 %v545, %v529
  %v914 = vpack.c.b16 %v546, %v530
  %v915 = vpack.c.b16 %v547, %v531
  %v916 = vpack.c.b16 %v548, %v532
  %v917 = vpack.c.b16 %v549, %v533
  %v918 = vpack.c.b16 %v550, %v534
  %v919 = vpack.c.b16 %v567, %v551
  %v920 = vpack.c.b16 %v568, %v552
  %v921 = vpack.c.b16 %v569, %v553
  %v922 = vpack.c.b16 %v570, %v554
  %v923 = vpack.c.b16 %v571, %v555
  %v924 = vpack.c.b16 %v572, %v556
  %v925 = vpack.c.b16 %v573, %v557
  %v926 = vpack.c.b16 %v574, %v558
  %v927 = vpack.c.b16 %v575, %v559
  %v928 = vpack.c.b16 %v576, %v560
  %v929 = vpack.c.b16 %v577, %v561
  %v930 = vpack.c.b16 %v578, %v562
  %v931 = vpack.c.b16 %v579, %v563
  %v932 = vpack.c.b16 %v580, %v564
  %v933 = vpack.c.b16 %v581, %v565
  %v934 = vpack.c.b16 %v582, %v566
  %v935 = vpack.c.b16 %v599, %v583
  %v936 = vpack.c.b16 %v600, %v584
  %v937 = vpack.c.b16 %v601, %v585
  %v938 = vpack.c.b16 %v602, %v586
  %v939 = vpack.c.b16 %v603, %v587
  %v940 = vpack.c.b16 %v604, %v588
  %v941 = vpack.c.b16 %v605, %v589
  %v942 = vpack.c.b16 %v606, %v590
  %v943 = vpack.c.b16 %v607, %v591
  %v944 = vpack.c.b16 %v608, %v592
  %v945 = vpack.c.b16 %v609, %v593
  %v946 = vpack.c.b16 %v610, %v594
  %v947 = vpack.c.b16 %v611, %v595
  %v948 = vpack.c.b16 %v612, %v596
  %v949 = vpack.c.b16 %v613, %v597
  %v950 = vpack.c.b16 %v614, %v598
  %v951 = vpack.c.b16 %v631, %v615
  %v952 = vpack.c.b16 %v632, %v616
  %v953 = vpack.c.b16 %v633, %v617
  %v954 = vpack.c.b16 %v634, %v618
  %v955 = vpack.c.b16 %v635, %v619
  %v956 = vpack.c.b16 %v636, %v620
  %v957 = vpack.c.b16 %v637, %v621
  %v958 = vpack.c.b16 %v638, %v622
  %v959 = vpack.c.b16 %v639, %v623
  %v960 = vpack.c.b16 %v640, %v624
  %v961 = vpack.c.b16 %v641, %v625
  %v962 = vpack.c.b16 %v642, %v626
  %v963 = vpack.c.b16 %v643, %v627
  %v964 = vpack.c.b16 %v644, %v628
  %v965 = vpack.c.b16 %v645, %v629
  %v966 = vpack.c.b16 %v646, %v630
  %v967 = vpack.c.b16 %v663, %v647
  %v968 = vpack.c.b16 %v664, %v648
  %v969 = vpack.c.b16 %v665, %v649
  %v970 = vpack.c.b16 %v666, %v650
  %v971 = vpack.c.b16 %v667, %v651
  %v972 = vpack.c.b16 %v668, %v652
  %v973 = vpack.c.b16 %v669, %v653
  %v974 = vpack.c.b16 %v670, %v654
  %v975 = vpack.c.b16 %v671, %v655
  %v976 = vpack.c.b16 %v672, %v656
  %v977 = vpack.c.b16 %v673, %v657
  %v978 = vpack.c.b16 %v674, %v658
  %v979 = vpack.c.b16 %v675, %v659
  %v980 = vpack.c.b16 %v676, %v660
  %v981 = vpack.c.b16 %v677, %v661
  %v982 = vpack.c.b16 %v678, %v662
  %v983 = vpack.c.b16 %v695, %v679
  %v984 = vpack.c.b16 %v696, %v680
  %v985 = vpack.c.b16 %v697, %v681
  %v986 = vpack.c.b16 %v698, %v682
  %v987 = vpack.c.b16 %v699, %v683
  %v988 = vpack.c.b16 %v700, %v684
  %v989 = vpack.c.b16 %v701, %v685
  %v990 = vpack.c.b16 %v702, %v686
  %v991 = vpack.c.b16 %v703, %v687
  %v992 = vpack.c.b16 %v704, %v688
  %v993 = vpack.c.b16 %v705, %v689
  %v994 = vpack.c.b16 %v706, %v690
  %v995 = vpack.c.b16 %v707, %v691
  %v996 = vpack.c.b16 %v708, %v692
  %v997 = vpack.c.b16 %v709, %v693
  %v998 = vpack.c.b16 %v710, %v694
  %v999 = vpack.c.b16 %v727, %v711
  %v1000 = vpack.c.b16 %v728, %v712
  %v1001 = vpack.c.b16 %v729, %v713
  %v1002 = vpack.c.b16 %v730, %v714
  %v1003 = vpack.c.b16 %v731, %v715
  %v1004 = vpack.c.b16 %v732, %v716
  %v1005 = vpack.c.b16 %v733, %v717
  %v1006 = vpack.c.b16 %v734, %v718
  %v1007 = vpack.c.b16 %v735, %v719
  %v1008 = vpack.c.b16 %v736, %v720
  %v1009 = vpack.c.b16 %v737, %v721
  %v1010 = vpack.c.b16 %v738, %v722
  %v1011 = vpack.c.b16 %v739, %v723
  %v1012 = vpack.c.b16 %v740, %v724
  %v1013 = vpack.c.b16 %v741, %v725
  %v1014 = vpack.c.b16 %v742, %v726
  %v1015 = vpack.c.b16 %v759, %v743
  %v1016 = vpack.c.b16 %v760, %v744
  %v1017 = vpack.c.b16 %v761, %v745
  %v1018 = vpack.c.b16 %v762, %v746
  %v1019 = vpack.c.b16 %v763, %v747
  %v1020 = vpack.c.b16 %v764, %v748
  %v1021 = vpack.c.b16 %v765, %v749
  %v1022 = vpack.c.b16 %v766, %v750
  %v1023 = vpack.c.b16 %v767, %v751
  %v1024 = vpack.c.b16 %v768, %v752
  %v1025 = vpack.c.b16 %v769, %v753
  %v1026 = vpack.c.b16 %v770, %v754
  %v1027 = vpack.c.b16 %v771, %v755
  %v1028 = vpack.c.b16 %v772, %v756
  %v1029 = vpack.c.b16 %v773, %v757
  %v1030 = vpack.c.b16 %v774, %v758
  %v1031 = vpack.c.b16 %v791, %v775
  %v1032 = vpack.c.b16 %v792, %v776
  %v1033 = vpack.c.b16 %v793, %v777
  %v1034 = vpack.c.b16 %v794, %v778
  %v1035 = vpack.c.b16 %v795, %v779
  %v1036 = vpack.c.b16 %v796, %v780
  %v1037 = vpack.c.b16 %v797, %v781
  %v1038 = vpack.c.b16 %v798, %v782
  %v1039 = vpack.c.b16 %v799, %v783
  %v1040 = vpack.c.b16 %v800, %v784
  %v1041 = vpack.c.b16 %v801, %v785
  %v1042 = vpack.c.b16 %v802, %v786
  %v1043 = vpack.c.b16 %v803, %v787
  %v1044 = vpack.c.b16 %v804, %v788
  %v1045 = vpack.c.b16 %v805, %v789
  %v1046 = vpack.c.b16 %v806, %v790
  %v1047 = vpack.c.b16 %v823, %v807
  %v1048 = vpack.c.b16 %v824, %v808
  %v1049 = vpack.c.b16 %v825, %v809
  %v1050 = vpack.c.b16 %v826, %v810
  %v1051 = vpack.c.b16 %v827, %v811
  %v1052 = vpack.c.b16 %v828, %v812
  %v1053 = vpack.c.b16 %v829, %v813
  %v1054 = vpack.c.b16 %v830, %v814
  %v1055 = vpack.c.b16 %v831, %v815
  %v1056 = vpack.c.b16 %v832, %v816
  %v1057 = vpack.c.b16 %v833, %v817
  %v1058 = vpack.c.b16 %v834, %v818
  %v1059 = vpack.c.b16 %v835, %v819
  %v1060 = vpack.c.b16 %v836, %v820
  %v1061 = vpack.c.b16 %v837, %v821
  %v1062 = vpack.c.b16 %v838, %v822
  %v1063 = vpack.c.b16 %v855, %v839
  %v1064 = vpack.c.b16 %v856, %v840
  %v1065 = vpack.c.b16 %v857, %v841
  %v1066 = vpack.c.b16 %v858, %v842
  %v1067 = vpack.c.b16 %v859, %v843
  %v1068 = vpack.c.b16 %v860, %v844
  %v1069 = vpack.c.b16 %v861, %v845
  %v1070 = vpack.c.b16 %v862, %v846
  %v1071 = vpack.c.b16 %v863, %v847
  %v1072 = vpack.c.b16 %v864, %v848
  %v1073 = vpack.c.b16 %v865, %v849
  %v1074 = vpack.c.b16 %v866, %v850
  %v1075 = vpack.c.b16 %v867, %v851
  %v1076 = vpack.c.b16 %v868, %v852
  %v1077 = vpack.c.b16 %v869, %v853
  %v1078 = vpack.c.b16 %v870, %v854
  %v1079 = vpack.c.b16 %v887, %v871
  %v1080 = vpack.c.b16 %v888, %v872
  %v1081 = vpack.c.b16 %v889, %v873
  %v1082 = vpack.c.b16 %v890, %v874
  %v1083 = vpack.c.b16 %v891, %v875
  %v1084 = vpack.c.b16 %v892, %v876
  %v1085 = vpack.c.b16 %v893, %v877
  %v1086 = vpack.c.b16 %v894, %v878
  %v1087 = vpack.c.b16 %v895, %v879
  %v1088 = vpack.c.b16 %v896, %v880
  %v1089 = vpack.c.b16 %v897, %v881
  %v1090 = vpack.c.b16 %v898, %v882
  %v1091 = vpack.c.b16 %v899, %v883
  %v1092 = vpack.c.b16 %v900, %v884
  %v1093 = vpack.c.b16 %v901, %v885
  %v1094 = vpack.c.b16 %v902, %v886
  %vm1287 = vcmask 523264
  %v1289 = vsel %vm1287, %v48, 0
  %v1292 = vsel %vm1287, %v50, 0
  %1294 = vmatprep.subr.bf16.mxu0 %v904
  %1295 = vmatpush1.bf16.msra.mxu0 %v903
  %1296 = vmatprep.subr.bf16.mxu0 %v920
  %1297 = vmatpush1.bf16.msra.mxu0 %v919
  %1298 = vmatprep.subr.bf16.mxu0 %v936
  %1299 = vmatpush1.bf16.msra.mxu0 %v935
  %1300 = vmatprep.subr.bf16.mxu0 %v952
  %1301 = vmatpush1.bf16.msra.mxu0 %v951
  %1302 = vmatprep.subr.bf16.mxu0 %v968
  %1303 = vmatpush1.bf16.msra.mxu0 %v967
  %1304 = vmatprep.subr.bf16.mxu0 %v984
  %1305 = vmatpush1.bf16.msra.mxu0 %v983
  %1306 = vmatprep.subr.bf16.mxu0 %v1000
  %1307 = vmatpush1.bf16.msra.mxu0 %v999
  %1308 = vmatprep.subr.bf16.mxu0 %v1016
  %1309 = vmatpush1.bf16.msra.mxu0 %v1015
  %1310 = vmatprep.subr.bf16.mxu0 %v1032
  %1311 = vmatpush1.bf16.msra.mxu0 %v1031
  %1312 = vmatprep.subr.bf16.mxu0 %v1048
  %1313 = vmatpush1.bf16.msra.mxu0 %v1047
  %1314 = vmatprep.subr.bf16.mxu0 %v1064
  %1315 = vmatpush1.bf16.msra.mxu0 %v1063
  %1316 = vmatprep.subr.bf16.mxu0 %v1080
  %1317 = vmatpush1.bf16.msra.mxu0 %v1079
  %1318 = vmatprep.subr.bf16.mxu0 0
  %1319 = vmatpush1.bf16.msra.mxu0 0
  %1320 = vmatprep.subr.bf16.mxu0 0
  %1321 = vmatpush1.bf16.msra.mxu0 0
  %1322 = vmatprep.subr.bf16.mxu0 0
  %1323 = vmatpush1.bf16.msra.mxu0 0
  %1324 = vmatprep.subr.bf16.mxu0 0
  %1325 = vmatpush1.bf16.msra.mxu0 0
  %1326 = vmatprep.mubr.bf16.mxu0 %v1289
  %1327 = vmatmul.mubr.bf16.gmra.mrb[0].mxu0 %v47
  %v1328 = vpop.f32.mrb[0].mxu0
  %v1329 = vadd.f32 %v250, %v1328
  %v1330 = vpop.f32.mrb[0].mxu0
  %v1331 = vadd.f32 %v254, %v1330
  %v1332 = vpop.f32.mrb[0].mxu0
  %v1333 = vadd.f32 %v250, %v1332
  %v1334 = vpop.f32.mrb[0].mxu0
  %v1335 = vadd.f32 %v254, %v1334
  %1336 = vmatprep.mubr.bf16.mxu0 %v1292
  %1337 = vmatmul.mubr.bf16.gmra.mrb[0].mxu0 %v49
  %v1338 = vpop.f32.mrb[0].mxu0
  %v1339 = vadd.f32 %v250, %v1338
  %v1340 = vpop.f32.mrb[0].mxu0
  %v1341 = vadd.f32 %v254, %v1340
  %v1342 = vpop.f32.mrb[0].mxu0
  %v1343 = vadd.f32 %v250, %v1342
  %v1344 = vpop.f32.mrb[0].mxu0
  %v1345 = vadd.f32 %v254, %v1344
  %1346 = vdwg.mxu0
  %1347 = vmatprep.subr.bf16.mxu0 %v906
  %1348 = vmatpush1.bf16.msra.mxu0 %v905
  %1349 = vmatprep.subr.bf16.mxu0 %v922
  %1350 = vmatpush1.bf16.msra.mxu0 %v921
  %1351 = vmatprep.subr.bf16.mxu0 %v938
  %1352 = vmatpush1.bf16.msra.mxu0 %v937
  %1353 = vmatprep.subr.bf16.mxu0 %v954
  %1354 = vmatpush1.bf16.msra.mxu0 %v953
  %1355 = vmatprep.subr.bf16.mxu0 %v970
  %1356 = vmatpush1.bf16.msra.mxu0 %v969
  %1357 = vmatprep.subr.bf16.mxu0 %v986
  %1358 = vmatpush1.bf16.msra.mxu0 %v985
  %1359 = vmatprep.subr.bf16.mxu0 %v1002
  %1360 = vmatpush1.bf16.msra.mxu0 %v1001
  %1361 = vmatprep.subr.bf16.mxu0 %v1018
  %1362 = vmatpush1.bf16.msra.mxu0 %v1017
  %1363 = vmatprep.subr.bf16.mxu0 %v1034
  %1364 = vmatpush1.bf16.msra.mxu0 %v1033
  %1365 = vmatprep.subr.bf16.mxu0 %v1050
  %1366 = vmatpush1.bf16.msra.mxu0 %v1049
  %1367 = vmatprep.subr.bf16.mxu0 %v1066
  %1368 = vmatpush1.bf16.msra.mxu0 %v1065
  %1369 = vmatprep.subr.bf16.mxu0 %v1082
  %1370 = vmatpush1.bf16.msra.mxu0 %v1081
  %1371 = vmatprep.subr.bf16.mxu0 0
  %1372 = vmatpush1.bf16.msra.mxu0 0
  %1373 = vmatprep.subr.bf16.mxu0 0
  %1374 = vmatpush1.bf16.msra.mxu0 0
  %1375 = vmatprep.subr.bf16.mxu0 0
  %1376 = vmatpush1.bf16.msra.mxu0 0
  %1377 = vmatprep.subr.bf16.mxu0 0
  %1378 = vmatpush1.bf16.msra.mxu0 0
  %1379 = vmatprep.mubr.bf16.mxu0 %v1289
  %1380 = vmatmul.mubr.bf16.gmra.mrb[0].mxu0 %v47
  %v1381 = vpop.f32.mrb[0].mxu0
  %v1382 = vadd.f32 %v258, %v1381
  %v1383 = vpop.f32.mrb[0].mxu0
  %v1384 = vadd.f32 %v262, %v1383
  %v1385 = vpop.f32.mrb[0].mxu0
  %v1386 = vadd.f32 %v258, %v1385
  %v1387 = vpop.f32.mrb[0].mxu0
  %v1388 = vadd.f32 %v262, %v1387
  %1389 = vmatprep.mubr.bf16.mxu0 %v1292
  %1390 = vmatmul.mubr.bf16.gmra.mrb[0].mxu0 %v49
  %v1391 = vpop.f32.mrb[0].mxu0
  %v1392 = vadd.f32 %v258, %v1391
  %v1393 = vpop.f32.mrb[0].mxu0
  %v1394 = vadd.f32 %v262, %v1393
  %v1395 = vpop.f32.mrb[0].mxu0
  %v1396 = vadd.f32 %v258, %v1395
  %v1397 = vpop.f32.mrb[0].mxu0
  %v1398 = vadd.f32 %v262, %v1397
  %1399 = vdwg.mxu0
  %1400 = vmatprep.subr.bf16.mxu0 %v908
  %1401 = vmatpush1.bf16.msra.mxu0 %v907
  %1402 = vmatprep.subr.bf16.mxu0 %v924
  %1403 = vmatpush1.bf16.msra.mxu0 %v923
  %1404 = vmatprep.subr.bf16.mxu0 %v940
  %1405 = vmatpush1.bf16.msra.mxu0 %v939
  %1406 = vmatprep.subr.bf16.mxu0 %v956
  %1407 = vmatpush1.bf16.msra.mxu0 %v955
  %1408 = vmatprep.subr.bf16.mxu0 %v972
  %1409 = vmatpush1.bf16.msra.mxu0 %v971
  %1410 = vmatprep.subr.bf16.mxu0 %v988
  %1411 = vmatpush1.bf16.msra.mxu0 %v987
  %1412 = vmatprep.subr.bf16.mxu0 %v1004
  %1413 = vmatpush1.bf16.msra.mxu0 %v1003
  %1414 = vmatprep.subr.bf16.mxu0 %v1020
  %1415 = vmatpush1.bf16.msra.mxu0 %v1019
  %1416 = vmatprep.subr.bf16.mxu0 %v1036
  %1417 = vmatpush1.bf16.msra.mxu0 %v1035
  %1418 = vmatprep.subr.bf16.mxu0 %v1052
  %1419 = vmatpush1.bf16.msra.mxu0 %v1051
  %1420 = vmatprep.subr.bf16.mxu0 %v1068
  %1421 = vmatpush1.bf16.msra.mxu0 %v1067
  %1422 = vmatprep.subr.bf16.mxu0 %v1084
  %1423 = vmatpush1.bf16.msra.mxu0 %v1083
  %1424 = vmatprep.subr.bf16.mxu0 0
  %1425 = vmatpush1.bf16.msra.mxu0 0
  %1426 = vmatprep.subr.bf16.mxu0 0
  %1427 = vmatpush1.bf16.msra.mxu0 0
  %1428 = vmatprep.subr.bf16.mxu0 0
  %1429 = vmatpush1.bf16.msra.mxu0 0
  %1430 = vmatprep.subr.bf16.mxu0 0
  %1431 = vmatpush1.bf16.msra.mxu0 0
  %1432 = vmatprep.mubr.bf16.mxu0 %v1289
  %1433 = vmatmul.mubr.bf16.gmra.mrb[0].mxu0 %v47
  %v1434 = vpop.f32.mrb[0].mxu0
  %v1435 = vadd.f32 %v266, %v1434
  %v1436 = vpop.f32.mrb[0].mxu0
  %v1437 = vadd.f32 %v270, %v1436
  %v1438 = vpop.f32.mrb[0].mxu0
  %v1439 = vadd.f32 %v266, %v1438
  %v1440 = vpop.f32.mrb[0].mxu0
  %v1441 = vadd.f32 %v270, %v1440
  %1442 = vmatprep.mubr.bf16.mxu0 %v1292
  %1443 = vmatmul.mubr.bf16.gmra.mrb[0].mxu0 %v49
  %v1444 = vpop.f32.mrb[0].mxu0
  %v1445 = vadd.f32 %v266, %v1444
  %v1446 = vpop.f32.mrb[0].mxu0
  %v1447 = vadd.f32 %v270, %v1446
  %v1448 = vpop.f32.mrb[0].mxu0
  %v1449 = vadd.f32 %v266, %v1448
  %v1450 = vpop.f32.mrb[0].mxu0
  %v1451 = vadd.f32 %v270, %v1450
  %1452 = vdwg.mxu0
  %1453 = vmatprep.subr.bf16.mxu0 %v910
  %1454 = vmatpush1.bf16.msra.mxu0 %v909
  %1455 = vmatprep.subr.bf16.mxu0 %v926
  %1456 = vmatpush1.bf16.msra.mxu0 %v925
  %1457 = vmatprep.subr.bf16.mxu0 %v942
  %1458 = vmatpush1.bf16.msra.mxu0 %v941
  %1459 = vmatprep.subr.bf16.mxu0 %v958
  %1460 = vmatpush1.bf16.msra.mxu0 %v957
  %1461 = vmatprep.subr.bf16.mxu0 %v974
  %1462 = vmatpush1.bf16.msra.mxu0 %v973
  %1463 = vmatprep.subr.bf16.mxu0 %v990
  %1464 = vmatpush1.bf16.msra.mxu0 %v989
  %1465 = vmatprep.subr.bf16.mxu0 %v1006
  %1466 = vmatpush1.bf16.msra.mxu0 %v1005
  %1467 = vmatprep.subr.bf16.mxu0 %v1022
  %1468 = vmatpush1.bf16.msra.mxu0 %v1021
  %1469 = vmatprep.subr.bf16.mxu0 %v1038
  %1470 = vmatpush1.bf16.msra.mxu0 %v1037
  %1471 = vmatprep.subr.bf16.mxu0 %v1054
  %1472 = vmatpush1.bf16.msra.mxu0 %v1053
  %1473 = vmatprep.subr.bf16.mxu0 %v1070
  %1474 = vmatpush1.bf16.msra.mxu0 %v1069
  %1475 = vmatprep.subr.bf16.mxu0 %v1086
  %1476 = vmatpush1.bf16.msra.mxu0 %v1085
  %1477 = vmatprep.subr.bf16.mxu0 0
  %1478 = vmatpush1.bf16.msra.mxu0 0
  %1479 = vmatprep.subr.bf16.mxu0 0
  %1480 = vmatpush1.bf16.msra.mxu0 0
  %1481 = vmatprep.subr.bf16.mxu0 0
  %1482 = vmatpush1.bf16.msra.mxu0 0
  %1483 = vmatprep.subr.bf16.mxu0 0
  %1484 = vmatpush1.bf16.msra.mxu0 0
  %1485 = vmatprep.mubr.bf16.mxu0 %v1289
  %1486 = vmatmul.mubr.bf16.gmra.mrb[0].mxu0 %v47
  %v1487 = vpop.f32.mrb[0].mxu0
  %v1488 = vadd.f32 %v274, %v1487
  %v1489 = vpop.f32.mrb[0].mxu0
  %v1490 = vadd.f32 %v278, %v1489
  %v1491 = vpop.f32.mrb[0].mxu0
  %v1492 = vadd.f32 %v274, %v1491
  %v1493 = vpop.f32.mrb[0].mxu0
  %v1494 = vadd.f32 %v278, %v1493
  %1495 = vmatprep.mubr.bf16.mxu0 %v1292
  %1496 = vmatmul.mubr.bf16.gmra.mrb[0].mxu0 %v49
  %v1497 = vpop.f32.mrb[0].mxu0
  %v1498 = vadd.f32 %v274, %v1497
  %v1499 = vpop.f32.mrb[0].mxu0
  %v1500 = vadd.f32 %v278, %v1499
  %v1501 = vpop.f32.mrb[0].mxu0
  %v1502 = vadd.f32 %v274, %v1501
  %v1503 = vpop.f32.mrb[0].mxu0
  %v1504 = vadd.f32 %v278, %v1503
  %1505 = vdwg.mxu0
  %1506 = vmatprep.subr.bf16.mxu0 %v912
  %1507 = vmatpush1.bf16.msra.mxu0 %v911
  %1508 = vmatprep.subr.bf16.mxu0 %v928
  %1509 = vmatpush1.bf16.msra.mxu0 %v927
  %1510 = vmatprep.subr.bf16.mxu0 %v944
  %1511 = vmatpush1.bf16.msra.mxu0 %v943
  %1512 = vmatprep.subr.bf16.mxu0 %v960
  %1513 = vmatpush1.bf16.msra.mxu0 %v959
  %1514 = vmatprep.subr.bf16.mxu0 %v976
  %1515 = vmatpush1.bf16.msra.mxu0 %v975
  %1516 = vmatprep.subr.bf16.mxu0 %v992
  %1517 = vmatpush1.bf16.msra.mxu0 %v991
  %1518 = vmatprep.subr.bf16.mxu0 %v1008
  %1519 = vmatpush1.bf16.msra.mxu0 %v1007
  %1520 = vmatprep.subr.bf16.mxu0 %v1024
  %1521 = vmatpush1.bf16.msra.mxu0 %v1023
  %1522 = vmatprep.subr.bf16.mxu0 %v1040
  %1523 = vmatpush1.bf16.msra.mxu0 %v1039
  %1524 = vmatprep.subr.bf16.mxu0 %v1056
  %1525 = vmatpush1.bf16.msra.mxu0 %v1055
  %1526 = vmatprep.subr.bf16.mxu0 %v1072
  %1527 = vmatpush1.bf16.msra.mxu0 %v1071
  %1528 = vmatprep.subr.bf16.mxu0 %v1088
  %1529 = vmatpush1.bf16.msra.mxu0 %v1087
  %1530 = vmatprep.subr.bf16.mxu0 0
  %1531 = vmatpush1.bf16.msra.mxu0 0
  %1532 = vmatprep.subr.bf16.mxu0 0
  %1533 = vmatpush1.bf16.msra.mxu0 0
  %1534 = vmatprep.subr.bf16.mxu0 0
  %1535 = vmatpush1.bf16.msra.mxu0 0
  %1536 = vmatprep.subr.bf16.mxu0 0
  %1537 = vmatpush1.bf16.msra.mxu0 0
  %1538 = vmatprep.mubr.bf16.mxu0 %v1289
  %1539 = vmatmul.mubr.bf16.gmra.mrb[0].mxu0 %v47
  %v1540 = vpop.f32.mrb[0].mxu0
  %v1541 = vadd.f32 %v282, %v1540
  %v1542 = vpop.f32.mrb[0].mxu0
  %v1543 = vadd.f32 %v286, %v1542
  %v1544 = vpop.f32.mrb[0].mxu0
  %v1545 = vadd.f32 %v282, %v1544
  %v1546 = vpop.f32.mrb[0].mxu0
  %v1547 = vadd.f32 %v286, %v1546
  %1548 = vmatprep.mubr.bf16.mxu0 %v1292
  %1549 = vmatmul.mubr.bf16.gmra.mrb[0].mxu0 %v49
  %v1550 = vpop.f32.mrb[0].mxu0
  %v1551 = vadd.f32 %v282, %v1550
  %v1552 = vpop.f32.mrb[0].mxu0
  %v1553 = vadd.f32 %v286, %v1552
  %v1554 = vpop.f32.mrb[0].mxu0
  %v1555 = vadd.f32 %v282, %v1554
  %v1556 = vpop.f32.mrb[0].mxu0
  %v1557 = vadd.f32 %v286, %v1556
  %1558 = vdwg.mxu0
  %1559 = vmatprep.subr.bf16.mxu0 %v914
  %1560 = vmatpush1.bf16.msra.mxu0 %v913
  %1561 = vmatprep.subr.bf16.mxu0 %v930
  %1562 = vmatpush1.bf16.msra.mxu0 %v929
  %1563 = vmatprep.subr.bf16.mxu0 %v946
  %1564 = vmatpush1.bf16.msra.mxu0 %v945
  %1565 = vmatprep.subr.bf16.mxu0 %v962
  %1566 = vmatpush1.bf16.msra.mxu0 %v961
  %1567 = vmatprep.subr.bf16.mxu0 %v978
  %1568 = vmatpush1.bf16.msra.mxu0 %v977
  %1569 = vmatprep.subr.bf16.mxu0 %v994
  %1570 = vmatpush1.bf16.msra.mxu0 %v993
  %1571 = vmatprep.subr.bf16.mxu0 %v1010
  %1572 = vmatpush1.bf16.msra.mxu0 %v1009
  %1573 = vmatprep.subr.bf16.mxu0 %v1026
  %1574 = vmatpush1.bf16.msra.mxu0 %v1025
  %1575 = vmatprep.subr.bf16.mxu0 %v1042
  %1576 = vmatpush1.bf16.msra.mxu0 %v1041
  %1577 = vmatprep.subr.bf16.mxu0 %v1058
  %1578 = vmatpush1.bf16.msra.mxu0 %v1057
  %1579 = vmatprep.subr.bf16.mxu0 %v1074
  %1580 = vmatpush1.bf16.msra.mxu0 %v1073
  %1581 = vmatprep.subr.bf16.mxu0 %v1090
  %1582 = vmatpush1.bf16.msra.mxu0 %v1089
  %1583 = vmatprep.subr.bf16.mxu0 0
  %1584 = vmatpush1.bf16.msra.mxu0 0
  %1585 = vmatprep.subr.bf16.mxu0 0
  %1586 = vmatpush1.bf16.msra.mxu0 0
  %1587 = vmatprep.subr.bf16.mxu0 0
  %1588 = vmatpush1.bf16.msra.mxu0 0
  %1589 = vmatprep.subr.bf16.mxu0 0
  %1590 = vmatpush1.bf16.msra.mxu0 0
  %1591 = vmatprep.mubr.bf16.mxu0 %v1289
  %1592 = vmatmul.mubr.bf16.gmra.mrb[0].mxu0 %v47
  %v1593 = vpop.f32.mrb[0].mxu0
  %v1594 = vadd.f32 %v290, %v1593
  %v1595 = vpop.f32.mrb[0].mxu0
  %v1596 = vadd.f32 %v294, %v1595
  %v1597 = vpop.f32.mrb[0].mxu0
  %v1598 = vadd.f32 %v290, %v1597
  %v1599 = vpop.f32.mrb[0].mxu0
  %v1600 = vadd.f32 %v294, %v1599
  %1601 = vmatprep.mubr.bf16.mxu0 %v1292
  %1602 = vmatmul.mubr.bf16.gmra.mrb[0].mxu0 %v49
  %v1603 = vpop.f32.mrb[0].mxu0
  %v1604 = vadd.f32 %v290, %v1603
  %v1605 = vpop.f32.mrb[0].mxu0
  %v1606 = vadd.f32 %v294, %v1605
  %v1607 = vpop.f32.mrb[0].mxu0
  %v1608 = vadd.f32 %v290, %v1607
  %v1609 = vpop.f32.mrb[0].mxu0
  %v1610 = vadd.f32 %v294, %v1609
  %1611 = vdwg.mxu0
  %1612 = vmatprep.subr.bf16.mxu0 %v916
  %1613 = vmatpush1.bf16.msra.mxu0 %v915
  %1614 = vmatprep.subr.bf16.mxu0 %v932
  %1615 = vmatpush1.bf16.msra.mxu0 %v931
  %1616 = vmatprep.subr.bf16.mxu0 %v948
  %1617 = vmatpush1.bf16.msra.mxu0 %v947
  %1618 = vmatprep.subr.bf16.mxu0 %v964
  %1619 = vmatpush1.bf16.msra.mxu0 %v963
  %1620 = vmatprep.subr.bf16.mxu0 %v980
  %1621 = vmatpush1.bf16.msra.mxu0 %v979
  %1622 = vmatprep.subr.bf16.mxu0 %v996
  %1623 = vmatpush1.bf16.msra.mxu0 %v995
  %1624 = vmatprep.subr.bf16.mxu0 %v1012
  %1625 = vmatpush1.bf16.msra.mxu0 %v1011
  %1626 = vmatprep.subr.bf16.mxu0 %v1028
  %1627 = vmatpush1.bf16.msra.mxu0 %v1027
  %1628 = vmatprep.subr.bf16.mxu0 %v1044
  %1629 = vmatpush1.bf16.msra.mxu0 %v1043
  %1630 = vmatprep.subr.bf16.mxu0 %v1060
  %1631 = vmatpush1.bf16.msra.mxu0 %v1059
  %1632 = vmatprep.subr.bf16.mxu0 %v1076
  %1633 = vmatpush1.bf16.msra.mxu0 %v1075
  %1634 = vmatprep.subr.bf16.mxu0 %v1092
  %1635 = vmatpush1.bf16.msra.mxu0 %v1091
  %1636 = vmatprep.subr.bf16.mxu0 0
  %1637 = vmatpush1.bf16.msra.mxu0 0
  %1638 = vmatprep.subr.bf16.mxu0 0
  %1639 = vmatpush1.bf16.msra.mxu0 0
  %1640 = vmatprep.subr.bf16.mxu0 0
  %1641 = vmatpush1.bf16.msra.mxu0 0
  %1642 = vmatprep.subr.bf16.mxu0 0
  %1643 = vmatpush1.bf16.msra.mxu0 0
  %1644 = vmatprep.mubr.bf16.mxu0 %v1289
  %1645 = vmatmul.mubr.bf16.gmra.mrb[0].mxu0 %v47
  %v1646 = vpop.f32.mrb[0].mxu0
  %v1647 = vadd.f32 %v298, %v1646
  %v1648 = vpop.f32.mrb[0].mxu0
  %v1649 = vadd.f32 %v302, %v1648
  %v1650 = vpop.f32.mrb[0].mxu0
  %v1651 = vadd.f32 %v298, %v1650
  %v1652 = vpop.f32.mrb[0].mxu0
  %v1653 = vadd.f32 %v302, %v1652
  %1654 = vmatprep.mubr.bf16.mxu0 %v1292
  %1655 = vmatmul.mubr.bf16.gmra.mrb[0].mxu0 %v49
  %v1656 = vpop.f32.mrb[0].mxu0
  %v1657 = vadd.f32 %v298, %v1656
  %v1658 = vpop.f32.mrb[0].mxu0
  %v1659 = vadd.f32 %v302, %v1658
  %v1660 = vpop.f32.mrb[0].mxu0
  %v1661 = vadd.f32 %v298, %v1660
  %v1662 = vpop.f32.mrb[0].mxu0
  %v1663 = vadd.f32 %v302, %v1662
  %1664 = vdwg.mxu0
  %1665 = vmatprep.subr.bf16.mxu0 %v918
  %1666 = vmatpush1.bf16.msra.mxu0 %v917
  %1667 = vmatprep.subr.bf16.mxu0 %v934
  %1668 = vmatpush1.bf16.msra.mxu0 %v933
  %1669 = vmatprep.subr.bf16.mxu0 %v950
  %1670 = vmatpush1.bf16.msra.mxu0 %v949
  %1671 = vmatprep.subr.bf16.mxu0 %v966
  %1672 = vmatpush1.bf16.msra.mxu0 %v965
  %1673 = vmatprep.subr.bf16.mxu0 %v982
  %1674 = vmatpush1.bf16.msra.mxu0 %v981
  %1675 = vmatprep.subr.bf16.mxu0 %v998
  %1676 = vmatpush1.bf16.msra.mxu0 %v997
  %1677 = vmatprep.subr.bf16.mxu0 %v1014
  %1678 = vmatpush1.bf16.msra.mxu0 %v1013
  %1679 = vmatprep.subr.bf16.mxu0 %v1030
  %1680 = vmatpush1.bf16.msra.mxu0 %v1029
  %1681 = vmatprep.subr.bf16.mxu0 %v1046
  %1682 = vmatpush1.bf16.msra.mxu0 %v1045
  %1683 = vmatprep.subr.bf16.mxu0 %v1062
  %1684 = vmatpush1.bf16.msra.mxu0 %v1061
  %1685 = vmatprep.subr.bf16.mxu0 %v1078
  %1686 = vmatpush1.bf16.msra.mxu0 %v1077
  %1687 = vmatprep.subr.bf16.mxu0 %v1094
  %1688 = vmatpush1.bf16.msra.mxu0 %v1093
  %1689 = vmatprep.subr.bf16.mxu0 0
  %1690 = vmatpush1.bf16.msra.mxu0 0
  %1691 = vmatprep.subr.bf16.mxu0 0
  %1692 = vmatpush1.bf16.msra.mxu0 0
  %1693 = vmatprep.subr.bf16.mxu0 0
  %1694 = vmatpush1.bf16.msra.mxu0 0
  %1695 = vmatprep.subr.bf16.mxu0 0
  %1696 = vmatpush1.bf16.msra.mxu0 0
  %1697 = vmatprep.mubr.bf16.mxu0 %v1289
  %1698 = vmatmul.mubr.bf16.gmra.mrb[0].mxu0 %v47
  %v1699 = vpop.f32.mrb[0].mxu0
  %v1700 = vadd.f32 %v306, %v1699
  %v1701 = vpop.f32.mrb[0].mxu0
  %v1702 = vadd.f32 %v310, %v1701
  %v1703 = vpop.f32.mrb[0].mxu0
  %v1704 = vadd.f32 %v306, %v1703
  %v1705 = vpop.f32.mrb[0].mxu0
  %v1706 = vadd.f32 %v310, %v1705
  %1707 = vmatprep.mubr.bf16.mxu0 %v1292
  %1708 = vmatmul.mubr.bf16.gmra.mrb[0].mxu0 %v49
  %v1709 = vpop.f32.mrb[0].mxu0
  %v1710 = vadd.f32 %v306, %v1709
  %v1711 = vpop.f32.mrb[0].mxu0
  %v1712 = vadd.f32 %v310, %v1711
  %v1713 = vpop.f32.mrb[0].mxu0
  %v1714 = vadd.f32 %v306, %v1713
  %v1715 = vpop.f32.mrb[0].mxu0
  %v1716 = vadd.f32 %v310, %v1715
  %1717 = vdwg.mxu0
  %v1718 = vmax.f32 %v1329, 0.0
  %v1719 = vmax.f32 %v1331, 0.0
  %v1720 = vmax.f32 %v1382, 0.0
  %v1721 = vmax.f32 %v1384, 0.0
  %v1722 = vmax.f32 %v1435, 0.0
  %v1723 = vmax.f32 %v1437, 0.0
  %v1724 = vmax.f32 %v1488, 0.0
  %v1725 = vmax.f32 %v1490, 0.0
  %v1726 = vmax.f32 %v1541, 0.0
  %v1727 = vmax.f32 %v1543, 0.0
  %v1728 = vmax.f32 %v1594, 0.0
  %v1729 = vmax.f32 %v1596, 0.0
  %v1730 = vmax.f32 %v1647, 0.0
  %v1731 = vmax.f32 %v1649, 0.0
  %v1732 = vmax.f32 %v1700, 0.0
  %v1733 = vmax.f32 %v1702, 0.0
  %v1734 = vmax.f32 %v1333, 0.0
  %v1735 = vmax.f32 %v1335, 0.0
  %v1736 = vmax.f32 %v1386, 0.0
  %v1737 = vmax.f32 %v1388, 0.0
  %v1738 = vmax.f32 %v1439, 0.0
  %v1739 = vmax.f32 %v1441, 0.0
  %v1740 = vmax.f32 %v1492, 0.0
  %v1741 = vmax.f32 %v1494, 0.0
  %v1742 = vmax.f32 %v1545, 0.0
  %v1743 = vmax.f32 %v1547, 0.0
  %v1744 = vmax.f32 %v1598, 0.0
  %v1745 = vmax.f32 %v1600, 0.0
  %v1746 = vmax.f32 %v1651, 0.0
  %v1747 = vmax.f32 %v1653, 0.0
  %v1748 = vmax.f32 %v1704, 0.0
  %v1749 = vmax.f32 %v1706, 0.0
  %v1750 = vmax.f32 %v1339, 0.0
  %v1751 = vmax.f32 %v1341, 0.0
  %v1752 = vmax.f32 %v1392, 0.0
  %v1753 = vmax.f32 %v1394, 0.0
  %v1754 = vmax.f32 %v1445, 0.0
  %v1755 = vmax.f32 %v1447, 0.0
  %v1756 = vmax.f32 %v1498, 0.0
  %v1757 = vmax.f32 %v1500, 0.0
  %v1758 = vmax.f32 %v1551, 0.0
  %v1759 = vmax.f32 %v1553, 0.0
  %v1760 = vmax.f32 %v1604, 0.0
  %v1761 = vmax.f32 %v1606, 0.0
  %v1762 = vmax.f32 %v1657, 0.0
  %v1763 = vmax.f32 %v1659, 0.0
  %v1764 = vmax.f32 %v1710, 0.0
  %v1765 = vmax.f32 %v1712, 0.0
  %v1766 = vmax.f32 %v1343, 0.0
  %v1767 = vmax.f32 %v1345, 0.0
  %v1768 = vmax.f32 %v1396, 0.0
  %v1769 = vmax.f32 %v1398, 0.0
  %v1770 = vmax.f32 %v1449, 0.0
  %v1771 = vmax.f32 %v1451, 0.0
  %v1772 = vmax.f32 %v1502, 0.0
  %v1773 = vmax.f32 %v1504, 0.0
  %v1774 = vmax.f32 %v1555, 0.0
  %v1775 = vmax.f32 %v1557, 0.0
  %v1776 = vmax.f32 %v1608, 0.0
  %v1777 = vmax.f32 %v1610, 0.0
  %v1778 = vmax.f32 %v1661, 0.0
  %v1779 = vmax.f32 %v1663, 0.0
  %v1780 = vmax.f32 %v1714, 0.0
  %v1781 = vmax.f32 %v1716, 0.0
  %v1782 = vpack.c.bf16 %v1734, %v1718
  %v1783 = vpack.c.bf16 %v1735, %v1719
  %v1784 = vpack.c.bf16 %v1736, %v1720
  %v1785 = vpack.c.bf16 %v1737, %v1721
  %v1786 = vpack.c.bf16 %v1738, %v1722
  %v1787 = vpack.c.bf16 %v1739, %v1723
  %v1788 = vpack.c.bf16 %v1740, %v1724
  %v1789 = vpack.c.bf16 %v1741, %v1725
  %v1790 = vpack.c.bf16 %v1742, %v1726
  %v1791 = vpack.c.bf16 %v1743, %v1727
  %v1792 = vpack.c.bf16 %v1744, %v1728
  %v1793 = vpack.c.bf16 %v1745, %v1729
  %v1794 = vpack.c.bf16 %v1746, %v1730
  %v1795 = vpack.c.bf16 %v1747, %v1731
  %v1796 = vpack.c.bf16 %v1748, %v1732
  %v1797 = vpack.c.bf16 %v1749, %v1733
  %v1798 = vpack.c.bf16 %v1766, %v1750
  %v1799 = vpack.c.bf16 %v1767, %v1751
  %v1800 = vpack.c.bf16 %v1768, %v1752
  %v1801 = vpack.c.bf16 %v1769, %v1753
  %v1802 = vpack.c.bf16 %v1770, %v1754
  %v1803 = vpack.c.bf16 %v1771, %v1755
  %v1804 = vpack.c.bf16 %v1772, %v1756
  %v1805 = vpack.c.bf16 %v1773, %v1757
  %v1806 = vpack.c.bf16 %v1774, %v1758
  %v1807 = vpack.c.bf16 %v1775, %v1759
  %v1808 = vpack.c.bf16 %v1776, %v1760
  %v1809 = vpack.c.bf16 %v1777, %v1761
  %v1810 = vpack.c.bf16 %v1778, %v1762
  %v1811 = vpack.c.bf16 %v1779, %v1763
  %v1812 = vpack.c.bf16 %v1780, %v1764
  %v1813 = vpack.c.bf16 %v1781, %v1765
  %v1814 = vld [vmem:[%s3] sm:$0xf]
  %v1815 = vld [vmem:[%s3 + $0x4] sm:$0xf]
  %v1816 = vld [vmem:[%s3 + $0x8] sm:$0xf]
  %v1817 = vld [vmem:[%s3 + $0xc] sm:$0xf]
  %v1818 = vld [vmem:[%s3 + $0x10] sm:$0xf]
  %v1819 = vld [vmem:[%s3 + $0x14] sm:$0xf]
  %v1820 = vld [vmem:[%s3 + $0x18] sm:$0xf]
  %v1821 = vld [vmem:[%s3 + $0x1c] sm:$0xf]
  %v1822 = vld [vmem:[%s3 + $0x20] sm:$0xf]
  %v1823 = vld [vmem:[%s3 + $0x24] sm:$0xf]
  %v1824 = vld [vmem:[%s3 + $0x28] sm:$0xf]
  %v1825 = vld [vmem:[%s3 + $0x2c] sm:$0xf]
  %v1826 = vld [vmem:[%s3 + $0x30] sm:$0xf]
  %v1827 = vld [vmem:[%s3 + $0x34] sm:$0xf]
  %v1828 = vld [vmem:[%s3 + $0x38] sm:$0xf]
  %v1829 = vld [vmem:[%s3 + $0x3c] sm:$0xf]
  %v1830 = vld [vmem:[%s3 + $0x40] sm:$0xf]
  %v1831 = vld [vmem:[%s3 + $0x44] sm:$0xf]
  %v1832 = vld [vmem:[%s3 + $0x48] sm:$0xf]
  %v1833 = vld [vmem:[%s3 + $0x4c] sm:$0xf]
  %v1834 = vld [vmem:[%s3 + $0x50] sm:$0xf]
  %v1835 = vld [vmem:[%s3 + $0x54] sm:$0xf]
  %v1836 = vld [vmem:[%s3 + $0x58] sm:$0xf]
  %v1837 = vld [vmem:[%s3 + $0x5c] sm:$0xf]
  %v1838 = vld [vmem:[%s3 + $0x60] sm:$0xf]
  %v1839 = vld [vmem:[%s3 + $0x64] sm:$0xf]
  %v1840 = vld [vmem:[%s3 + $0x68] sm:$0xf]
  %v1841 = vld [vmem:[%s3 + $0x6c] sm:$0xf]
  %v1842 = vld [vmem:[%s3 + $0x70] sm:$0xf]
  %v1843 = vld [vmem:[%s3 + $0x74] sm:$0xf]
  %v1844 = vld [vmem:[%s3 + $0x78] sm:$0xf]
  %v1845 = vld [vmem:[%s3 + $0x7c] sm:$0xf]
  %v1846 = vld [vmem:[%s3 + $0x80] sm:$0xf]
  %v1847 = vld [vmem:[%s3 + $0x84] sm:$0xf]
  %v1848 = vld [vmem:[%s3 + $0x88] sm:$0xf]
  %v1849 = vld [vmem:[%s3 + $0x8c] sm:$0xf]
  %v1850 = vld [vmem:[%s3 + $0x90] sm:$0xf]
  %v1851 = vld [vmem:[%s3 + $0x94] sm:$0xf]
  %v1852 = vld [vmem:[%s3 + $0x98] sm:$0xf]
  %v1853 = vld [vmem:[%s3 + $0x9c] sm:$0xf]
  %v1854 = vld [vmem:[%s3 + $0xa0] sm:$0xf]
  %v1855 = vld [vmem:[%s3 + $0xa4] sm:$0xf]
  %v1856 = vld [vmem:[%s3 + $0xa8] sm:$0xf]
  %v1857 = vld [vmem:[%s3 + $0xac] sm:$0xf]
  %v1858 = vld [vmem:[%s3 + $0xb0] sm:$0xf]
  %v1859 = vld [vmem:[%s3 + $0xb4] sm:$0xf]
  %v1860 = vld [vmem:[%s3 + $0xb8] sm:$0xf]
  %v1861 = vld [vmem:[%s3 + $0xbc] sm:$0xf]
  %v1862 = vld [vmem:[%s3 + $0xc0] sm:$0xf]
  %v1863 = vld [vmem:[%s3 + $0xc4] sm:$0xf]
  %v1864 = vld [vmem:[%s3 + $0xc8] sm:$0xf]
  %v1865 = vld [vmem:[%s3 + $0xcc] sm:$0xf]
  %v1866 = vld [vmem:[%s3 + $0xd0] sm:$0xf]
  %v1867 = vld [vmem:[%s3 + $0xd4] sm:$0xf]
  %v1868 = vld [vmem:[%s3 + $0xd8] sm:$0xf]
  %v1869 = vld [vmem:[%s3 + $0xdc] sm:$0xf]
  %v1870 = vld [vmem:[%s3 + $0xe0] sm:$0xf]
  %v1871 = vld [vmem:[%s3 + $0xe4] sm:$0xf]
  %v1872 = vld [vmem:[%s3 + $0xe8] sm:$0xf]
  %v1873 = vld [vmem:[%s3 + $0xec] sm:$0xf]
  %v1874 = vld [vmem:[%s3 + $0xf0] sm:$0xf]
  %v1875 = vld [vmem:[%s3 + $0xf4] sm:$0xf]
  %v1876 = vld [vmem:[%s3 + $0xf8] sm:$0xf]
  %v1877 = vld [vmem:[%s3 + $0xfc] sm:$0xf]
  %v1878 = vld [vmem:[%s3 + $0x100] sm:$0xf]
  %v1879 = vld [vmem:[%s3 + $0x104] sm:$0xf]
  %v1880 = vld [vmem:[%s3 + $0x108] sm:$0xf]
  %v1881 = vld [vmem:[%s3 + $0x10c] sm:$0xf]
  %v1882 = vld [vmem:[%s3 + $0x110] sm:$0xf]
  %v1883 = vld [vmem:[%s3 + $0x114] sm:$0xf]
  %v1884 = vld [vmem:[%s3 + $0x118] sm:$0xf]
  %v1885 = vld [vmem:[%s3 + $0x11c] sm:$0xf]
  %v1886 = vld [vmem:[%s3 + $0x120] sm:$0xf]
  %v1887 = vld [vmem:[%s3 + $0x124] sm:$0xf]
  %v1888 = vld [vmem:[%s3 + $0x128] sm:$0xf]
  %v1889 = vld [vmem:[%s3 + $0x12c] sm:$0xf]
  %v1890 = vld [vmem:[%s3 + $0x130] sm:$0xf]
  %v1891 = vld [vmem:[%s3 + $0x134] sm:$0xf]
  %v1892 = vld [vmem:[%s3 + $0x138] sm:$0xf]
  %v1893 = vld [vmem:[%s3 + $0x13c] sm:$0xf]
  %v1894 = vld [vmem:[%s3 + $0x140] sm:$0xf]
  %v1895 = vld [vmem:[%s3 + $0x144] sm:$0xf]
  %v1896 = vld [vmem:[%s3 + $0x148] sm:$0xf]
  %v1897 = vld [vmem:[%s3 + $0x14c] sm:$0xf]
  %v1898 = vld [vmem:[%s3 + $0x150] sm:$0xf]
  %v1899 = vld [vmem:[%s3 + $0x154] sm:$0xf]
  %v1900 = vld [vmem:[%s3 + $0x158] sm:$0xf]
  %v1901 = vld [vmem:[%s3 + $0x15c] sm:$0xf]
  %v1902 = vld [vmem:[%s3 + $0x160] sm:$0xf]
  %v1903 = vld [vmem:[%s3 + $0x164] sm:$0xf]
  %v1904 = vld [vmem:[%s3 + $0x168] sm:$0xf]
  %v1905 = vld [vmem:[%s3 + $0x16c] sm:$0xf]
  %v1906 = vld [vmem:[%s3 + $0x170] sm:$0xf]
  %v1907 = vld [vmem:[%s3 + $0x174] sm:$0xf]
  %v1908 = vld [vmem:[%s3 + $0x178] sm:$0xf]
  %v1909 = vld [vmem:[%s3 + $0x17c] sm:$0xf]
  %v1910 = vld [vmem:[%s3 + $0x180] sm:$0xf]
  %v1911 = vld [vmem:[%s3 + $0x184] sm:$0xf]
  %v1912 = vld [vmem:[%s3 + $0x188] sm:$0xf]
  %v1913 = vld [vmem:[%s3 + $0x18c] sm:$0xf]
  %v1914 = vld [vmem:[%s3 + $0x190] sm:$0xf]
  %v1915 = vld [vmem:[%s3 + $0x194] sm:$0xf]
  %v1916 = vld [vmem:[%s3 + $0x198] sm:$0xf]
  %v1917 = vld [vmem:[%s3 + $0x19c] sm:$0xf]
  %v1918 = vld [vmem:[%s3 + $0x1a0] sm:$0xf]
  %v1919 = vld [vmem:[%s3 + $0x1a4] sm:$0xf]
  %v1920 = vld [vmem:[%s3 + $0x1a8] sm:$0xf]
  %v1921 = vld [vmem:[%s3 + $0x1ac] sm:$0xf]
  %v1922 = vld [vmem:[%s3 + $0x1b0] sm:$0xf]
  %v1923 = vld [vmem:[%s3 + $0x1b4] sm:$0xf]
  %v1924 = vld [vmem:[%s3 + $0x1b8] sm:$0xf]
  %v1925 = vld [vmem:[%s3 + $0x1bc] sm:$0xf]
  %v1926 = vld [vmem:[%s3 + $0x1c0] sm:$0xf]
  %v1927 = vld [vmem:[%s3 + $0x1c4] sm:$0xf]
  %v1928 = vld [vmem:[%s3 + $0x1c8] sm:$0xf]
  %v1929 = vld [vmem:[%s3 + $0x1cc] sm:$0xf]
  %v1930 = vld [vmem:[%s3 + $0x1d0] sm:$0xf]
  %v1931 = vld [vmem:[%s3 + $0x1d4] sm:$0xf]
  %v1932 = vld [vmem:[%s3 + $0x1d8] sm:$0xf]
  %v1933 = vld [vmem:[%s3 + $0x1dc] sm:$0xf]
  %v1934 = vld [vmem:[%s3 + $0x1e0] sm:$0xf]
  %v1935 = vld [vmem:[%s3 + $0x1e4] sm:$0xf]
  %v1936 = vld [vmem:[%s3 + $0x1e8] sm:$0xf]
  %v1937 = vld [vmem:[%s3 + $0x1ec] sm:$0xf]
  %v1938 = vld [vmem:[%s3 + $0x1f0] sm:$0xf]
  %v1939 = vld [vmem:[%s3 + $0x1f4] sm:$0xf]
  %v1940 = vld [vmem:[%s3 + $0x1f8] sm:$0xf]
  %v1941 = vld [vmem:[%s3 + $0x1fc] sm:$0xf]
  %v1942 = vld [vmem:[%s3 + $0x200] sm:$0xf]
  %v1943 = vld [vmem:[%s3 + $0x204] sm:$0xf]
  %v1944 = vld [vmem:[%s3 + $0x208] sm:$0xf]
  %v1945 = vld [vmem:[%s3 + $0x20c] sm:$0xf]
  %v1946 = vld [vmem:[%s3 + $0x210] sm:$0xf]
  %v1947 = vld [vmem:[%s3 + $0x214] sm:$0xf]
  %v1948 = vld [vmem:[%s3 + $0x218] sm:$0xf]
  %v1949 = vld [vmem:[%s3 + $0x21c] sm:$0xf]
  %v1950 = vld [vmem:[%s3 + $0x220] sm:$0xf]
  %v1951 = vld [vmem:[%s3 + $0x224] sm:$0xf]
  %v1952 = vld [vmem:[%s3 + $0x228] sm:$0xf]
  %v1953 = vld [vmem:[%s3 + $0x22c] sm:$0xf]
  %v1954 = vld [vmem:[%s3 + $0x230] sm:$0xf]
  %v1955 = vld [vmem:[%s3 + $0x234] sm:$0xf]
  %v1956 = vld [vmem:[%s3 + $0x238] sm:$0xf]
  %v1957 = vld [vmem:[%s3 + $0x23c] sm:$0xf]
  %v1958 = vld [vmem:[%s3 + $0x240] sm:$0xf]
  %v1959 = vld [vmem:[%s3 + $0x244] sm:$0xf]
  %v1960 = vld [vmem:[%s3 + $0x248] sm:$0xf]
  %v1961 = vld [vmem:[%s3 + $0x24c] sm:$0xf]
  %v1962 = vld [vmem:[%s3 + $0x250] sm:$0xf]
  %v1963 = vld [vmem:[%s3 + $0x254] sm:$0xf]
  %v1964 = vld [vmem:[%s3 + $0x258] sm:$0xf]
  %v1965 = vld [vmem:[%s3 + $0x25c] sm:$0xf]
  %v1966 = vld [vmem:[%s3 + $0x260] sm:$0xf]
  %v1967 = vld [vmem:[%s3 + $0x264] sm:$0xf]
  %v1968 = vld [vmem:[%s3 + $0x268] sm:$0xf]
  %v1969 = vld [vmem:[%s3 + $0x26c] sm:$0xf]
  %v1970 = vld [vmem:[%s3 + $0x270] sm:$0xf]
  %v1971 = vld [vmem:[%s3 + $0x274] sm:$0xf]
  %v1972 = vld [vmem:[%s3 + $0x278] sm:$0xf]
  %v1973 = vld [vmem:[%s3 + $0x27c] sm:$0xf]
  %v1974 = vld [vmem:[%s3 + $0x280] sm:$0xf]
  %v1975 = vld [vmem:[%s3 + $0x284] sm:$0xf]
  %v1976 = vld [vmem:[%s3 + $0x288] sm:$0xf]
  %v1977 = vld [vmem:[%s3 + $0x28c] sm:$0xf]
  %v1978 = vld [vmem:[%s3 + $0x290] sm:$0xf]
  %v1979 = vld [vmem:[%s3 + $0x294] sm:$0xf]
  %v1980 = vld [vmem:[%s3 + $0x298] sm:$0xf]
  %v1981 = vld [vmem:[%s3 + $0x29c] sm:$0xf]
  %v1982 = vld [vmem:[%s3 + $0x2a0] sm:$0xf]
  %v1983 = vld [vmem:[%s3 + $0x2a4] sm:$0xf]
  %v1984 = vld [vmem:[%s3 + $0x2a8] sm:$0xf]
  %v1985 = vld [vmem:[%s3 + $0x2ac] sm:$0xf]
  %v1986 = vld [vmem:[%s3 + $0x2b0] sm:$0xf]
  %v1987 = vld [vmem:[%s3 + $0x2b4] sm:$0xf]
  %v1988 = vld [vmem:[%s3 + $0x2b8] sm:$0xf]
  %v1989 = vld [vmem:[%s3 + $0x2bc] sm:$0xf]
  %v1990 = vld [vmem:[%s3 + $0x2c0] sm:$0xf]
  %v1991 = vld [vmem:[%s3 + $0x2c4] sm:$0xf]
  %v1992 = vld [vmem:[%s3 + $0x2c8] sm:$0xf]
  %v1993 = vld [vmem:[%s3 + $0x2cc] sm:$0xf]
  %v1994 = vld [vmem:[%s3 + $0x2d0] sm:$0xf]
  %v1995 = vld [vmem:[%s3 + $0x2d4] sm:$0xf]
  %v1996 = vld [vmem:[%s3 + $0x2d8] sm:$0xf]
  %v1997 = vld [vmem:[%s3 + $0x2dc] sm:$0xf]
  %v1998 = vld [vmem:[%s3 + $0x2e0] sm:$0xf]
  %v1999 = vld [vmem:[%s3 + $0x2e4] sm:$0xf]
  %v2000 = vld [vmem:[%s3 + $0x2e8] sm:$0xf]
  %v2001 = vld [vmem:[%s3 + $0x2ec] sm:$0xf]
  %v2002 = vld [vmem:[%s3 + $0x2f0] sm:$0xf]
  %v2003 = vld [vmem:[%s3 + $0x2f4] sm:$0xf]
  %v2004 = vld [vmem:[%s3 + $0x2f8] sm:$0xf]
  %v2005 = vld [vmem:[%s3 + $0x2fc] sm:$0xf]
  %v2006 = vld [vmem:[%s3 + $0x300] sm:$0xf]
  %v2007 = vld [vmem:[%s3 + $0x304] sm:$0xf]
  %v2008 = vld [vmem:[%s3 + $0x308] sm:$0xf]
  %v2009 = vld [vmem:[%s3 + $0x30c] sm:$0xf]
  %v2010 = vld [vmem:[%s3 + $0x310] sm:$0xf]
  %v2011 = vld [vmem:[%s3 + $0x314] sm:$0xf]
  %v2012 = vld [vmem:[%s3 + $0x318] sm:$0xf]
  %v2013 = vld [vmem:[%s3 + $0x31c] sm:$0xf]
  %v2014 = vld [vmem:[%s3 + $0x320] sm:$0xf]
  %v2015 = vld [vmem:[%s3 + $0x324] sm:$0xf]
  %v2016 = vld [vmem:[%s3 + $0x328] sm:$0xf]
  %v2017 = vld [vmem:[%s3 + $0x32c] sm:$0xf]
  %v2018 = vld [vmem:[%s3 + $0x330] sm:$0xf]
  %v2019 = vld [vmem:[%s3 + $0x334] sm:$0xf]
  %v2020 = vld [vmem:[%s3 + $0x338] sm:$0xf]
  %v2021 = vld [vmem:[%s3 + $0x33c] sm:$0xf]
  %v2022 = vld [vmem:[%s3 + $0x340] sm:$0xf]
  %v2023 = vld [vmem:[%s3 + $0x344] sm:$0xf]
  %v2024 = vld [vmem:[%s3 + $0x348] sm:$0xf]
  %v2025 = vld [vmem:[%s3 + $0x34c] sm:$0xf]
  %v2026 = vld [vmem:[%s3 + $0x350] sm:$0xf]
  %v2027 = vld [vmem:[%s3 + $0x354] sm:$0xf]
  %v2028 = vld [vmem:[%s3 + $0x358] sm:$0xf]
  %v2029 = vld [vmem:[%s3 + $0x35c] sm:$0xf]
  %v2030 = vld [vmem:[%s3 + $0x360] sm:$0xf]
  %v2031 = vld [vmem:[%s3 + $0x364] sm:$0xf]
  %v2032 = vld [vmem:[%s3 + $0x368] sm:$0xf]
  %v2033 = vld [vmem:[%s3 + $0x36c] sm:$0xf]
  %v2034 = vld [vmem:[%s3 + $0x370] sm:$0xf]
  %v2035 = vld [vmem:[%s3 + $0x374] sm:$0xf]
  %v2036 = vld [vmem:[%s3 + $0x378] sm:$0xf]
  %v2037 = vld [vmem:[%s3 + $0x37c] sm:$0xf]
  %v2038 = vld [vmem:[%s3 + $0x380] sm:$0xf]
  %v2039 = vld [vmem:[%s3 + $0x384] sm:$0xf]
  %v2040 = vld [vmem:[%s3 + $0x388] sm:$0xf]
  %v2041 = vld [vmem:[%s3 + $0x38c] sm:$0xf]
  %v2042 = vld [vmem:[%s3 + $0x390] sm:$0xf]
  %v2043 = vld [vmem:[%s3 + $0x394] sm:$0xf]
  %v2044 = vld [vmem:[%s3 + $0x398] sm:$0xf]
  %v2045 = vld [vmem:[%s3 + $0x39c] sm:$0xf]
  %v2046 = vld [vmem:[%s3 + $0x3a0] sm:$0xf]
  %v2047 = vld [vmem:[%s3 + $0x3a4] sm:$0xf]
  %v2048 = vld [vmem:[%s3 + $0x3a8] sm:$0xf]
  %v2049 = vld [vmem:[%s3 + $0x3ac] sm:$0xf]
  %v2050 = vld [vmem:[%s3 + $0x3b0] sm:$0xf]
  %v2051 = vld [vmem:[%s3 + $0x3b4] sm:$0xf]
  %v2052 = vld [vmem:[%s3 + $0x3b8] sm:$0xf]
  %v2053 = vld [vmem:[%s3 + $0x3bc] sm:$0xf]
  %v2054 = vld [vmem:[%s3 + $0x3c0] sm:$0xf]
  %v2055 = vld [vmem:[%s3 + $0x3c4] sm:$0xf]
  %v2056 = vld [vmem:[%s3 + $0x3c8] sm:$0xf]
  %v2057 = vld [vmem:[%s3 + $0x3cc] sm:$0xf]
  %v2058 = vld [vmem:[%s3 + $0x3d0] sm:$0xf]
  %v2059 = vld [vmem:[%s3 + $0x3d4] sm:$0xf]
  %v2060 = vld [vmem:[%s3 + $0x3d8] sm:$0xf]
  %v2061 = vld [vmem:[%s3 + $0x3dc] sm:$0xf]
  %v2062 = vld [vmem:[%s3 + $0x3e0] sm:$0xf]
  %v2063 = vld [vmem:[%s3 + $0x3e4] sm:$0xf]
  %v2064 = vld [vmem:[%s3 + $0x3e8] sm:$0xf]
  %v2065 = vld [vmem:[%s3 + $0x3ec] sm:$0xf]
  %v2066 = vld [vmem:[%s3 + $0x3f0] sm:$0xf]
  %v2067 = vld [vmem:[%s3 + $0x3f4] sm:$0xf]
  %v2068 = vld [vmem:[%s3 + $0x3f8] sm:$0xf]
  %v2069 = vld [vmem:[%s3 + $0x3fc] sm:$0xf]
  %v2070 = vld [vmem:[%s4] sm:$0x1]
  %v2072 = vlaneseq
  %v2073 = vshrl.u32 %v2072, 7
  %v2074 = vsub.s32 0, %v2073
  %v2075 = vrot.slane %v2070, %v2074
  %v2333 = vunpack.c.l.b16 %v1814
  %v2334 = vunpack.c.l.b16 %v1815
  %v2335 = vunpack.c.l.b16 %v1816
  %v2336 = vunpack.c.l.b16 %v1817
  %v2337 = vunpack.c.l.b16 %v1818
  %v2338 = vunpack.c.l.b16 %v1819
  %v2339 = vunpack.c.l.b16 %v1820
  %v2340 = vunpack.c.l.b16 %v1821
  %v2341 = vunpack.c.l.b16 %v1822
  %v2342 = vunpack.c.l.b16 %v1823
  %v2343 = vunpack.c.l.b16 %v1824
  %v2344 = vunpack.c.l.b16 %v1825
  %v2345 = vunpack.c.l.b16 %v1826
  %v2346 = vunpack.c.l.b16 %v1827
  %v2347 = vunpack.c.l.b16 %v1828
  %v2348 = vunpack.c.l.b16 %v1829
  %v2349 = vunpack.c.l.b16 %v1830
  %v2350 = vunpack.c.l.b16 %v1831
  %v2351 = vunpack.c.l.b16 %v1832
  %v2352 = vunpack.c.l.b16 %v1833
  %v2353 = vunpack.c.l.b16 %v1834
  %v2354 = vunpack.c.l.b16 %v1835
  %v2355 = vunpack.c.l.b16 %v1836
  %v2356 = vunpack.c.l.b16 %v1837
  %v2357 = vunpack.c.l.b16 %v1838
  %v2358 = vunpack.c.l.b16 %v1839
  %v2359 = vunpack.c.l.b16 %v1840
  %v2360 = vunpack.c.l.b16 %v1841
  %v2361 = vunpack.c.l.b16 %v1842
  %v2362 = vunpack.c.l.b16 %v1843
  %v2363 = vunpack.c.l.b16 %v1844
  %v2364 = vunpack.c.l.b16 %v1845
  %v2365 = vunpack.c.l.b16 %v1846
  %v2366 = vunpack.c.l.b16 %v1847
  %v2367 = vunpack.c.l.b16 %v1848
  %v2368 = vunpack.c.l.b16 %v1849
  %v2369 = vunpack.c.l.b16 %v1850
  %v2370 = vunpack.c.l.b16 %v1851
  %v2371 = vunpack.c.l.b16 %v1852
  %v2372 = vunpack.c.l.b16 %v1853
  %v2373 = vunpack.c.l.b16 %v1854
  %v2374 = vunpack.c.l.b16 %v1855
  %v2375 = vunpack.c.l.b16 %v1856
  %v2376 = vunpack.c.l.b16 %v1857
  %v2377 = vunpack.c.l.b16 %v1858
  %v2378 = vunpack.c.l.b16 %v1859
  %v2379 = vunpack.c.l.b16 %v1860
  %v2380 = vunpack.c.l.b16 %v1861
  %v2381 = vunpack.c.l.b16 %v1862
  %v2382 = vunpack.c.l.b16 %v1863
  %v2383 = vunpack.c.l.b16 %v1864
  %v2384 = vunpack.c.l.b16 %v1865
  %v2385 = vunpack.c.l.b16 %v1866
  %v2386 = vunpack.c.l.b16 %v1867
  %v2387 = vunpack.c.l.b16 %v1868
  %v2388 = vunpack.c.l.b16 %v1869
  %v2389 = vunpack.c.l.b16 %v1870
  %v2390 = vunpack.c.l.b16 %v1871
  %v2391 = vunpack.c.l.b16 %v1872
  %v2392 = vunpack.c.l.b16 %v1873
  %v2393 = vunpack.c.l.b16 %v1874
  %v2394 = vunpack.c.l.b16 %v1875
  %v2395 = vunpack.c.l.b16 %v1876
  %v2396 = vunpack.c.l.b16 %v1877
  %v2397 = vunpack.c.l.b16 %v1878
  %v2398 = vunpack.c.l.b16 %v1879
  %v2399 = vunpack.c.l.b16 %v1880
  %v2400 = vunpack.c.l.b16 %v1881
  %v2401 = vunpack.c.l.b16 %v1882
  %v2402 = vunpack.c.l.b16 %v1883
  %v2403 = vunpack.c.l.b16 %v1884
  %v2404 = vunpack.c.l.b16 %v1885
  %v2405 = vunpack.c.l.b16 %v1886
  %v2406 = vunpack.c.l.b16 %v1887
  %v2407 = vunpack.c.l.b16 %v1888
  %v2408 = vunpack.c.l.b16 %v1889
  %v2409 = vunpack.c.l.b16 %v1890
  %v2410 = vunpack.c.l.b16 %v1891
  %v2411 = vunpack.c.l.b16 %v1892
  %v2412 = vunpack.c.l.b16 %v1893
  %v2413 = vunpack.c.l.b16 %v1894
  %v2414 = vunpack.c.l.b16 %v1895
  %v2415 = vunpack.c.l.b16 %v1896
  %v2416 = vunpack.c.l.b16 %v1897
  %v2417 = vunpack.c.l.b16 %v1898
  %v2418 = vunpack.c.l.b16 %v1899
  %v2419 = vunpack.c.l.b16 %v1900
  %v2420 = vunpack.c.l.b16 %v1901
  %v2421 = vunpack.c.l.b16 %v1902
  %v2422 = vunpack.c.l.b16 %v1903
  %v2423 = vunpack.c.l.b16 %v1904
  %v2424 = vunpack.c.l.b16 %v1905
  %v2425 = vunpack.c.l.b16 %v1906
  %v2426 = vunpack.c.l.b16 %v1907
  %v2427 = vunpack.c.l.b16 %v1908
  %v2428 = vunpack.c.l.b16 %v1909
  %v2429 = vunpack.c.l.b16 %v1910
  %v2430 = vunpack.c.l.b16 %v1911
  %v2431 = vunpack.c.l.b16 %v1912
  %v2432 = vunpack.c.l.b16 %v1913
  %v2433 = vunpack.c.l.b16 %v1914
  %v2434 = vunpack.c.l.b16 %v1915
  %v2435 = vunpack.c.l.b16 %v1916
  %v2436 = vunpack.c.l.b16 %v1917
  %v2437 = vunpack.c.l.b16 %v1918
  %v2438 = vunpack.c.l.b16 %v1919
  %v2439 = vunpack.c.l.b16 %v1920
  %v2440 = vunpack.c.l.b16 %v1921
  %v2441 = vunpack.c.l.b16 %v1922
  %v2442 = vunpack.c.l.b16 %v1923
  %v2443 = vunpack.c.l.b16 %v1924
  %v2444 = vunpack.c.l.b16 %v1925
  %v2445 = vunpack.c.l.b16 %v1926
  %v2446 = vunpack.c.l.b16 %v1927
  %v2447 = vunpack.c.l.b16 %v1928
  %v2448 = vunpack.c.l.b16 %v1929
  %v2449 = vunpack.c.l.b16 %v1930
  %v2450 = vunpack.c.l.b16 %v1931
  %v2451 = vunpack.c.l.b16 %v1932
  %v2452 = vunpack.c.l.b16 %v1933
  %v2453 = vunpack.c.l.b16 %v1934
  %v2454 = vunpack.c.l.b16 %v1935
  %v2455 = vunpack.c.l.b16 %v1936
  %v2456 = vunpack.c.l.b16 %v1937
  %v2457 = vunpack.c.l.b16 %v1938
  %v2458 = vunpack.c.l.b16 %v1939
  %v2459 = vunpack.c.l.b16 %v1940
  %v2460 = vunpack.c.l.b16 %v1941
  %v2461 = vunpack.c.l.b16 %v1942
  %v2462 = vunpack.c.l.b16 %v1943
  %v2463 = vunpack.c.l.b16 %v1944
  %v2464 = vunpack.c.l.b16 %v1945
  %v2465 = vunpack.c.l.b16 %v1946
  %v2466 = vunpack.c.l.b16 %v1947
  %v2467 = vunpack.c.l.b16 %v1948
  %v2468 = vunpack.c.l.b16 %v1949
  %v2469 = vunpack.c.l.b16 %v1950
  %v2470 = vunpack.c.l.b16 %v1951
  %v2471 = vunpack.c.l.b16 %v1952
  %v2472 = vunpack.c.l.b16 %v1953
  %v2473 = vunpack.c.l.b16 %v1954
  %v2474 = vunpack.c.l.b16 %v1955
  %v2475 = vunpack.c.l.b16 %v1956
  %v2476 = vunpack.c.l.b16 %v1957
  %v2477 = vunpack.c.l.b16 %v1958
  %v2478 = vunpack.c.l.b16 %v1959
  %v2479 = vunpack.c.l.b16 %v1960
  %v2480 = vunpack.c.l.b16 %v1961
  %v2481 = vunpack.c.l.b16 %v1962
  %v2482 = vunpack.c.l.b16 %v1963
  %v2483 = vunpack.c.l.b16 %v1964
  %v2484 = vunpack.c.l.b16 %v1965
  %v2485 = vunpack.c.l.b16 %v1966
  %v2486 = vunpack.c.l.b16 %v1967
  %v2487 = vunpack.c.l.b16 %v1968
  %v2488 = vunpack.c.l.b16 %v1969
  %v2489 = vunpack.c.l.b16 %v1970
  %v2490 = vunpack.c.l.b16 %v1971
  %v2491 = vunpack.c.l.b16 %v1972
  %v2492 = vunpack.c.l.b16 %v1973
  %v2493 = vunpack.c.l.b16 %v1974
  %v2494 = vunpack.c.l.b16 %v1975
  %v2495 = vunpack.c.l.b16 %v1976
  %v2496 = vunpack.c.l.b16 %v1977
  %v2497 = vunpack.c.l.b16 %v1978
  %v2498 = vunpack.c.l.b16 %v1979
  %v2499 = vunpack.c.l.b16 %v1980
  %v2500 = vunpack.c.l.b16 %v1981
  %v2501 = vunpack.c.l.b16 %v1982
  %v2502 = vunpack.c.l.b16 %v1983
  %v2503 = vunpack.c.l.b16 %v1984
  %v2504 = vunpack.c.l.b16 %v1985
  %v2505 = vunpack.c.l.b16 %v1986
  %v2506 = vunpack.c.l.b16 %v1987
  %v2507 = vunpack.c.l.b16 %v1988
  %v2508 = vunpack.c.l.b16 %v1989
  %v2509 = vunpack.c.l.b16 %v1990
  %v2510 = vunpack.c.l.b16 %v1991
  %v2511 = vunpack.c.l.b16 %v1992
  %v2512 = vunpack.c.l.b16 %v1993
  %v2513 = vunpack.c.l.b16 %v1994
  %v2514 = vunpack.c.l.b16 %v1995
  %v2515 = vunpack.c.l.b16 %v1996
  %v2516 = vunpack.c.l.b16 %v1997
  %v2517 = vunpack.c.l.b16 %v1998
  %v2518 = vunpack.c.l.b16 %v1999
  %v2519 = vunpack.c.l.b16 %v2000
  %v2520 = vunpack.c.l.b16 %v2001
  %v2521 = vunpack.c.l.b16 %v2002
  %v2522 = vunpack.c.l.b16 %v2003
  %v2523 = vunpack.c.l.b16 %v2004
  %v2524 = vunpack.c.l.b16 %v2005
  %v2525 = vunpack.c.l.b16 %v2006
  %v2526 = vunpack.c.l.b16 %v2007
  %v2527 = vunpack.c.l.b16 %v2008
  %v2528 = vunpack.c.l.b16 %v2009
  %v2529 = vunpack.c.l.b16 %v2010
  %v2530 = vunpack.c.l.b16 %v2011
  %v2531 = vunpack.c.l.b16 %v2012
  %v2532 = vunpack.c.l.b16 %v2013
  %v2533 = vunpack.c.l.b16 %v2014
  %v2534 = vunpack.c.l.b16 %v2015
  %v2535 = vunpack.c.l.b16 %v2016
  %v2536 = vunpack.c.l.b16 %v2017
  %v2537 = vunpack.c.l.b16 %v2018
  %v2538 = vunpack.c.l.b16 %v2019
  %v2539 = vunpack.c.l.b16 %v2020
  %v2540 = vunpack.c.l.b16 %v2021
  %v2541 = vunpack.c.l.b16 %v2022
  %v2542 = vunpack.c.l.b16 %v2023
  %v2543 = vunpack.c.l.b16 %v2024
  %v2544 = vunpack.c.l.b16 %v2025
  %v2545 = vunpack.c.l.b16 %v2026
  %v2546 = vunpack.c.l.b16 %v2027
  %v2547 = vunpack.c.l.b16 %v2028
  %v2548 = vunpack.c.l.b16 %v2029
  %v2549 = vunpack.c.l.b16 %v2030
  %v2550 = vunpack.c.l.b16 %v2031
  %v2551 = vunpack.c.l.b16 %v2032
  %v2552 = vunpack.c.l.b16 %v2033
  %v2553 = vunpack.c.l.b16 %v2034
  %v2554 = vunpack.c.l.b16 %v2035
  %v2555 = vunpack.c.l.b16 %v2036
  %v2556 = vunpack.c.l.b16 %v2037
  %v2557 = vunpack.c.l.b16 %v2038
  %v2558 = vunpack.c.l.b16 %v2039
  %v2559 = vunpack.c.l.b16 %v2040
  %v2560 = vunpack.c.l.b16 %v2041
  %v2561 = vunpack.c.l.b16 %v2042
  %v2562 = vunpack.c.l.b16 %v2043
  %v2563 = vunpack.c.l.b16 %v2044
  %v2564 = vunpack.c.l.b16 %v2045
  %v2565 = vunpack.c.l.b16 %v2046
  %v2566 = vunpack.c.l.b16 %v2047
  %v2567 = vunpack.c.l.b16 %v2048
  %v2568 = vunpack.c.l.b16 %v2049
  %v2569 = vunpack.c.l.b16 %v2050
  %v2570 = vunpack.c.l.b16 %v2051
  %v2571 = vunpack.c.l.b16 %v2052
  %v2572 = vunpack.c.l.b16 %v2053
  %v2573 = vunpack.c.l.b16 %v2054
  %v2574 = vunpack.c.l.b16 %v2055
  %v2575 = vunpack.c.l.b16 %v2056
  %v2576 = vunpack.c.l.b16 %v2057
  %v2577 = vunpack.c.l.b16 %v2058
  %v2578 = vunpack.c.l.b16 %v2059
  %v2579 = vunpack.c.l.b16 %v2060
  %v2580 = vunpack.c.l.b16 %v2061
  %v2581 = vunpack.c.l.b16 %v2062
  %v2582 = vunpack.c.l.b16 %v2063
  %v2583 = vunpack.c.l.b16 %v2064
  %v2584 = vunpack.c.l.b16 %v2065
  %v2585 = vunpack.c.l.b16 %v2066
  %v2586 = vunpack.c.l.b16 %v2067
  %v2587 = vunpack.c.l.b16 %v2068
  %v2588 = vunpack.c.l.b16 %v2069
  %v2589 = vpack.c.b16 %v2334, %v2333
  %v2590 = vpack.c.b16 %v2336, %v2335
  %v2591 = vpack.c.b16 %v2338, %v2337
  %v2592 = vpack.c.b16 %v2340, %v2339
  %v2593 = vpack.c.b16 %v2342, %v2341
  %v2594 = vpack.c.b16 %v2344, %v2343
  %v2595 = vpack.c.b16 %v2346, %v2345
  %v2596 = vpack.c.b16 %v2348, %v2347
  %v2597 = vpack.c.b16 %v2350, %v2349
  %v2598 = vpack.c.b16 %v2352, %v2351
  %v2599 = vpack.c.b16 %v2354, %v2353
  %v2600 = vpack.c.b16 %v2356, %v2355
  %v2601 = vpack.c.b16 %v2358, %v2357
  %v2602 = vpack.c.b16 %v2360, %v2359
  %v2603 = vpack.c.b16 %v2362, %v2361
  %v2604 = vpack.c.b16 %v2364, %v2363
  %v2605 = vpack.c.b16 %v2366, %v2365
  %v2606 = vpack.c.b16 %v2368, %v2367
  %v2607 = vpack.c.b16 %v2370, %v2369
  %v2608 = vpack.c.b16 %v2372, %v2371
  %v2609 = vpack.c.b16 %v2374, %v2373
  %v2610 = vpack.c.b16 %v2376, %v2375
  %v2611 = vpack.c.b16 %v2378, %v2377
  %v2612 = vpack.c.b16 %v2380, %v2379
  %v2613 = vpack.c.b16 %v2382, %v2381
  %v2614 = vpack.c.b16 %v2384, %v2383
  %v2615 = vpack.c.b16 %v2386, %v2385
  %v2616 = vpack.c.b16 %v2388, %v2387
  %v2617 = vpack.c.b16 %v2390, %v2389
  %v2618 = vpack.c.b16 %v2392, %v2391
  %v2619 = vpack.c.b16 %v2394, %v2393
  %v2620 = vpack.c.b16 %v2396, %v2395
  %v2621 = vpack.c.b16 %v2398, %v2397
  %v2622 = vpack.c.b16 %v2400, %v2399
  %v2623 = vpack.c.b16 %v2402, %v2401
  %v2624 = vpack.c.b16 %v2404, %v2403
  %v2625 = vpack.c.b16 %v2406, %v2405
  %v2626 = vpack.c.b16 %v2408, %v2407
  %v2627 = vpack.c.b16 %v2410, %v2409
  %v2628 = vpack.c.b16 %v2412, %v2411
  %v2629 = vpack.c.b16 %v2414, %v2413
  %v2630 = vpack.c.b16 %v2416, %v2415
  %v2631 = vpack.c.b16 %v2418, %v2417
  %v2632 = vpack.c.b16 %v2420, %v2419
  %v2633 = vpack.c.b16 %v2422, %v2421
  %v2634 = vpack.c.b16 %v2424, %v2423
  %v2635 = vpack.c.b16 %v2426, %v2425
  %v2636 = vpack.c.b16 %v2428, %v2427
  %v2637 = vpack.c.b16 %v2430, %v2429
  %v2638 = vpack.c.b16 %v2432, %v2431
  %v2639 = vpack.c.b16 %v2434, %v2433
  %v2640 = vpack.c.b16 %v2436, %v2435
  %v2641 = vpack.c.b16 %v2438, %v2437
  %v2642 = vpack.c.b16 %v2440, %v2439
  %v2643 = vpack.c.b16 %v2442, %v2441
  %v2644 = vpack.c.b16 %v2444, %v2443
  %v2645 = vpack.c.b16 %v2446, %v2445
  %v2646 = vpack.c.b16 %v2448, %v2447
  %v2647 = vpack.c.b16 %v2450, %v2449
  %v2648 = vpack.c.b16 %v2452, %v2451
  %v2649 = vpack.c.b16 %v2454, %v2453
  %v2650 = vpack.c.b16 %v2456, %v2455
  %v2651 = vpack.c.b16 %v2458, %v2457
  %v2652 = vpack.c.b16 %v2460, %v2459
  %v2653 = vpack.c.b16 %v2462, %v2461
  %v2654 = vpack.c.b16 %v2464, %v2463
  %v2655 = vpack.c.b16 %v2466, %v2465
  %v2656 = vpack.c.b16 %v2468, %v2467
  %v2657 = vpack.c.b16 %v2470, %v2469
  %v2658 = vpack.c.b16 %v2472, %v2471
  %v2659 = vpack.c.b16 %v2474, %v2473
  %v2660 = vpack.c.b16 %v2476, %v2475
  %v2661 = vpack.c.b16 %v2478, %v2477
  %v2662 = vpack.c.b16 %v2480, %v2479
  %v2663 = vpack.c.b16 %v2482, %v2481
  %v2664 = vpack.c.b16 %v2484, %v2483
  %v2665 = vpack.c.b16 %v2486, %v2485
  %v2666 = vpack.c.b16 %v2488, %v2487
  %v2667 = vpack.c.b16 %v2490, %v2489
  %v2668 = vpack.c.b16 %v2492, %v2491
  %v2669 = vpack.c.b16 %v2494, %v2493
  %v2670 = vpack.c.b16 %v2496, %v2495
  %v2671 = vpack.c.b16 %v2498, %v2497
  %v2672 = vpack.c.b16 %v2500, %v2499
  %v2673 = vpack.c.b16 %v2502, %v2501
  %v2674 = vpack.c.b16 %v2504, %v2503
  %v2675 = vpack.c.b16 %v2506, %v2505
  %v2676 = vpack.c.b16 %v2508, %v2507
  %v2677 = vpack.c.b16 %v2510, %v2509
  %v2678 = vpack.c.b16 %v2512, %v2511
  %v2679 = vpack.c.b16 %v2514, %v2513
  %v2680 = vpack.c.b16 %v2516, %v2515
  %v2681 = vpack.c.b16 %v2518, %v2517
  %v2682 = vpack.c.b16 %v2520, %v2519
  %v2683 = vpack.c.b16 %v2522, %v2521
  %v2684 = vpack.c.b16 %v2524, %v2523
  %v2685 = vpack.c.b16 %v2526, %v2525
  %v2686 = vpack.c.b16 %v2528, %v2527
  %v2687 = vpack.c.b16 %v2530, %v2529
  %v2688 = vpack.c.b16 %v2532, %v2531
  %v2689 = vpack.c.b16 %v2534, %v2533
  %v2690 = vpack.c.b16 %v2536, %v2535
  %v2691 = vpack.c.b16 %v2538, %v2537
  %v2692 = vpack.c.b16 %v2540, %v2539
  %v2693 = vpack.c.b16 %v2542, %v2541
  %v2694 = vpack.c.b16 %v2544, %v2543
  %v2695 = vpack.c.b16 %v2546, %v2545
  %v2696 = vpack.c.b16 %v2548, %v2547
  %v2697 = vpack.c.b16 %v2550, %v2549
  %v2698 = vpack.c.b16 %v2552, %v2551
  %v2699 = vpack.c.b16 %v2554, %v2553
  %v2700 = vpack.c.b16 %v2556, %v2555
  %v2701 = vpack.c.b16 %v2558, %v2557
  %v2702 = vpack.c.b16 %v2560, %v2559
  %v2703 = vpack.c.b16 %v2562, %v2561
  %v2704 = vpack.c.b16 %v2564, %v2563
  %v2705 = vpack.c.b16 %v2566, %v2565
  %v2706 = vpack.c.b16 %v2568, %v2567
  %v2707 = vpack.c.b16 %v2570, %v2569
  %v2708 = vpack.c.b16 %v2572, %v2571
  %v2709 = vpack.c.b16 %v2574, %v2573
  %v2710 = vpack.c.b16 %v2576, %v2575
  %v2711 = vpack.c.b16 %v2578, %v2577
  %v2712 = vpack.c.b16 %v2580, %v2579
  %v2713 = vpack.c.b16 %v2582, %v2581
  %v2714 = vpack.c.b16 %v2584, %v2583
  %v2715 = vpack.c.b16 %v2586, %v2585
  %v2716 = vpack.c.b16 %v2588, %v2587
  %2845 = vmatprep.subr.bf16.mxu0 0
  %2846 = vmatpush1.bf16.msra.mxu0 %v2589
  %2847 = vmatprep.subr.bf16.mxu0 0
  %2848 = vmatpush1.bf16.msra.mxu0 %v2590
  %2849 = vmatprep.subr.bf16.mxu0 0
  %2850 = vmatpush1.bf16.msra.mxu0 %v2591
  %2851 = vmatprep.subr.bf16.mxu0 0
  %2852 = vmatpush1.bf16.msra.mxu0 %v2592
  %2853 = vmatprep.subr.bf16.mxu0 0
  %2854 = vmatpush1.bf16.msra.mxu0 %v2593
  %2855 = vmatprep.subr.bf16.mxu0 0
  %2856 = vmatpush1.bf16.msra.mxu0 %v2594
  %2857 = vmatprep.subr.bf16.mxu0 0
  %2858 = vmatpush1.bf16.msra.mxu0 %v2595
  %2859 = vmatprep.subr.bf16.mxu0 0
  %2860 = vmatpush1.bf16.msra.mxu0 %v2596
  %2861 = vmatprep.subr.bf16.mxu0 0
  %2862 = vmatpush1.bf16.msra.mxu0 %v2597
  %2863 = vmatprep.subr.bf16.mxu0 0
  %2864 = vmatpush1.bf16.msra.mxu0 %v2598
  %2865 = vmatprep.subr.bf16.mxu0 0
  %2866 = vmatpush1.bf16.msra.mxu0 %v2599
  %2867 = vmatprep.subr.bf16.mxu0 0
  %2868 = vmatpush1.bf16.msra.mxu0 %v2600
  %2869 = vmatprep.subr.bf16.mxu0 0
  %2870 = vmatpush1.bf16.msra.mxu0 %v2601
  %2871 = vmatprep.subr.bf16.mxu0 0
  %2872 = vmatpush1.bf16.msra.mxu0 %v2602
  %2873 = vmatprep.subr.bf16.mxu0 0
  %2874 = vmatpush1.bf16.msra.mxu0 %v2603
  %2875 = vmatprep.subr.bf16.mxu0 0
  %2876 = vmatpush1.bf16.msra.mxu0 %v2604
  %2877 = vmatprep.mubr.bf16.mxu0 %v1783
  %2878 = vmatmul.mubr.bf16.gmra.mrb[0].mxu0 %v1782
  %v2879 = vpop.f32.mrb[0].mxu0
  %v2880 = vadd.f32 %v2075, %v2879
  %v2881 = vpop.f32.mrb[0].mxu0
  %v2882 = vpop.f32.mrb[0].mxu0
  %v2883 = vadd.f32 %v2075, %v2882
  %v2884 = vpop.f32.mrb[0].mxu0
  %2885 = vmatprep.mubr.bf16.mxu0 %v1799
  %2886 = vmatmul.mubr.bf16.gmra.mrb[0].mxu0 %v1798
  %v2887 = vpop.f32.mrb[0].mxu0
  %v2888 = vadd.f32 %v2075, %v2887
  %v2889 = vpop.f32.mrb[0].mxu0
  %v2890 = vpop.f32.mrb[0].mxu0
  %v2891 = vadd.f32 %v2075, %v2890
  %v2892 = vpop.f32.mrb[0].mxu0
  %2893 = vdwg.mxu0
  %2894 = vmatprep.subr.bf16.mxu0 0
  %2895 = vmatpush1.bf16.msra.mxu0 %v2605
  %2896 = vmatprep.subr.bf16.mxu0 0
  %2897 = vmatpush1.bf16.msra.mxu0 %v2606
  %2898 = vmatprep.subr.bf16.mxu0 0
  %2899 = vmatpush1.bf16.msra.mxu0 %v2607
  %2900 = vmatprep.subr.bf16.mxu0 0
  %2901 = vmatpush1.bf16.msra.mxu0 %v2608
  %2902 = vmatprep.subr.bf16.mxu0 0
  %2903 = vmatpush1.bf16.msra.mxu0 %v2609
  %2904 = vmatprep.subr.bf16.mxu0 0
  %2905 = vmatpush1.bf16.msra.mxu0 %v2610
  %2906 = vmatprep.subr.bf16.mxu0 0
  %2907 = vmatpush1.bf16.msra.mxu0 %v2611
  %2908 = vmatprep.subr.bf16.mxu0 0
  %2909 = vmatpush1.bf16.msra.mxu0 %v2612
  %2910 = vmatprep.subr.bf16.mxu0 0
  %2911 = vmatpush1.bf16.msra.mxu0 %v2613
  %2912 = vmatprep.subr.bf16.mxu0 0
  %2913 = vmatpush1.bf16.msra.mxu0 %v2614
  %2914 = vmatprep.subr.bf16.mxu0 0
  %2915 = vmatpush1.bf16.msra.mxu0 %v2615
  %2916 = vmatprep.subr.bf16.mxu0 0
  %2917 = vmatpush1.bf16.msra.mxu0 %v2616
  %2918 = vmatprep.subr.bf16.mxu0 0
  %2919 = vmatpush1.bf16.msra.mxu0 %v2617
  %2920 = vmatprep.subr.bf16.mxu0 0
  %2921 = vmatpush1.bf16.msra.mxu0 %v2618
  %2922 = vmatprep.subr.bf16.mxu0 0
  %2923 = vmatpush1.bf16.msra.mxu0 %v2619
  %2924 = vmatprep.subr.bf16.mxu0 0
  %2925 = vmatpush1.bf16.msra.mxu0 %v2620
  %2926 = vmatprep.mubr.bf16.mxu0 %v1785
  %2927 = vmatmul.mubr.bf16.gmra.mrb[0].mxu0 %v1784
  %v2928 = vpop.f32.mrb[0].mxu0
  %v2929 = vadd.f32 %v2880, %v2928
  %v2930 = vpop.f32.mrb[0].mxu0
  %v2931 = vpop.f32.mrb[0].mxu0
  %v2932 = vadd.f32 %v2883, %v2931
  %v2933 = vpop.f32.mrb[0].mxu0
  %2934 = vmatprep.mubr.bf16.mxu0 %v1801
  %2935 = vmatmul.mubr.bf16.gmra.mrb[0].mxu0 %v1800
  %v2936 = vpop.f32.mrb[0].mxu0
  %v2937 = vadd.f32 %v2888, %v2936
  %v2938 = vpop.f32.mrb[0].mxu0
  %v2939 = vpop.f32.mrb[0].mxu0
  %v2940 = vadd.f32 %v2891, %v2939
  %v2941 = vpop.f32.mrb[0].mxu0
  %2942 = vdwg.mxu0
  %2943 = vmatprep.subr.bf16.mxu0 0
  %2944 = vmatpush1.bf16.msra.mxu0 %v2621
  %2945 = vmatprep.subr.bf16.mxu0 0
  %2946 = vmatpush1.bf16.msra.mxu0 %v2622
  %2947 = vmatprep.subr.bf16.mxu0 0
  %2948 = vmatpush1.bf16.msra.mxu0 %v2623
  %2949 = vmatprep.subr.bf16.mxu0 0
  %2950 = vmatpush1.bf16.msra.mxu0 %v2624
  %2951 = vmatprep.subr.bf16.mxu0 0
  %2952 = vmatpush1.bf16.msra.mxu0 %v2625
  %2953 = vmatprep.subr.bf16.mxu0 0
  %2954 = vmatpush1.bf16.msra.mxu0 %v2626
  %2955 = vmatprep.subr.bf16.mxu0 0
  %2956 = vmatpush1.bf16.msra.mxu0 %v2627
  %2957 = vmatprep.subr.bf16.mxu0 0
  %2958 = vmatpush1.bf16.msra.mxu0 %v2628
  %2959 = vmatprep.subr.bf16.mxu0 0
  %2960 = vmatpush1.bf16.msra.mxu0 %v2629
  %2961 = vmatprep.subr.bf16.mxu0 0
  %2962 = vmatpush1.bf16.msra.mxu0 %v2630
  %2963 = vmatprep.subr.bf16.mxu0 0
  %2964 = vmatpush1.bf16.msra.mxu0 %v2631
  %2965 = vmatprep.subr.bf16.mxu0 0
  %2966 = vmatpush1.bf16.msra.mxu0 %v2632
  %2967 = vmatprep.subr.bf16.mxu0 0
  %2968 = vmatpush1.bf16.msra.mxu0 %v2633
  %2969 = vmatprep.subr.bf16.mxu0 0
  %2970 = vmatpush1.bf16.msra.mxu0 %v2634
  %2971 = vmatprep.subr.bf16.mxu0 0
  %2972 = vmatpush1.bf16.msra.mxu0 %v2635
  %2973 = vmatprep.subr.bf16.mxu0 0
  %2974 = vmatpush1.bf16.msra.mxu0 %v2636
  %2975 = vmatprep.mubr.bf16.mxu0 %v1787
  %2976 = vmatmul.mubr.bf16.gmra.mrb[0].mxu0 %v1786
  %v2977 = vpop.f32.mrb[0].mxu0
  %v2978 = vadd.f32 %v2929, %v2977
  %v2979 = vpop.f32.mrb[0].mxu0
  %v2980 = vpop.f32.mrb[0].mxu0
  %v2981 = vadd.f32 %v2932, %v2980
  %v2982 = vpop.f32.mrb[0].mxu0
  %2983 = vmatprep.mubr.bf16.mxu0 %v1803
  %2984 = vmatmul.mubr.bf16.gmra.mrb[0].mxu0 %v1802
  %v2985 = vpop.f32.mrb[0].mxu0
  %v2986 = vadd.f32 %v2937, %v2985
  %v2987 = vpop.f32.mrb[0].mxu0
  %v2988 = vpop.f32.mrb[0].mxu0
  %v2989 = vadd.f32 %v2940, %v2988
  %v2990 = vpop.f32.mrb[0].mxu0
  %2991 = vdwg.mxu0
  %2992 = vmatprep.subr.bf16.mxu0 0
  %2993 = vmatpush1.bf16.msra.mxu0 %v2637
  %2994 = vmatprep.subr.bf16.mxu0 0
  %2995 = vmatpush1.bf16.msra.mxu0 %v2638
  %2996 = vmatprep.subr.bf16.mxu0 0
  %2997 = vmatpush1.bf16.msra.mxu0 %v2639
  %2998 = vmatprep.subr.bf16.mxu0 0
  %2999 = vmatpush1.bf16.msra.mxu0 %v2640
  %3000 = vmatprep.subr.bf16.mxu0 0
  %3001 = vmatpush1.bf16.msra.mxu0 %v2641
  %3002 = vmatprep.subr.bf16.mxu0 0
  %3003 = vmatpush1.bf16.msra.mxu0 %v2642
  %3004 = vmatprep.subr.bf16.mxu0 0
  %3005 = vmatpush1.bf16.msra.mxu0 %v2643
  %3006 = vmatprep.subr.bf16.mxu0 0
  %3007 = vmatpush1.bf16.msra.mxu0 %v2644
  %3008 = vmatprep.subr.bf16.mxu0 0
  %3009 = vmatpush1.bf16.msra.mxu0 %v2645
  %3010 = vmatprep.subr.bf16.mxu0 0
  %3011 = vmatpush1.bf16.msra.mxu0 %v2646
  %3012 = vmatprep.subr.bf16.mxu0 0
  %3013 = vmatpush1.bf16.msra.mxu0 %v2647
  %3014 = vmatprep.subr.bf16.mxu0 0
  %3015 = vmatpush1.bf16.msra.mxu0 %v2648
  %3016 = vmatprep.subr.bf16.mxu0 0
  %3017 = vmatpush1.bf16.msra.mxu0 %v2649
  %3018 = vmatprep.subr.bf16.mxu0 0
  %3019 = vmatpush1.bf16.msra.mxu0 %v2650
  %3020 = vmatprep.subr.bf16.mxu0 0
  %3021 = vmatpush1.bf16.msra.mxu0 %v2651
  %3022 = vmatprep.subr.bf16.mxu0 0
  %3023 = vmatpush1.bf16.msra.mxu0 %v2652
  %3024 = vmatprep.mubr.bf16.mxu0 %v1789
  %3025 = vmatmul.mubr.bf16.gmra.mrb[0].mxu0 %v1788
  %v3026 = vpop.f32.mrb[0].mxu0
  %v3027 = vadd.f32 %v2978, %v3026
  %v3028 = vpop.f32.mrb[0].mxu0
  %v3029 = vpop.f32.mrb[0].mxu0
  %v3030 = vadd.f32 %v2981, %v3029
  %v3031 = vpop.f32.mrb[0].mxu0
  %3032 = vmatprep.mubr.bf16.mxu0 %v1805
  %3033 = vmatmul.mubr.bf16.gmra.mrb[0].mxu0 %v1804
  %v3034 = vpop.f32.mrb[0].mxu0
  %v3035 = vadd.f32 %v2986, %v3034
  %v3036 = vpop.f32.mrb[0].mxu0
  %v3037 = vpop.f32.mrb[0].mxu0
  %v3038 = vadd.f32 %v2989, %v3037
  %v3039 = vpop.f32.mrb[0].mxu0
  %3040 = vdwg.mxu0
  %3041 = vmatprep.subr.bf16.mxu0 0
  %3042 = vmatpush1.bf16.msra.mxu0 %v2653
  %3043 = vmatprep.subr.bf16.mxu0 0
  %3044 = vmatpush1.bf16.msra.mxu0 %v2654
  %3045 = vmatprep.subr.bf16.mxu0 0
  %3046 = vmatpush1.bf16.msra.mxu0 %v2655
  %3047 = vmatprep.subr.bf16.mxu0 0
  %3048 = vmatpush1.bf16.msra.mxu0 %v2656
  %3049 = vmatprep.subr.bf16.mxu0 0
  %3050 = vmatpush1.bf16.msra.mxu0 %v2657
  %3051 = vmatprep.subr.bf16.mxu0 0
  %3052 = vmatpush1.bf16.msra.mxu0 %v2658
  %3053 = vmatprep.subr.bf16.mxu0 0
  %3054 = vmatpush1.bf16.msra.mxu0 %v2659
  %3055 = vmatprep.subr.bf16.mxu0 0
  %3056 = vmatpush1.bf16.msra.mxu0 %v2660
  %3057 = vmatprep.subr.bf16.mxu0 0
  %3058 = vmatpush1.bf16.msra.mxu0 %v2661
  %3059 = vmatprep.subr.bf16.mxu0 0
  %3060 = vmatpush1.bf16.msra.mxu0 %v2662
  %3061 = vmatprep.subr.bf16.mxu0 0
  %3062 = vmatpush1.bf16.msra.mxu0 %v2663
  %3063 = vmatprep.subr.bf16.mxu0 0
  %3064 = vmatpush1.bf16.msra.mxu0 %v2664
  %3065 = vmatprep.subr.bf16.mxu0 0
  %3066 = vmatpush1.bf16.msra.mxu0 %v2665
  %3067 = vmatprep.subr.bf16.mxu0 0
  %3068 = vmatpush1.bf16.msra.mxu0 %v2666
  %3069 = vmatprep.subr.bf16.mxu0 0
  %3070 = vmatpush1.bf16.msra.mxu0 %v2667
  %3071 = vmatprep.subr.bf16.mxu0 0
  %3072 = vmatpush1.bf16.msra.mxu0 %v2668
  %3073 = vmatprep.mubr.bf16.mxu0 %v1791
  %3074 = vmatmul.mubr.bf16.gmra.mrb[0].mxu0 %v1790
  %v3075 = vpop.f32.mrb[0].mxu0
  %v3076 = vadd.f32 %v3027, %v3075
  %v3077 = vpop.f32.mrb[0].mxu0
  %v3078 = vpop.f32.mrb[0].mxu0
  %v3079 = vadd.f32 %v3030, %v3078
  %v3080 = vpop.f32.mrb[0].mxu0
  %3081 = vmatprep.mubr.bf16.mxu0 %v1807
  %3082 = vmatmul.mubr.bf16.gmra.mrb[0].mxu0 %v1806
  %v3083 = vpop.f32.mrb[0].mxu0
  %v3084 = vadd.f32 %v3035, %v3083
  %v3085 = vpop.f32.mrb[0].mxu0
  %v3086 = vpop.f32.mrb[0].mxu0
  %v3087 = vadd.f32 %v3038, %v3086
  %v3088 = vpop.f32.mrb[0].mxu0
  %3089 = vdwg.mxu0
  %3090 = vmatprep.subr.bf16.mxu0 0
  %3091 = vmatpush1.bf16.msra.mxu0 %v2669
  %3092 = vmatprep.subr.bf16.mxu0 0
  %3093 = vmatpush1.bf16.msra.mxu0 %v2670
  %3094 = vmatprep.subr.bf16.mxu0 0
  %3095 = vmatpush1.bf16.msra.mxu0 %v2671
  %3096 = vmatprep.subr.bf16.mxu0 0
  %3097 = vmatpush1.bf16.msra.mxu0 %v2672
  %3098 = vmatprep.subr.bf16.mxu0 0
  %3099 = vmatpush1.bf16.msra.mxu0 %v2673
  %3100 = vmatprep.subr.bf16.mxu0 0
  %3101 = vmatpush1.bf16.msra.mxu0 %v2674
  %3102 = vmatprep.subr.bf16.mxu0 0
  %3103 = vmatpush1.bf16.msra.mxu0 %v2675
  %3104 = vmatprep.subr.bf16.mxu0 0
  %3105 = vmatpush1.bf16.msra.mxu0 %v2676
  %3106 = vmatprep.subr.bf16.mxu0 0
  %3107 = vmatpush1.bf16.msra.mxu0 %v2677
  %3108 = vmatprep.subr.bf16.mxu0 0
  %3109 = vmatpush1.bf16.msra.mxu0 %v2678
  %3110 = vmatprep.subr.bf16.mxu0 0
  %3111 = vmatpush1.bf16.msra.mxu0 %v2679
  %3112 = vmatprep.subr.bf16.mxu0 0
  %3113 = vmatpush1.bf16.msra.mxu0 %v2680
  %3114 = vmatprep.subr.bf16.mxu0 0
  %3115 = vmatpush1.bf16.msra.mxu0 %v2681
  %3116 = vmatprep.subr.bf16.mxu0 0
  %3117 = vmatpush1.bf16.msra.mxu0 %v2682
  %3118 = vmatprep.subr.bf16.mxu0 0
  %3119 = vmatpush1.bf16.msra.mxu0 %v2683
  %3120 = vmatprep.subr.bf16.mxu0 0
  %3121 = vmatpush1.bf16.msra.mxu0 %v2684
  %3122 = vmatprep.mubr.bf16.mxu0 %v1793
  %3123 = vmatmul.mubr.bf16.gmra.mrb[0].mxu0 %v1792
  %v3124 = vpop.f32.mrb[0].mxu0
  %v3125 = vadd.f32 %v3076, %v3124
  %v3126 = vpop.f32.mrb[0].mxu0
  %v3127 = vpop.f32.mrb[0].mxu0
  %v3128 = vadd.f32 %v3079, %v3127
  %v3129 = vpop.f32.mrb[0].mxu0
  %3130 = vmatprep.mubr.bf16.mxu0 %v1809
  %3131 = vmatmul.mubr.bf16.gmra.mrb[0].mxu0 %v1808
  %v3132 = vpop.f32.mrb[0].mxu0
  %v3133 = vadd.f32 %v3084, %v3132
  %v3134 = vpop.f32.mrb[0].mxu0
  %v3135 = vpop.f32.mrb[0].mxu0
  %v3136 = vadd.f32 %v3087, %v3135
  %v3137 = vpop.f32.mrb[0].mxu0
  %3138 = vdwg.mxu0
  %3139 = vmatprep.subr.bf16.mxu0 0
  %3140 = vmatpush1.bf16.msra.mxu0 %v2685
  %3141 = vmatprep.subr.bf16.mxu0 0
  %3142 = vmatpush1.bf16.msra.mxu0 %v2686
  %3143 = vmatprep.subr.bf16.mxu0 0
  %3144 = vmatpush1.bf16.msra.mxu0 %v2687
  %3145 = vmatprep.subr.bf16.mxu0 0
  %3146 = vmatpush1.bf16.msra.mxu0 %v2688
  %3147 = vmatprep.subr.bf16.mxu0 0
  %3148 = vmatpush1.bf16.msra.mxu0 %v2689
  %3149 = vmatprep.subr.bf16.mxu0 0
  %3150 = vmatpush1.bf16.msra.mxu0 %v2690
  %3151 = vmatprep.subr.bf16.mxu0 0
  %3152 = vmatpush1.bf16.msra.mxu0 %v2691
  %3153 = vmatprep.subr.bf16.mxu0 0
  %3154 = vmatpush1.bf16.msra.mxu0 %v2692
  %3155 = vmatprep.subr.bf16.mxu0 0
  %3156 = vmatpush1.bf16.msra.mxu0 %v2693
  %3157 = vmatprep.subr.bf16.mxu0 0
  %3158 = vmatpush1.bf16.msra.mxu0 %v2694
  %3159 = vmatprep.subr.bf16.mxu0 0
  %3160 = vmatpush1.bf16.msra.mxu0 %v2695
  %3161 = vmatprep.subr.bf16.mxu0 0
  %3162 = vmatpush1.bf16.msra.mxu0 %v2696
  %3163 = vmatprep.subr.bf16.mxu0 0
  %3164 = vmatpush1.bf16.msra.mxu0 %v2697
  %3165 = vmatprep.subr.bf16.mxu0 0
  %3166 = vmatpush1.bf16.msra.mxu0 %v2698
  %3167 = vmatprep.subr.bf16.mxu0 0
  %3168 = vmatpush1.bf16.msra.mxu0 %v2699
  %3169 = vmatprep.subr.bf16.mxu0 0
  %3170 = vmatpush1.bf16.msra.mxu0 %v2700
  %3171 = vmatprep.mubr.bf16.mxu0 %v1795
  %3172 = vmatmul.mubr.bf16.gmra.mrb[0].mxu0 %v1794
  %v3173 = vpop.f32.mrb[0].mxu0
  %v3174 = vadd.f32 %v3125, %v3173
  %v3175 = vpop.f32.mrb[0].mxu0
  %v3176 = vpop.f32.mrb[0].mxu0
  %v3177 = vadd.f32 %v3128, %v3176
  %v3178 = vpop.f32.mrb[0].mxu0
  %3179 = vmatprep.mubr.bf16.mxu0 %v1811
  %3180 = vmatmul.mubr.bf16.gmra.mrb[0].mxu0 %v1810
  %v3181 = vpop.f32.mrb[0].mxu0
  %v3182 = vadd.f32 %v3133, %v3181
  %v3183 = vpop.f32.mrb[0].mxu0
  %v3184 = vpop.f32.mrb[0].mxu0
  %v3185 = vadd.f32 %v3136, %v3184
  %v3186 = vpop.f32.mrb[0].mxu0
  %3187 = vdwg.mxu0
  %3188 = vmatprep.subr.bf16.mxu0 0
  %3189 = vmatpush1.bf16.msra.mxu0 %v2701
  %3190 = vmatprep.subr.bf16.mxu0 0
  %3191 = vmatpush1.bf16.msra.mxu0 %v2702
  %3192 = vmatprep.subr.bf16.mxu0 0
  %3193 = vmatpush1.bf16.msra.mxu0 %v2703
  %3194 = vmatprep.subr.bf16.mxu0 0
  %3195 = vmatpush1.bf16.msra.mxu0 %v2704
  %3196 = vmatprep.subr.bf16.mxu0 0
  %3197 = vmatpush1.bf16.msra.mxu0 %v2705
  %3198 = vmatprep.subr.bf16.mxu0 0
  %3199 = vmatpush1.bf16.msra.mxu0 %v2706
  %3200 = vmatprep.subr.bf16.mxu0 0
  %3201 = vmatpush1.bf16.msra.mxu0 %v2707
  %3202 = vmatprep.subr.bf16.mxu0 0
  %3203 = vmatpush1.bf16.msra.mxu0 %v2708
  %3204 = vmatprep.subr.bf16.mxu0 0
  %3205 = vmatpush1.bf16.msra.mxu0 %v2709
  %3206 = vmatprep.subr.bf16.mxu0 0
  %3207 = vmatpush1.bf16.msra.mxu0 %v2710
  %3208 = vmatprep.subr.bf16.mxu0 0
  %3209 = vmatpush1.bf16.msra.mxu0 %v2711
  %3210 = vmatprep.subr.bf16.mxu0 0
  %3211 = vmatpush1.bf16.msra.mxu0 %v2712
  %3212 = vmatprep.subr.bf16.mxu0 0
  %3213 = vmatpush1.bf16.msra.mxu0 %v2713
  %3214 = vmatprep.subr.bf16.mxu0 0
  %3215 = vmatpush1.bf16.msra.mxu0 %v2714
  %3216 = vmatprep.subr.bf16.mxu0 0
  %3217 = vmatpush1.bf16.msra.mxu0 %v2715
  %3218 = vmatprep.subr.bf16.mxu0 0
  %3219 = vmatpush1.bf16.msra.mxu0 %v2716
  %3220 = vmatprep.mubr.bf16.mxu0 %v1797
  %3221 = vmatmul.mubr.bf16.gmra.mrb[0].mxu0 %v1796
  %v3222 = vpop.f32.mrb[0].mxu0
  %v3223 = vadd.f32 %v3174, %v3222
  %v3224 = vpop.f32.mrb[0].mxu0
  %v3225 = vpop.f32.mrb[0].mxu0
  %v3226 = vadd.f32 %v3177, %v3225
  %v3227 = vpop.f32.mrb[0].mxu0
  %3228 = vmatprep.mubr.bf16.mxu0 %v1813
  %3229 = vmatmul.mubr.bf16.gmra.mrb[0].mxu0 %v1812
  %v3230 = vpop.f32.mrb[0].mxu0
  %v3231 = vadd.f32 %v3182, %v3230
  %v3232 = vpop.f32.mrb[0].mxu0
  %v3233 = vpop.f32.mrb[0].mxu0
  %v3234 = vadd.f32 %v3185, %v3233
  %v3235 = vpop.f32.mrb[0].mxu0
  %3236 = vdwg.mxu0
  %v3237 = vmax.f32 %v3223, 0.0
  %v3238 = vmax.f32 %v3226, 0.0
  %v3239 = vmax.f32 %v3231, 0.0
  %v3240 = vmax.f32 %v3234, 0.0
  %v3241 = vpack.c.bf16 %v3238, %v3237
  %v3242 = vpack.c.bf16 %v3240, %v3239
  %v3243 = vld [vmem:[%s5] sm:$0xf]
  %v3244 = vld [vmem:[%s5 + $0x4] sm:$0xf]
  %v3245 = vld [vmem:[%s5 + $0x8] sm:$0xf]
  %v3246 = vld [vmem:[%s5 + $0xc] sm:$0xf]
  %v3247 = vld [vmem:[%s6] sm:$0x1]
  %v3249 = vlaneseq
  %v3250 = vshrl.u32 %v3249, 7
  %v3251 = vsub.s32 0, %v3250
  %v3252 = vrot.slane %v3247, %v3251
  %v3258 = vunpack.c.l.b16 %v3243
  %v3259 = vunpack.c.l.b16 %v3244
  %v3260 = vunpack.c.l.b16 %v3245
  %v3261 = vunpack.c.l.b16 %v3246
  %v3262 = vpack.c.b16 %v3259, %v3258
  %v3263 = vpack.c.b16 %v3261, %v3260
  %vm3266 = vcmask 261120
  %v3268 = vsel %vm3266, %v3241, 0
  %v3271 = vsel %vm3266, %v3242, 0
  %3273 = vmatprep.subr.bf16.mxu0 0
  %3274 = vmatpush1.bf16.msra.mxu0 %v3262
  %3275 = vmatprep.subr.bf16.mxu0 0
  %3276 = vmatpush1.bf16.msra.mxu0 %v3263
  %3277 = vmatprep.subr.bf16.mxu0 0
  %3278 = vmatpush1.bf16.msra.mxu0 0
  %3279 = vmatprep.subr.bf16.mxu0 0
  %3280 = vmatpush1.bf16.msra.mxu0 0
  %3281 = vmatprep.subr.bf16.mxu0 0
  %3282 = vmatpush1.bf16.msra.mxu0 0
  %3283 = vmatprep.subr.bf16.mxu0 0
  %3284 = vmatpush1.bf16.msra.mxu0 0
  %3285 = vmatprep.subr.bf16.mxu0 0
  %3286 = vmatpush1.bf16.msra.mxu0 0
  %3287 = vmatprep.subr.bf16.mxu0 0
  %3288 = vmatpush1.bf16.msra.mxu0 0
  %3289 = vmatprep.subr.bf16.mxu0 0
  %3290 = vmatpush1.bf16.msra.mxu0 0
  %3291 = vmatprep.subr.bf16.mxu0 0
  %3292 = vmatpush1.bf16.msra.mxu0 0
  %3293 = vmatprep.subr.bf16.mxu0 0
  %3294 = vmatpush1.bf16.msra.mxu0 0
  %3295 = vmatprep.subr.bf16.mxu0 0
  %3296 = vmatpush1.bf16.msra.mxu0 0
  %3297 = vmatprep.subr.bf16.mxu0 0
  %3298 = vmatpush1.bf16.msra.mxu0 0
  %3299 = vmatprep.subr.bf16.mxu0 0
  %3300 = vmatpush1.bf16.msra.mxu0 0
  %3301 = vmatprep.subr.bf16.mxu0 0
  %3302 = vmatpush1.bf16.msra.mxu0 0
  %3303 = vmatprep.subr.bf16.mxu0 0
  %3304 = vmatpush1.bf16.msra.mxu0 0
  %3305 = vmatprep.mubr.bf16.mxu0 0
  %3306 = vmatmul.mubr.bf16.gmra.mrb[0].mxu0 %v3268
  %v3307 = vpop.f32.mrb[0].mxu0
  %v3308 = vadd.f32 %v3252, %v3307
  %v3309 = vpop.f32.mrb[0].mxu0
  %v3310 = vpop.f32.mrb[0].mxu0
  %v3311 = vadd.f32 %v3252, %v3310
  %v3312 = vpop.f32.mrb[0].mxu0
  %3313 = vmatprep.mubr.bf16.mxu0 0
  %3314 = vmatmul.mubr.bf16.gmra.mrb[0].mxu0 %v3271
  %v3315 = vpop.f32.mrb[0].mxu0
  %v3316 = vadd.f32 %v3252, %v3315
  %v3317 = vpop.f32.mrb[0].mxu0
  %v3318 = vpop.f32.mrb[0].mxu0
  %v3319 = vadd.f32 %v3252, %v3318
  %v3320 = vpop.f32.mrb[0].mxu0
  %3321 = vdwg.mxu0
  %3322 = vmax.xlane.f32.xlu0 %v3308
  %v3323 = vpop.xlane.xlu0 %3322
  %3324 = vmax.xlane.f32.xlu0 %v3311
  %v3325 = vpop.xlane.xlu0 %3324
  %3326 = vmax.xlane.f32.xlu0 %v3316
  %v3327 = vpop.xlane.xlu0 %3326
  %3328 = vmax.xlane.f32.xlu0 %v3319
  %v3329 = vpop.xlane.xlu0 %3328
  %v3330 = vlaneseq
  %v3331 = vand.u32 %v3330, 127
  %vm3332 = vcmp.eq.f32.partialorder %v3308, %v3323
  %vm3333 = vcmp.eq.f32.partialorder %v3311, %v3325
  %vm3334 = vcmp.eq.f32.partialorder %v3316, %v3327
  %vm3335 = vcmp.eq.f32.partialorder %v3319, %v3329
  %v3336 = vsel %vm3332, %v3331, 128
  %v3337 = vsel %vm3333, %v3331, 128
  %v3338 = vsel %vm3334, %v3331, 128
  %v3339 = vsel %vm3335, %v3331, 128
  %v3340 = vand.u32 %v3336, 65535
  %v3341 = vshra.s32 %v3336, 16
  %v3342 = vcvt.s32.f32 %v3340
  %v3343 = vcvt.s32.f32 %v3341
  %3344 = vmin.xlane.f32.xlu0 %v3343
  %v3345 = vpop.xlane.xlu0 %3344
  %vm3346 = vcmp.eq.f32.partialorder %v3343, %v3345
  %v3347 = vsel %vm3346, %v3342, inf
  %3348 = vmin.xlane.f32.xlu0 %v3347
  %v3349 = vpop.xlane.xlu0 %3348
  %v3350 = vcvt.f32.s32 %v3349
  %v3351 = vcvt.f32.s32 %v3345
  %v3352 = vshll.u32 %v3351, 16
  %v3353 = vadd.s32 %v3352, %v3350
  %v3354 = vand.u32 %v3337, 65535
  %v3355 = vshra.s32 %v3337, 16
  %v3356 = vcvt.s32.f32 %v3354
  %v3357 = vcvt.s32.f32 %v3355
  %3358 = vmin.xlane.f32.xlu0 %v3357
  %v3359 = vpop.xlane.xlu0 %3358
  %vm3360 = vcmp.eq.f32.partialorder %v3357, %v3359
  %v3361 = vsel %vm3360, %v3356, inf
  %3362 = vmin.xlane.f32.xlu0 %v3361
  %v3363 = vpop.xlane.xlu0 %3362
  %v3364 = vcvt.f32.s32 %v3363
  %v3365 = vcvt.f32.s32 %v3359
  %v3366 = vshll.u32 %v3365, 16
  %v3367 = vadd.s32 %v3366, %v3364
  %v3368 = vand.u32 %v3338, 65535
  %v3369 = vshra.s32 %v3338, 16
  %v3370 = vcvt.s32.f32 %v3368
  %v3371 = vcvt.s32.f32 %v3369
  %3372 = vmin.xlane.f32.xlu0 %v3371
  %v3373 = vpop.xlane.xlu0 %3372
  %vm3374 = vcmp.eq.f32.partialorder %v3371, %v3373
  %v3375 = vsel %vm3374, %v3370, inf
  %3376 = vmin.xlane.f32.xlu0 %v3375
  %v3377 = vpop.xlane.xlu0 %3376
  %v3378 = vcvt.f32.s32 %v3377
  %v3379 = vcvt.f32.s32 %v3373
  %v3380 = vshll.u32 %v3379, 16
  %v3381 = vadd.s32 %v3380, %v3378
  %v3382 = vand.u32 %v3339, 65535
  %v3383 = vshra.s32 %v3339, 16
  %v3384 = vcvt.s32.f32 %v3382
  %v3385 = vcvt.s32.f32 %v3383
  %3386 = vmin.xlane.f32.xlu0 %v3385
  %v3387 = vpop.xlane.xlu0 %3386
  %vm3388 = vcmp.eq.f32.partialorder %v3385, %v3387
  %v3389 = vsel %vm3388, %v3384, inf
  %3390 = vmin.xlane.f32.xlu0 %v3389
  %v3391 = vpop.xlane.xlu0 %3390
  %v3392 = vcvt.f32.s32 %v3391
  %v3393 = vcvt.f32.s32 %v3387
  %v3394 = vshll.u32 %v3393, 16
  %v3395 = vadd.s32 %v3394, %v3392
  %vm3396 = vcmp.eq.s32.totalorder %v3331, %v3353
  %vm3397 = vcmp.eq.s32.totalorder %v3331, %v3367
  %vm3398 = vcmp.eq.s32.totalorder %v3331, %v3381
  %vm3399 = vcmp.eq.s32.totalorder %v3331, %v3395
  %v3400 = vsel %vm3396, 1, 0
  %v3401 = vsel %vm3397, 1, 0
  %v3402 = vsel %vm3398, 1, 0
  %v3403 = vsel %vm3399, 1, 0
  %v3404 = vcvt.s32.f32 %v3400
  %v3405 = vcvt.s32.f32 %v3401
  %v3406 = vcvt.s32.f32 %v3402
  %v3407 = vcvt.s32.f32 %v3403
  %v3408 = vpack.c.bf16 %v3405, %v3404
  %v3409 = vpack.c.bf16 %v3407, %v3406
  %v3410 = vld [vmem:[%s7] sm:$0xf]
  %v3411 = vld [vmem:[%s7 + $0x4] sm:$0xf]
  %v3412 = vld [vmem:[%s7 + $0x8] sm:$0xf]
  %v3413 = vld [vmem:[%s7 + $0xc] sm:$0xf]
  %v3414 = vld [vmem:[%s7 + $0x10] sm:$0xf]
  %v3415 = vld [vmem:[%s7 + $0x14] sm:$0xf]
  %v3416 = vld [vmem:[%s7 + $0x18] sm:$0xf]
  %v3417 = vld [vmem:[%s7 + $0x1c] sm:$0xf]
  %v3418 = vld [vmem:[%s7 + $0x20] sm:$0xf]
  %v3419 = vld [vmem:[%s7 + $0x24] sm:$0xf]
  %v3420 = vld [vmem:[%s7 + $0x28] sm:$0xf]
  %v3421 = vld [vmem:[%s7 + $0x2c] sm:$0xf]
  %v3422 = vld [vmem:[%s7 + $0x30] sm:$0xf]
  %v3423 = vld [vmem:[%s7 + $0x34] sm:$0xf]
  %v3424 = vld [vmem:[%s7 + $0x38] sm:$0xf]
  %v3425 = vld [vmem:[%s7 + $0x3c] sm:$0xf]
  %v3426 = vld [vmem:[%s8] sm:$0x1]
  %v3428 = vlaneseq
  %v3429 = vshrl.u32 %v3428, 7
  %v3430 = vsub.s32 0, %v3429
  %v3431 = vrot.slane %v3426, %v3430
  %v3449 = vunpack.c.l.b16 %v3410
  %v3450 = vunpack.c.l.b16 %v3411
  %v3451 = vunpack.c.l.b16 %v3412
  %v3452 = vunpack.c.l.b16 %v3413
  %v3453 = vunpack.c.l.b16 %v3414
  %v3454 = vunpack.c.l.b16 %v3415
  %v3455 = vunpack.c.l.b16 %v3416
  %v3456 = vunpack.c.l.b16 %v3417
  %v3457 = vunpack.c.l.b16 %v3418
  %v3458 = vunpack.c.l.b16 %v3419
  %v3459 = vunpack.c.l.b16 %v3420
  %v3460 = vunpack.c.l.b16 %v3421
  %v3461 = vunpack.c.l.b16 %v3422
  %v3462 = vunpack.c.l.b16 %v3423
  %v3463 = vunpack.c.l.b16 %v3424
  %v3464 = vunpack.c.l.b16 %v3425
  %v3465 = vpack.c.b16 %v3450, %v3449
  %v3466 = vpack.c.b16 %v3452, %v3451
  %v3467 = vpack.c.b16 %v3454, %v3453
  %v3468 = vpack.c.b16 %v3456, %v3455
  %v3469 = vpack.c.b16 %v3458, %v3457
  %v3470 = vpack.c.b16 %v3460, %v3459
  %v3471 = vpack.c.b16 %v3462, %v3461
  %v3472 = vpack.c.b16 %v3464, %v3463
  %3481 = vmatprep.subr.bf16.mxu0 0
  %3482 = vmatpush1.bf16.msra.mxu0 %v3465
  %3483 = vmatprep.subr.bf16.mxu0 0
  %3484 = vmatpush1.bf16.msra.mxu0 %v3466
  %3485 = vmatprep.subr.bf16.mxu0 0
  %3486 = vmatpush1.bf16.msra.mxu0 %v3467
  %3487 = vmatprep.subr.bf16.mxu0 0
  %3488 = vmatpush1.bf16.msra.mxu0 %v3468
  %3489 = vmatprep.subr.bf16.mxu0 0
  %3490 = vmatpush1.bf16.msra.mxu0 %v3469
  %3491 = vmatprep.subr.bf16.mxu0 0
  %3492 = vmatpush1.bf16.msra.mxu0 %v3470
  %3493 = vmatprep.subr.bf16.mxu0 0
  %3494 = vmatpush1.bf16.msra.mxu0 %v3471
  %3495 = vmatprep.subr.bf16.mxu0 0
  %3496 = vmatpush1.bf16.msra.mxu0 %v3472
  %3497 = vmatprep.subr.bf16.mxu0 0
  %3498 = vmatpush1.bf16.msra.mxu0 0
  %3499 = vmatprep.subr.bf16.mxu0 0
  %3500 = vmatpush1.bf16.msra.mxu0 0
  %3501 = vmatprep.subr.bf16.mxu0 0
  %3502 = vmatpush1.bf16.msra.mxu0 0
  %3503 = vmatprep.subr.bf16.mxu0 0
  %3504 = vmatpush1.bf16.msra.mxu0 0
  %3505 = vmatprep.subr.bf16.mxu0 0
  %3506 = vmatpush1.bf16.msra.mxu0 0
  %3507 = vmatprep.subr.bf16.mxu0 0
  %3508 = vmatpush1.bf16.msra.mxu0 0
  %3509 = vmatprep.subr.bf16.mxu0 0
  %3510 = vmatpush1.bf16.msra.mxu0 0
  %3511 = vmatprep.subr.bf16.mxu0 0
  %3512 = vmatpush1.bf16.msra.mxu0 0
  %3513 = vmatprep.mubr.bf16.mxu0 0
  %3514 = vmatmul.mubr.bf16.gmra.mrb[0].mxu0 %v3408
  %v3515 = vpop.f32.mrb[0].mxu0
  %v3516 = vadd.f32 %v3431, %v3515
  %v3517 = vpop.f32.mrb[0].mxu0
  %v3518 = vpop.f32.mrb[0].mxu0
  %v3519 = vadd.f32 %v3431, %v3518
  %v3520 = vpop.f32.mrb[0].mxu0
  %3521 = vmatprep.mubr.bf16.mxu0 0
  %3522 = vmatmul.mubr.bf16.gmra.mrb[0].mxu0 %v3409
  %v3523 = vpop.f32.mrb[0].mxu0
  %v3524 = vadd.f32 %v3431, %v3523
  %v3525 = vpop.f32.mrb[0].mxu0
  %v3526 = vpop.f32.mrb[0].mxu0
  %v3527 = vadd.f32 %v3431, %v3526
  %v3528 = vpop.f32.mrb[0].mxu0
  %3529 = vdwg.mxu0
  %v3530 = vmax.f32 %v3516, 0.0
  %v3531 = vmax.f32 %v3519, 0.0
  %v3532 = vmax.f32 %v3524, 0.0
  %v3533 = vmax.f32 %v3527, 0.0
  %v3534 = vpack.c.bf16 %v3531, %v3530
  %v3535 = vpack.c.bf16 %v3533, %v3532
  %v3536 = vld [vmem:[%s9] sm:$0xff]
  %v3537 = vld [vmem:[%s9 + $0x8] sm:$0xff]
  %v3538 = vld [vmem:[%s9 + $0x10] sm:$0xff]
  %v3539 = vld [vmem:[%s9 + $0x18] sm:$0xff]
  %v3540 = vld [vmem:[%s10] sm:$0x3]
  %v3542 = vlaneseq
  %v3543 = vshrl.u32 %v3542, 7
  %v3544 = vsub.s32 0, %v3543
  %v3545 = vrot.slane %v3540, %v3544
  %v3546 = vlaneseq
  %v3547 = vshrl.u32 %v3546, 7
  %v3548 = vsub.s32 1, %v3547
  %v3549 = vrot.slane %v3540, %v3548
  %v3556 = vunpack.c.l.b16 %v3536
  %v3557 = vunpack.c.h.b16 %v3536
  %v3558 = vunpack.c.l.b16 %v3537
  %v3559 = vunpack.c.h.b16 %v3537
  %v3560 = vunpack.c.l.b16 %v3538
  %v3561 = vunpack.c.h.b16 %v3538
  %v3562 = vunpack.c.l.b16 %v3539
  %v3563 = vunpack.c.h.b16 %v3539
  %v3564 = vpack.c.b16 %v3558, %v3556
  %v3565 = vpack.c.b16 %v3559, %v3557
  %v3566 = vpack.c.b16 %v3562, %v3560
  %v3567 = vpack.c.b16 %v3563, %v3561
  %v3573 = vsel %vm3266, %v3534, 0
  %v3576 = vsel %vm3266, %v3535, 0
  %3578 = vmatprep.subr.bf16.mxu0 %v3565
  %3579 = vmatpush1.bf16.msra.mxu0 %v3564
  %3580 = vmatprep.subr.bf16.mxu0 %v3567
  %3581 = vmatpush1.bf16.msra.mxu0 %v3566
  %3582 = vmatprep.subr.bf16.mxu0 0
  %3583 = vmatpush1.bf16.msra.mxu0 0
  %3584 = vmatprep.subr.bf16.mxu0 0
  %3585 = vmatpush1.bf16.msra.mxu0 0
  %3586 = vmatprep.subr.bf16.mxu0 0
  %3587 = vmatpush1.bf16.msra.mxu0 0
  %3588 = vmatprep.subr.bf16.mxu0 0
  %3589 = vmatpush1.bf16.msra.mxu0 0
  %3590 = vmatprep.subr.bf16.mxu0 0
  %3591 = vmatpush1.bf16.msra.mxu0 0
  %3592 = vmatprep.subr.bf16.mxu0 0
  %3593 = vmatpush1.bf16.msra.mxu0 0
  %3594 = vmatprep.subr.bf16.mxu0 0
  %3595 = vmatpush1.bf16.msra.mxu0 0
  %3596 = vmatprep.subr.bf16.mxu0 0
  %3597 = vmatpush1.bf16.msra.mxu0 0
  %3598 = vmatprep.subr.bf16.mxu0 0
  %3599 = vmatpush1.bf16.msra.mxu0 0
  %3600 = vmatprep.subr.bf16.mxu0 0
  %3601 = vmatpush1.bf16.msra.mxu0 0
  %3602 = vmatprep.subr.bf16.mxu0 0
  %3603 = vmatpush1.bf16.msra.mxu0 0
  %3604 = vmatprep.subr.bf16.mxu0 0
  %3605 = vmatpush1.bf16.msra.mxu0 0
  %3606 = vmatprep.subr.bf16.mxu0 0
  %3607 = vmatpush1.bf16.msra.mxu0 0
  %3608 = vmatprep.subr.bf16.mxu0 0
  %3609 = vmatpush1.bf16.msra.mxu0 0
  %3610 = vmatprep.mubr.bf16.mxu0 0
  %3611 = vmatmul.mubr.bf16.gmra.mrb[0].mxu0 %v3573
  %v3612 = vpop.f32.mrb[0].mxu0
  %v3613 = vadd.f32 %v3545, %v3612
  %v3614 = vpop.f32.mrb[0].mxu0
  %v3615 = vadd.f32 %v3549, %v3614
  %v3616 = vpop.f32.mrb[0].mxu0
  %v3617 = vadd.f32 %v3545, %v3616
  %v3618 = vpop.f32.mrb[0].mxu0
  %v3619 = vadd.f32 %v3549, %v3618
  %3620 = vmatprep.mubr.bf16.mxu0 0
  %3621 = vmatmul.mubr.bf16.gmra.mrb[0].mxu0 %v3576
  %v3622 = vpop.f32.mrb[0].mxu0
  %v3623 = vadd.f32 %v3545, %v3622
  %v3624 = vpop.f32.mrb[0].mxu0
  %v3625 = vadd.f32 %v3549, %v3624
  %v3626 = vpop.f32.mrb[0].mxu0
  %v3627 = vadd.f32 %v3545, %v3626
  %v3628 = vpop.f32.mrb[0].mxu0
  %v3629 = vadd.f32 %v3549, %v3628
  %3630 = vdwg.mxu0
  %v3631 = vxor.u32 %v3613, 2147483648
  %v3632 = vxor.u32 %v3615, 2147483648
  %v3633 = vxor.u32 %v3617, 2147483648
  %v3634 = vxor.u32 %v3619, 2147483648
  %v3635 = vxor.u32 %v3623, 2147483648
  %v3636 = vxor.u32 %v3625, 2147483648
  %v3637 = vxor.u32 %v3627, 2147483648
  %v3638 = vxor.u32 %v3629, 2147483648
  %v3639 = vmul.f32 %v3631, 1.442695
  %v3640 = vpow.pop %v3639
  %v3641 = vmul.f32 %v3632, 1.442695
  %v3642 = vpow.pop %v3641
  %v3643 = vmul.f32 %v3633, 1.442695
  %v3644 = vpow.pop %v3643
  %v3645 = vmul.f32 %v3634, 1.442695
  %v3646 = vpow.pop %v3645
  %v3647 = vmul.f32 %v3635, 1.442695
  %v3648 = vpow.pop %v3647
  %v3649 = vmul.f32 %v3636, 1.442695
  %v3650 = vpow.pop %v3649
  %v3651 = vmul.f32 %v3637, 1.442695
  %v3652 = vpow.pop %v3651
  %v3653 = vmul.f32 %v3638, 1.442695
  %v3654 = vpow.pop %v3653
  %v3655 = vadd.f32 %v3640, 1.0
  %v3656 = vadd.f32 %v3642, 1.0
  %v3657 = vadd.f32 %v3644, 1.0
  %v3658 = vadd.f32 %v3646, 1.0
  %v3659 = vadd.f32 %v3648, 1.0
  %v3660 = vadd.f32 %v3650, 1.0
  %v3661 = vadd.f32 %v3652, 1.0
  %v3662 = vadd.f32 %v3654, 1.0
  %v3663 = vrcp.pop %v3655
  %v3664 = vmul.f32 1.0, %v3663
  %v3665 = vrcp.pop %v3656
  %v3666 = vmul.f32 1.0, %v3665
  %v3667 = vrcp.pop %v3657
  %v3668 = vmul.f32 1.0, %v3667
  %v3669 = vrcp.pop %v3658
  %v3670 = vmul.f32 1.0, %v3669
  %v3671 = vrcp.pop %v3659
  %v3672 = vmul.f32 1.0, %v3671
  %v3673 = vrcp.pop %v3660
  %v3674 = vmul.f32 1.0, %v3673
  %v3675 = vrcp.pop %v3661
  %v3676 = vmul.f32 1.0, %v3675
  %v3677 = vrcp.pop %v3662
  %v3678 = vmul.f32 1.0, %v3677
  %v3679 = vsub.f32 %v3664, 0.1
  %v3680 = vsub.f32 %v3666, 0.1
  %v3681 = vsub.f32 %v3668, 0.1
  %v3682 = vsub.f32 %v3670, 0.1
  %v3683 = vsub.f32 %v3672, 0.1
  %v3684 = vsub.f32 %v3674, 0.1
  %v3685 = vsub.f32 %v3676, 0.1
  %v3686 = vsub.f32 %v3678, 0.1
  %v3687 = vrcp.pop 0.8
  %v3688 = vmul.f32 %v3679, %v3687
  %v3689 = vmul.f32 %v3680, %v3687
  %v3690 = vmul.f32 %v3681, %v3687
  %v3691 = vmul.f32 %v3682, %v3687
  %v3692 = vmul.f32 %v3683, %v3687
  %v3693 = vmul.f32 %v3684, %v3687
  %v3694 = vmul.f32 %v3685, %v3687
  %v3695 = vmul.f32 %v3686, %v3687
  %v3696 = vmax.f32 %v3688, 0.0
  %v3697 = vmax.f32 %v3689, 0.0
  %v3698 = vmax.f32 %v3690, 0.0
  %v3699 = vmax.f32 %v3691, 0.0
  %v3700 = vmax.f32 %v3692, 0.0
  %v3701 = vmax.f32 %v3693, 0.0
  %v3702 = vmax.f32 %v3694, 0.0
  %v3703 = vmax.f32 %v3695, 0.0
  %v3704 = vmin.f32 %v3696, 1.0
  %v3705 = vmin.f32 %v3697, 1.0
  %v3706 = vmin.f32 %v3698, 1.0
  %v3707 = vmin.f32 %v3699, 1.0
  %v3708 = vmin.f32 %v3700, 1.0
  %v3709 = vmin.f32 %v3701, 1.0
  %v3710 = vmin.f32 %v3702, 1.0
  %v3711 = vmin.f32 %v3703, 1.0
  %3712 = vst [vmem:[%s11] sm:$0xff] %v3704
  %3713 = vst.msk [vmem:[%s11 + $0x8] sm:$0xff] %vm1287, %v3705
  %3714 = vst [vmem:[%s11 + $0x10] sm:$0xff] %v3706
  %3715 = vst.msk [vmem:[%s11 + $0x18] sm:$0xff] %vm1287, %v3707
  %3716 = vst [vmem:[%s11 + $0x20] sm:$0xff] %v3708
  %3717 = vst.msk [vmem:[%s11 + $0x28] sm:$0xff] %vm1287, %v3709
  %3718 = vst [vmem:[%s11 + $0x30] sm:$0xff] %v3710
  %3719 = vst.msk [vmem:[%s11 + $0x38] sm:$0xff] %vm1287, %v3711
  // Predicated region
  $region46: #{dalle_forward.1} parent=0 // pred_check
    _
  $region47: #{dalle_forward.1} parent=0 // pred_check_branch
    %3721 = sbr.rel (0) target = $region49
  $region48: #{dalle_forward.1} parent=0 // pred_region
    _
  $region49: #{dalle_forward.1} parent=0 // pred_fallthru
    _
  // Predicated region
  $region50: #{dalle_forward.1} parent=0 // pred_check
    _
  $region51: #{dalle_forward.1} parent=0 // pred_check_branch
    %3723 = sbr.rel (0) target = $region53
  $region52: #{dalle_forward.1} parent=0 // pred_region
    _
  $region53: #{dalle_forward.1} parent=0 // pred_fallthru
    _

</llo_original>
